<compile_context>
chip_gen: v6e
topology: v6e:2x2x1
jax: 0.10.0
libtpu: 0.0.40
codegen_flags: <defaults>
</compile_context>

<pallas_src>
import jax
import jax.numpy as jnp
from jax.experimental import pallas as pl
from jax.experimental.pallas import tpu as pltpu

HIDDEN = 2048


def _round_up(x, m):
    return (x + m - 1) // m * m


def _cdiv(a, b):
    return -(-a // b)


def _vmem_capacity_bytes():
    """Physical VMEM of the local TPU generation (fallback: v7x's 64 MiB)."""
    try:
        info = pltpu.get_tpu_info()
        for name in ("vmem_capacity_bytes", "vmem_size_bytes", "vmem_bytes"):
            v = getattr(info, name, None)
            if v:
                return int(v)
    except Exception:
        pass
    return 64 * 1024 * 1024


# ---------------------------------------------------------------------------
# Kernel
# ---------------------------------------------------------------------------
def stack_mlp_kernel(x_ref, w1_ref, b1_ref, w2_ref, b2_ref, o_ref, acc_ref):
    k = pl.program_id(1)

    @pl.when(k == 0)
    def _():
        acc_ref[...] = jnp.zeros_like(acc_ref)

    # layer_1 partial product: bf16 operands, f32 MXU accumulation.
    acc_ref[...] += jnp.dot(x_ref[...], w1_ref[...],
                            preferred_element_type=jnp.float32)

    @pl.when(k == pl.num_programs(1) - 1)
    def _():
        z = acc_ref[...] + b1_ref[...]                  # f32 epilogue (v5e-safe)
        # layer_2: re-quantize the intermediate to bf16 for the second matmul.
        y = jnp.dot(z.astype(jnp.bfloat16), w2_ref[...],
                    preferred_element_type=jnp.float32)
        y = y + b2_ref[...]
        o_ref[...] = jnp.maximum(y, 0.0).astype(o_ref.dtype)   # ReLU after layer_2


# ---------------------------------------------------------------------------
# One-time parameter preparation (hoisted out of the per-call hot path)
# ---------------------------------------------------------------------------
def prepare_params(w1, b1, w2, b2, *, tk_max=1024):
    """Cast weights to bf16 and pad once.  Call outside the hot loop."""
    in_feats, hidden = w1.shape
    out_feats = w2.shape[1]
    assert hidden == HIDDEN and w2.shape[0] == HIDDEN

    # K (contraction) tiling of layer_1: keep w1 fully resident when small,
    # otherwise stream (tk, 2048) slabs (tk a multiple of 128).
    if in_feats <= tk_max:
        tk, k_pad = in_feats, in_feats
    else:
        tk = max(128, (tk_max // 128) * 128)
        k_pad = _round_up(in_feats, tk)
    n_k = k_pad // tk

    # Lane-dense (multiple-of-128) output so stores are unmasked full-lane vst.
    n_pad = _round_up(out_feats, 128)

    w1b = w1.astype(jnp.bfloat16)
    if k_pad != in_feats:
        w1b = jnp.zeros((k_pad, HIDDEN), jnp.bfloat16).at[:in_feats].set(w1b)
    w2b = w2.astype(jnp.bfloat16)
    if n_pad != out_feats:
        w2b = jnp.zeros((HIDDEN, n_pad), jnp.bfloat16).at[:, :out_feats].set(w2b)
    b1f = b1.astype(jnp.float32).reshape(1, HIDDEN)
    b2f = b2.astype(jnp.float32).reshape(1, out_feats)
    if n_pad != out_feats:
        b2f = jnp.zeros((1, n_pad), jnp.float32).at[:, :out_feats].set(b2f)

    return dict(w1=w1b, b1=b1f, w2=w2b, b2=b2f,
                in_feats=in_feats, out_feats=out_feats,
                k_pad=k_pad, tk=tk, n_k=n_k, n_pad=n_pad)


# ---------------------------------------------------------------------------
# Forward wrapper
# ---------------------------------------------------------------------------
def stack_mlp(x, params, *, out_dtype=None, tb_max=None):
    """x:(B, in_feats); params from prepare_params()."""
    B, in_feats = x.shape
    assert in_feats == params["in_feats"]
    out_feats = params["out_feats"]
    out_dtype = x.dtype if out_dtype is None else out_dtype

    k_pad, tk, n_k, n_pad = (params["k_pad"], params["tk"],
                             params["n_k"], params["n_pad"])

    # Generation-aware VMEM budget / batch tile.
    vmem_cap = _vmem_capacity_bytes()
    if tb_max is None:
        tb_max = 512 if vmem_cap >= 96 * 1024 * 1024 else 256
    vmem_limit = int(vmem_cap * 0.85)

    # Balanced batch tiles (avoid a mostly-padded trailing tile); give the
    # second TensorCore (v7x) work when that costs no extra weight traffic.
    b_pad0 = _round_up(B, 8)
    n_bt = _cdiv(b_pad0, tb_max)
    if n_bt == 1 and n_k == 1 and b_pad0 >= 16:
        n_bt = 2
    tb = _round_up(_cdiv(b_pad0, n_bt), 8)
    b_pad = tb * n_bt

    # Per-call input conversion only (weights already prepared).
    xb = x.astype(jnp.bfloat16)
    if (b_pad, k_pad) != (B, in_feats):
        xb = jnp.zeros((b_pad, k_pad), jnp.bfloat16).at[:B, :in_feats].set(xb)

    out_isz = jnp.dtype(out_dtype).itemsize
    cost = pl.CostEstimate(
        flops=2 * b_pad * (k_pad * HIDDEN + HIDDEN * n_pad),
        transcendentals=0,
        bytes_accessed=(xb.size * 2 + params["w1"].size * 2
                        + params["w2"].size * 2 + params["b1"].size * 4
                        + params["b2"].size * 4 + b_pad * n_pad * out_isz),
    )

    def build(single_buffer_weights):
        def invariant(shape):
            # Grid-invariant blocks: fetched once, kept VMEM-resident.
            if single_buffer_weights:
                return pl.BlockSpec(shape, lambda i, k: (0, 0),
                                    pipeline_mode=pl.Buffered(1))
            return pl.BlockSpec(shape, lambda i, k: (0, 0))

        w1_spec = (invariant((tk, HIDDEN)) if n_k == 1
                   else pl.BlockSpec((tk, HIDDEN), lambda i, k: (k, 0)))

        return pl.pallas_call(
            stack_mlp_kernel,
            out_shape=jax.ShapeDtypeStruct((b_pad, n_pad), out_dtype),
            grid=(n_bt, n_k),
            in_specs=[
                pl.BlockSpec((tb, tk), lambda i, k: (i, k)),   # x: streamed
                w1_spec,                                       # w1: resident or K-streamed
                invariant((1, HIDDEN)),                        # b1
                invariant((HIDDEN, n_pad)),                    # w2: resident
                invariant((1, n_pad)),                         # b2
            ],
            out_specs=pl.BlockSpec((tb, n_pad), lambda i, k: (i, 0)),
            scratch_shapes=[pltpu.VMEM((tb, HIDDEN), jnp.float32)],
            compiler_params=pltpu.CompilerParams(
                dimension_semantics=("parallel", "arbitrary"),
                vmem_limit_bytes=vmem_limit,
            ),
            cost_estimate=cost,
        )

    args = (xb, params["w1"], params["b1"], params["w2"], params["b2"])
    try:
        out = build(True)(*args)
    except Exception:
        # pl.Buffered(1) unsupported on this JAX build -> default double-buffering.
        out = build(False)(*args)

    if (b_pad, n_pad) != (B, out_feats):
        out = out[:B, :out_feats]
    return out


# ---------------------------------------------------------------------------
# Init + reference
# ---------------------------------------------------------------------------
def init_params(key, in_feats, out_feats, dtype=jnp.float32):
    """Deterministic init mimicking nn.Linear's U(-1/sqrt(fan_in), 1/sqrt(fan_in))."""
    k1, k2, k3, k4 = jax.random.split(key, 4)
    lim1 = 1.0 / jnp.sqrt(jnp.array(in_feats, dtype))
    lim2 = 1.0 / jnp.sqrt(jnp.array(HIDDEN, dtype))
    # stored transposed: (in, out) so kernel does x @ W
    w1 = jax.random.uniform(k1, (in_feats, HIDDEN), dtype, -lim1, lim1)
    b1 = jax.random.uniform(k2, (1, HIDDEN), dtype, -lim1, lim1)
    w2 = jax.random.uniform(k3, (HIDDEN, out_feats), dtype, -lim2, lim2)
    b2 = jax.random.uniform(k4, (1, out_feats), dtype, -lim2, lim2)
    return w1, b1, w2, b2


def _ref(x, w1, b1, w2, b2):
    """Pure-JAX reference mirroring the kernel's bf16-operand / f32-accum math."""
    z = jnp.dot(x.astype(jnp.bfloat16), w1.astype(jnp.bfloat16),
                preferred_element_type=jnp.float32) + b1
    y = jnp.dot(z.astype(jnp.bfloat16), w2.astype(jnp.bfloat16),
                preferred_element_type=jnp.float32) + b2
    return jnp.maximum(y, 0.0)


if __name__ == "__main__":
    key = jax.random.PRNGKey(0)

    # --- case 1: tiny, un-tiled (single K step, single batch tile) ---------
    B, in_feats, out_feats = 8, 32, 16
    kx, kp = jax.random.split(key)
    x = jax.random.normal(kx, (B, in_feats), jnp.float32)
    w1, b1, w2, b2 = init_params(kp, in_feats, out_feats)
    params = prepare_params(w1, b1, w2, b2)          # one-time weight prep
    out = jax.block_until_ready(stack_mlp(x, params))
    ref = _ref(x, w1, b1, w2, b2)
    assert out.shape == (B, out_feats)
    assert jnp.allclose(out, ref, atol=1e-3, rtol=1e-3), "case 1 mismatch"

    # --- case 2: exercises K-tiled accumulation + batch/out padding --------
    B2, in2, out2 = 20, 256, 40
    kx2, kp2 = jax.random.split(kp)
    x2 = jax.random.normal(kx2, (B2, in2), jnp.float32)
    w1b_, b1b_, w2b_, b2b_ = init_params(kp2, in2, out2)
    params2 = prepare_params(w1b_, b1b_, w2b_, b2b_, tk_max=128)  # force 2 K steps
    out2_ = jax.block_until_ready(stack_mlp(x2, params2))
    ref2 = _ref(x2, w1b_, b1b_, w2b_, b2b_)
    assert out2_.shape == (B2, out2)
    assert jnp.allclose(out2_, ref2, atol=1e-3, rtol=1e-3), "case 2 mismatch"

    print("KERNEL_OK")
</pallas_src>

<mosaic_0001>
module attributes {stable_mosaic.version = 11 : i64} {
  func.func @stack_mlp_kernel(%arg0: i32, %arg1: i32, %arg2: memref<8x32xbf16, #tpu.memory_space<vmem>>, %arg3: memref<32x2048xbf16, #tpu.memory_space<vmem>>, %arg4: memref<1x2048xf32, #tpu.memory_space<vmem>>, %arg5: memref<2048x128xbf16, #tpu.memory_space<vmem>>, %arg6: memref<1x128xf32, #tpu.memory_space<vmem>>, %arg7: memref<8x128xf32, #tpu.memory_space<vmem>>, %arg8: memref<8x2048xf32, #tpu.memory_space<vmem>>) attributes {dimension_semantics = [#tpu.dimension_semantics<parallel>, #tpu.dimension_semantics<arbitrary>], iteration_bounds = array<i64: 1, 1>, scalar_prefetch = 0 : i64, scratch_operands = 1 : i64, tpu.core_type = #tpu.core_type<tc>, window_params = [{transform_indices = @transform_0, window_bounds = array<i64: 8, 32>}, {pipeline_mode = #tpu.pipeline_mode<synchronous>, transform_indices = @transform_1, window_bounds = array<i64: 32, 2048>}, {pipeline_mode = #tpu.pipeline_mode<synchronous>, transform_indices = @transform_2, window_bounds = array<i64: 1, 2048>}, {pipeline_mode = #tpu.pipeline_mode<synchronous>, transform_indices = @transform_3, window_bounds = array<i64: 2048, 128>}, {pipeline_mode = #tpu.pipeline_mode<synchronous>, transform_indices = @transform_4, window_bounds = array<i64: 1, 128>}, {transform_indices = @transform_5, window_bounds = array<i64: 8, 128>}]} {
    %c0_i32 = arith.constant 0 : i32
    %0 = arith.cmpi eq, %arg1, %c0_i32 : i32
    %1 = arith.extui %0 : i1 to i32
    %c0_i32_0 = arith.constant 0 : i32
    %2 = arith.cmpi ne, %1, %c0_i32_0 : i32
    scf.if %2 {
      %cst_10 = arith.constant 0.000000e+00 : f32
      %12 = vector.broadcast %cst_10 : f32 to vector<8x2048xf32>
      %c0_11 = arith.constant 0 : index
      %c0_12 = arith.constant 0 : index
      %13 = vector.load %arg8[%c0_11, %c0_12] : memref<8x2048xf32, #tpu.memory_space<vmem>>, vector<8x2048xf32>
      tpu.vector_store %arg8[%c0_11, %c0_12], %12 {strides = array<i32>} : memref<8x2048xf32, #tpu.memory_space<vmem>>, vector<8x2048xf32>,
    } else {
    }
    %c0 = arith.constant 0 : index
    %c0_1 = arith.constant 0 : index
    %3 = vector.load %arg8[%c0, %c0_1] : memref<8x2048xf32, #tpu.memory_space<vmem>>, vector<8x2048xf32>
    %c0_2 = arith.constant 0 : index
    %c0_3 = arith.constant 0 : index
    %4 = vector.load %arg2[%c0_2, %c0_3] : memref<8x32xbf16, #tpu.memory_space<vmem>>, vector<8x32xbf16>
    %c0_4 = arith.constant 0 : index
    %c0_5 = arith.constant 0 : index
    %5 = vector.load %arg3[%c0_4, %c0_5] : memref<32x2048xbf16, #tpu.memory_space<vmem>>, vector<32x2048xbf16>
    %cst = arith.constant dense<0.000000e+00> : vector<8x2048xf32>
    %6 = tpu.matmul %4, %5, %cst {dimension_numbers = #tpu.dot_dimension_numbers<[1], [0], [0], [1], [0, 0, 1, 1], [], []>} : vector<8x32xbf16>, vector<32x2048xbf16>, vector<8x2048xf32> -> vector<8x2048xf32>
    %7 = arith.addf %3, %6 : vector<8x2048xf32>
    %c0_6 = arith.constant 0 : index
    %c0_7 = arith.constant 0 : index
    %8 = vector.load %arg8[%c0_6, %c0_7] : memref<8x2048xf32, #tpu.memory_space<vmem>>, vector<8x2048xf32>
    tpu.vector_store %arg8[%c0_6, %c0_7], %7 {strides = array<i32>} : memref<8x2048xf32, #tpu.memory_space<vmem>>, vector<8x2048xf32>,
    %c0_i32_8 = arith.constant 0 : i32
    %9 = arith.cmpi eq, %arg1, %c0_i32_8 : i32
    %10 = arith.extui %9 : i1 to i32
    %c0_i32_9 = arith.constant 0 : i32
    %11 = arith.cmpi ne, %10, %c0_i32_9 : i32
    scf.if %11 {
      %c0_10 = arith.constant 0 : index
      %c0_11 = arith.constant 0 : index
      %12 = vector.load %arg8[%c0_10, %c0_11] : memref<8x2048xf32, #tpu.memory_space<vmem>>, vector<8x2048xf32>
      %c0_12 = arith.constant 0 : index
      %c0_13 = arith.constant 0 : index
      %13 = vector.load %arg4[%c0_12, %c0_13] : memref<1x2048xf32, #tpu.memory_space<vmem>>, vector<1x2048xf32>
      %14 = vector.broadcast %13 : vector<1x2048xf32> to vector<8x2048xf32>
      %15 = arith.addf %12, %14 : vector<8x2048xf32>
      %16 = arith.truncf %15 : vector<8x2048xf32> to vector<8x2048xbf16>
      %c0_14 = arith.constant 0 : index
      %c0_15 = arith.constant 0 : index
      %17 = vector.load %arg5[%c0_14, %c0_15] : memref<2048x128xbf16, #tpu.memory_space<vmem>>, vector<2048x128xbf16>
      %cst_16 = arith.constant dense<0.000000e+00> : vector<8x128xf32>
      %18 = tpu.matmul %16, %17, %cst_16 {dimension_numbers = #tpu.dot_dimension_numbers<[1], [0], [0], [1], [0, 0, 1, 1], [], []>} : vector<8x2048xbf16>, vector<2048x128xbf16>, vector<8x128xf32> -> vector<8x128xf32>
      %c0_17 = arith.constant 0 : index
      %c0_18 = arith.constant 0 : index
      %19 = vector.load %arg6[%c0_17, %c0_18] : memref<1x128xf32, #tpu.memory_space<vmem>>, vector<1x128xf32>
      %20 = vector.broadcast %19 : vector<1x128xf32> to vector<8x128xf32>
      %21 = arith.addf %18, %20 : vector<8x128xf32>
      %cst_19 = arith.constant 0.000000e+00 : f32
      %22 = vector.broadcast %cst_19 : f32 to vector<8x128xf32>
      %23 = arith.maximumf %21, %22 : vector<8x128xf32>
      %c0_20 = arith.constant 0 : index
      %c0_21 = arith.constant 0 : index
      %24 = vector.load %arg7[%c0_20, %c0_21] : memref<8x128xf32, #tpu.memory_space<vmem>>, vector<8x128xf32>
      tpu.vector_store %arg7[%c0_20, %c0_21], %23 {strides = array<i32>} : memref<8x128xf32, #tpu.memory_space<vmem>>, vector<8x128xf32>,
    } else {
    }
    return
  }
  func.func @transform_0(%arg0: i32, %arg1: i32) -> (i32, i32) {
    %c0_i32 = arith.constant 0 : i32
    return %arg0, %arg1 : i32, i32
  }
  func.func @transform_1(%arg0: i32, %arg1: i32) -> (i32, i32) {
    %c0_i32 = arith.constant 0 : i32
    %c0_i32_0 = arith.constant 0 : i32
    %c0_i32_1 = arith.constant 0 : i32
    return %c0_i32, %c0_i32_0 : i32, i32
  }
  func.func @transform_2(%arg0: i32, %arg1: i32) -> (i32, i32) {
    %c0_i32 = arith.constant 0 : i32
    %c0_i32_0 = arith.constant 0 : i32
    %c0_i32_1 = arith.constant 0 : i32
    return %c0_i32, %c0_i32_0 : i32, i32
  }
  func.func @transform_3(%arg0: i32, %arg1: i32) -> (i32, i32) {
    %c0_i32 = arith.constant 0 : i32
    %c0_i32_0 = arith.constant 0 : i32
    %c0_i32_1 = arith.constant 0 : i32
    return %c0_i32, %c0_i32_0 : i32, i32
  }
  func.func @transform_4(%arg0: i32, %arg1: i32) -> (i32, i32) {
    %c0_i32 = arith.constant 0 : i32
    %c0_i32_0 = arith.constant 0 : i32
    %c0_i32_1 = arith.constant 0 : i32
    return %c0_i32, %c0_i32_0 : i32, i32
  }
  func.func @transform_5(%arg0: i32, %arg1: i32) -> (i32, i32) {
    %c0_i32 = arith.constant 0 : i32
    %c0_i32_0 = arith.constant 0 : i32
    return %arg0, %c0_i32 : i32, i32
  }
}

module attributes {stable_mosaic.version = 11 : i64} {
  func.func @stack_mlp_kernel(%arg0: i32, %arg1: i32, %arg2: memref<8x32xbf16, #tpu.memory_space<vmem>>, %arg3: memref<32x2048xbf16, #tpu.memory_space<vmem>>, %arg4: memref<1x2048xf32, #tpu.memory_space<vmem>>, %arg5: memref<2048x128xbf16, #tpu.memory_space<vmem>>, %arg6: memref<1x128xf32, #tpu.memory_space<vmem>>, %arg7: memref<8x128xf32, #tpu.memory_space<vmem>>, %arg8: memref<8x2048xf32, #tpu.memory_space<vmem>>) attributes {dimension_semantics = [#tpu.dimension_semantics<parallel>, #tpu.dimension_semantics<arbitrary>], iteration_bounds = array<i64: 1, 1>, scalar_prefetch = 0 : i64, scratch_operands = 1 : i64, tpu.core_type = #tpu.core_type<tc>, window_params = [{transform_indices = @transform_0, window_bounds = array<i64: 8, 32>}, {pipeline_mode = #tpu.pipeline_mode<synchronous>, transform_indices = @transform_1, window_bounds = array<i64: 32, 2048>}, {pipeline_mode = #tpu.pipeline_mode<synchronous>, transform_indices = @transform_2, window_bounds = array<i64: 1, 2048>}, {pipeline_mode = #tpu.pipeline_mode<synchronous>, transform_indices = @transform_3, window_bounds = array<i64: 2048, 128>}, {pipeline_mode = #tpu.pipeline_mode<synchronous>, transform_indices = @transform_4, window_bounds = array<i64: 1, 128>}, {transform_indices = @transform_5, window_bounds = array<i64: 8, 128>}]} {
    %c0_i32 = arith.constant 0 : i32
    %0 = arith.cmpi eq, %arg1, %c0_i32 : i32
    %1 = arith.extui %0 : i1 to i32
    %c0_i32_0 = arith.constant 0 : i32
    %2 = arith.cmpi ne, %1, %c0_i32_0 : i32
    scf.if %2 {
      %cst_10 = arith.constant 0.000000e+00 : f32
      %12 = vector.broadcast %cst_10 : f32 to vector<8x2048xf32>
      %c0_11 = arith.constant 0 : index
      %c0_12 = arith.constant 0 : index
      %13 = vector.load %arg8[%c0_11, %c0_12] : memref<8x2048xf32, #tpu.memory_space<vmem>>, vector<8x2048xf32>
      tpu.vector_store %arg8[%c0_11, %c0_12], %12 {strides = array<i32>} : memref<8x2048xf32, #tpu.memory_space<vmem>>, vector<8x2048xf32>,
    } else {
    }
    %c0 = arith.constant 0 : index
    %c0_1 = arith.constant 0 : index
    %3 = vector.load %arg8[%c0, %c0_1] : memref<8x2048xf32, #tpu.memory_space<vmem>>, vector<8x2048xf32>
    %c0_2 = arith.constant 0 : index
    %c0_3 = arith.constant 0 : index
    %4 = vector.load %arg2[%c0_2, %c0_3] : memref<8x32xbf16, #tpu.memory_space<vmem>>, vector<8x32xbf16>
    %c0_4 = arith.constant 0 : index
    %c0_5 = arith.constant 0 : index
    %5 = vector.load %arg3[%c0_4, %c0_5] : memref<32x2048xbf16, #tpu.memory_space<vmem>>, vector<32x2048xbf16>
    %cst = arith.constant dense<0.000000e+00> : vector<8x2048xf32>
    %6 = tpu.matmul %4, %5, %cst {dimension_numbers = #tpu.dot_dimension_numbers<[1], [0], [0], [1], [0, 0, 1, 1], [], []>} : vector<8x32xbf16>, vector<32x2048xbf16>, vector<8x2048xf32> -> vector<8x2048xf32>
    %7 = arith.addf %3, %6 : vector<8x2048xf32>
    %c0_6 = arith.constant 0 : index
    %c0_7 = arith.constant 0 : index
    %8 = vector.load %arg8[%c0_6, %c0_7] : memref<8x2048xf32, #tpu.memory_space<vmem>>, vector<8x2048xf32>
    tpu.vector_store %arg8[%c0_6, %c0_7], %7 {strides = array<i32>} : memref<8x2048xf32, #tpu.memory_space<vmem>>, vector<8x2048xf32>,
    %c0_i32_8 = arith.constant 0 : i32
    %9 = arith.cmpi eq, %arg1, %c0_i32_8 : i32
    %10 = arith.extui %9 : i1 to i32
    %c0_i32_9 = arith.constant 0 : i32
    %11 = arith.cmpi ne, %10, %c0_i32_9 : i32
    scf.if %11 {
      %c0_10 = arith.constant 0 : index
      %c0_11 = arith.constant 0 : index
      %12 = vector.load %arg8[%c0_10, %c0_11] : memref<8x2048xf32, #tpu.memory_space<vmem>>, vector<8x2048xf32>
      %c0_12 = arith.constant 0 : index
      %c0_13 = arith.constant 0 : index
      %13 = vector.load %arg4[%c0_12, %c0_13] : memref<1x2048xf32, #tpu.memory_space<vmem>>, vector<1x2048xf32>
      %14 = vector.broadcast %13 : vector<1x2048xf32> to vector<8x2048xf32>
      %15 = arith.addf %12, %14 : vector<8x2048xf32>
      %16 = arith.truncf %15 : vector<8x2048xf32> to vector<8x2048xbf16>
      %c0_14 = arith.constant 0 : index
      %c0_15 = arith.constant 0 : index
      %17 = vector.load %arg5[%c0_14, %c0_15] : memref<2048x128xbf16, #tpu.memory_space<vmem>>, vector<2048x128xbf16>
      %cst_16 = arith.constant dense<0.000000e+00> : vector<8x128xf32>
      %18 = tpu.matmul %16, %17, %cst_16 {dimension_numbers = #tpu.dot_dimension_numbers<[1], [0], [0], [1], [0, 0, 1, 1], [], []>} : vector<8x2048xbf16>, vector<2048x128xbf16>, vector<8x128xf32> -> vector<8x128xf32>
      %c0_17 = arith.constant 0 : index
      %c0_18 = arith.constant 0 : index
      %19 = vector.load %arg6[%c0_17, %c0_18] : memref<1x128xf32, #tpu.memory_space<vmem>>, vector<1x128xf32>
      %20 = vector.broadcast %19 : vector<1x128xf32> to vector<8x128xf32>
      %21 = arith.addf %18, %20 : vector<8x128xf32>
      %cst_19 = arith.constant 0.000000e+00 : f32
      %22 = vector.broadcast %cst_19 : f32 to vector<8x128xf32>
      %23 = arith.maximumf %21, %22 : vector<8x128xf32>
      %c0_20 = arith.constant 0 : index
      %c0_21 = arith.constant 0 : index
      %24 = vector.load %arg7[%c0_20, %c0_21] : memref<8x128xf32, #tpu.memory_space<vmem>>, vector<8x128xf32>
      tpu.vector_store %arg7[%c0_20, %c0_21], %23 {strides = array<i32>} : memref<8x128xf32, #tpu.memory_space<vmem>>, vector<8x128xf32>,
    } else {
    }
    return
  }
  func.func @transform_0(%arg0: i32, %arg1: i32) -> (i32, i32) {
    %c0_i32 = arith.constant 0 : i32
    return %arg0, %arg1 : i32, i32
  }
  func.func @transform_1(%arg0: i32, %arg1: i32) -> (i32, i32) {
    %c0_i32 = arith.constant 0 : i32
    %c0_i32_0 = arith.constant 0 : i32
    %c0_i32_1 = arith.constant 0 : i32
    return %c0_i32, %c0_i32_0 : i32, i32
  }
  func.func @transform_2(%arg0: i32, %arg1: i32) -> (i32, i32) {
    %c0_i32 = arith.constant 0 : i32
    %c0_i32_0 = arith.constant 0 : i32
    %c0_i32_1 = arith.constant 0 : i32
    return %c0_i32, %c0_i32_0 : i32, i32
  }
  func.func @transform_3(%arg0: i32, %arg1: i32) -> (i32, i32) {
    %c0_i32 = arith.constant 0 : i32
    %c0_i32_0 = arith.constant 0 : i32
    %c0_i32_1 = arith.constant 0 : i32
    return %c0_i32, %c0_i32_0 : i32, i32
  }
  func.func @transform_4(%arg0: i32, %arg1: i32) -> (i32, i32) {
    %c0_i32 = arith.constant 0 : i32
    %c0_i32_0 = arith.constant 0 : i32
    %c0_i32_1 = arith.constant 0 : i32
    return %c0_i32, %c0_i32_0 : i32, i32
  }
  func.func @transform_5(%arg0: i32, %arg1: i32) -> (i32, i32) {
    %c0_i32 = arith.constant 0 : i32
    %c0_i32_0 = arith.constant 0 : i32
    return %arg0, %c0_i32 : i32, i32
  }
}

</mosaic_0001>

<llo_original>
// kernel: tpu_custom_call.1
$region0: #{tpu_custom_call.1}
  #allocation0 [shape = 'u32[]', space=smem, size = 0x4, offset = 0x4, fixed_abs, tag = 'smem constant byte address 0x4 - core index']
  #allocation1 [shape = 'u32[144,128]{1,0:T(1,128)}', space=vmem, size = 0x12000, scoped, tag = 'internal scratch']
  #allocation2 [shape = 'f32[8,2048]{1,0:T(8,128)}', space=vmem, size = 0x10000, scoped, tag = 'scratch operand']
  %s0 = inlined_call_operand.hbm [shape: bf16[8,32], index: 0, kind: input, shape index: {}]
  %s1 = inlined_call_operand.hbm [shape: bf16[32,2048], index: 1, kind: input, shape index: {}]
  %s2 = inlined_call_operand.hbm [shape: f32[1,2048], index: 2, kind: input, shape index: {}]
  %s3 = inlined_call_operand.hbm [shape: bf16[2048,128], index: 3, kind: input, shape index: {}]
  %s4 = inlined_call_operand.vmem [shape: f32[1,128], index: 4, kind: input, shape index: {}]
  %s5 = inlined_call_operand.hbm [shape: f32[8,128], index: 5, kind: output, shape index: {}]
  %s6 = sld [smem:[#allocation0]]
  $region54: #{tpu_custom_call.1} parent=0
    _
  %s8 = ssub.s32 1, %s6
  %s9 = scalar_select 0, %s8, %s6
  $region1: #{tpu_custom_call.1} parent=0
    #allocation3 [shape = 'u8[2048]{0}', space=vmem, size = 0x800, scoped, tag = 'input window, operand 0, single buffered']
    #allocation4 [shape = 's32[1]{0}', space=sflag, size = 0x4, scoped, tag = 'scoped memory for tpu_custom_call.1']
    #allocation5 [shape = 's32[1]{0}', space=sflag, size = 0x4, scoped, tag = 'scoped memory for tpu_custom_call.1']
    #allocation6 [shape = 'u8[131072]{0}', space=vmem, size = 0x20000, scoped, tag = 'input window, operand 1, single buffered']
    #allocation7 [shape = 's32[1]{0}', space=sflag, size = 0x4, scoped, tag = 'scoped memory for tpu_custom_call.1']
    #allocation8 [shape = 'u8[8192]{0}', space=vmem, size = 0x2000, scoped, tag = 'input window, operand 2, single buffered']
    #allocation9 [shape = 'u8[524288]{0}', space=vmem, size = 0x80000, scoped, tag = 'input window, operand 3, single buffered']
    #allocation10 [shape = 's32[1]{0}', space=sflag, size = 0x4, scoped, tag = 'scoped memory for tpu_custom_call.1']
    #allocation11 [shape = 'u8[4096]{0}', space=vmem, size = 0x1000, scoped, tag = 'output window, operand 0, single buffered']
    %10 = vsyncpa [#allocation4], 0
    %11 = vsyncpa [#allocation7], 0
    %12 = vsyncpa [#allocation10], 0
    %13 = vsyncpa [#allocation5], 0
    // Predicated region
    $region2: #{tpu_custom_call.1} parent=1 // pred_check
      _
    $region3: #{tpu_custom_call.1} parent=1 // pred_check_branch
      %15 = sbr.rel (0) target = $region5
    $region4: #{tpu_custom_call.1} parent=1 // pred_region
      %s17 = ssub.s32 64, 64
      %18 = vsyncadd [#allocation4], %s17
      %s20 = sshll.u32 [#allocation3], 4
      %s21 = int_to_ptr.vmem [resolvable:$true] %s20
      %23 = dma.hbm_to_vmem [thread:$0]  %s0, 64, %s21, [#allocation4]
    $region5: #{tpu_custom_call.1} parent=1 // pred_fallthru
      _
    // Predicated region
    $region6: #{tpu_custom_call.1} parent=1 // pred_check
      _
    $region7: #{tpu_custom_call.1} parent=1 // pred_check_branch
      %25 = sbr.rel (0) target = $region9
    $region8: #{tpu_custom_call.1} parent=1 // pred_region
      %s27 = ssub.s32 4096, 4096
      %28 = vsyncadd [#allocation7], %s27
      %s29 = sshll.u32 [#allocation6], 4
      %s30 = int_to_ptr.vmem [resolvable:$true] %s29
      %35 = dma.hbm_to_vmem [thread:$0]  %s1, 4096, %s30, [#allocation7], 1024, 1024, 64
    $region9: #{tpu_custom_call.1} parent=1 // pred_fallthru
      _
    // Predicated region
    $region10: #{tpu_custom_call.1} parent=1 // pred_check
      _
    $region11: #{tpu_custom_call.1} parent=1 // pred_check_branch
      %37 = sbr.rel (0) target = $region13
    $region12: #{tpu_custom_call.1} parent=1 // pred_region
      %s39 = ssub.s32 256, 256
      %40 = vsyncadd [#allocation7], %s39
      %s42 = sshll.u32 [#allocation8], 4
      %s43 = int_to_ptr.vmem [resolvable:$true] %s42
      %45 = dma.hbm_to_vmem [thread:$0]  %s2, 256, %s43, [#allocation7]
    $region13: #{tpu_custom_call.1} parent=1 // pred_fallthru
      _
    // Predicated region
    $region14: #{tpu_custom_call.1} parent=1 // pred_check
      _
    $region15: #{tpu_custom_call.1} parent=1 // pred_check_branch
      %47 = sbr.rel (0) target = $region17
    $region16: #{tpu_custom_call.1} parent=1 // pred_region
      %s49 = ssub.s32 16384, 16384
      %50 = vsyncadd [#allocation10], %s49
      %s51 = sshll.u32 [#allocation9], 4
      %s52 = int_to_ptr.vmem [resolvable:$true] %s51
      %57 = dma.hbm_to_vmem [thread:$0]  %s3, 16384, %s52, [#allocation10], 64, 64, 4
    $region17: #{tpu_custom_call.1} parent=1 // pred_fallthru
      _
    // Predicated region
    $region18: #{tpu_custom_call.1} parent=1 // pred_check
      _
    $region19: #{tpu_custom_call.1} parent=1 // pred_check_branch
      %59 = sbr.rel (0) target = $region21
    $region20: #{tpu_custom_call.1} parent=1 // pred_region
      _
    $region21: #{tpu_custom_call.1} parent=1 // pred_fallthru
      _
    // Predicated region
    $region22: #{tpu_custom_call.1} parent=1 // pred_check
      _
    $region23: #{tpu_custom_call.1} parent=1 // pred_check_branch
      %61 = sbr.rel (0) target = $region25
    $region24: #{tpu_custom_call.1} parent=1 // pred_region
      %62 = dma.done [#allocation4], 64
    $region25: #{tpu_custom_call.1} parent=1 // pred_fallthru
      _
    // Predicated region
    $region26: #{tpu_custom_call.1} parent=1 // pred_check
      _
    $region27: #{tpu_custom_call.1} parent=1 // pred_check_branch
      %64 = sbr.rel (0) target = $region29
    $region28: #{tpu_custom_call.1} parent=1 // pred_region
      %65 = dma.done [#allocation7], 4096
    $region29: #{tpu_custom_call.1} parent=1 // pred_fallthru
      _
    // Predicated region
    $region30: #{tpu_custom_call.1} parent=1 // pred_check
      _
    $region31: #{tpu_custom_call.1} parent=1 // pred_check_branch
      %67 = sbr.rel (0) target = $region33
    $region32: #{tpu_custom_call.1} parent=1 // pred_region
      %68 = dma.done [#allocation7], 256
    $region33: #{tpu_custom_call.1} parent=1 // pred_fallthru
      _
    // Predicated region
    $region34: #{tpu_custom_call.1} parent=1 // pred_check
      _
    $region35: #{tpu_custom_call.1} parent=1 // pred_check_branch
      %70 = sbr.rel (0) target = $region37
    $region36: #{tpu_custom_call.1} parent=1 // pred_region
      %71 = dma.done [#allocation10], 16384
    $region37: #{tpu_custom_call.1} parent=1 // pred_fallthru
      _
    %p73 = scmp.eq.s32.totalorder 0, 0
    // Predicated region
    $region38: #{tpu_custom_call.1} parent=1 // pred_check
      %p74 = pneg %p73
    $region39: #{tpu_custom_call.1} parent=1 // pred_check_branch
      %76 = sbr.rel (%p74) target = $region41
    $region40: #{tpu_custom_call.1} parent=1 // pred_region
      %77 = vst [vmem:[#allocation2] sm:$0xff] 0.0
      %78 = vst [vmem:[#allocation2 + $0x8] sm:$0xff] 0.0
      %79 = vst [vmem:[#allocation2 + $0x10] sm:$0xff] 0.0
      %80 = vst [vmem:[#allocation2 + $0x18] sm:$0xff] 0.0
      %81 = vst [vmem:[#allocation2 + $0x20] sm:$0xff] 0.0
      %82 = vst [vmem:[#allocation2 + $0x28] sm:$0xff] 0.0
      %83 = vst [vmem:[#allocation2 + $0x30] sm:$0xff] 0.0
      %84 = vst [vmem:[#allocation2 + $0x38] sm:$0xff] 0.0
      %85 = vst [vmem:[#allocation2 + $0x40] sm:$0xff] 0.0
      %86 = vst [vmem:[#allocation2 + $0x48] sm:$0xff] 0.0
      %87 = vst [vmem:[#allocation2 + $0x50] sm:$0xff] 0.0
      %88 = vst [vmem:[#allocation2 + $0x58] sm:$0xff] 0.0
      %89 = vst [vmem:[#allocation2 + $0x60] sm:$0xff] 0.0
      %90 = vst [vmem:[#allocation2 + $0x68] sm:$0xff] 0.0
      %91 = vst [vmem:[#allocation2 + $0x70] sm:$0xff] 0.0
      %92 = vst [vmem:[#allocation2 + $0x78] sm:$0xff] 0.0
    $region41: #{tpu_custom_call.1} parent=1 // pred_fallthru
      _
    %v93 = vld [vmem:[#allocation2] sm:$0xff]
    %v94 = vld [vmem:[#allocation2 + $0x8] sm:$0xff]
    %v95 = vld [vmem:[#allocation2 + $0x10] sm:$0xff]
    %v96 = vld [vmem:[#allocation2 + $0x18] sm:$0xff]
    %v97 = vld [vmem:[#allocation2 + $0x20] sm:$0xff]
    %v98 = vld [vmem:[#allocation2 + $0x28] sm:$0xff]
    %v99 = vld [vmem:[#allocation2 + $0x30] sm:$0xff]
    %v100 = vld [vmem:[#allocation2 + $0x38] sm:$0xff]
    %v101 = vld [vmem:[#allocation2 + $0x40] sm:$0xff]
    %v102 = vld [vmem:[#allocation2 + $0x48] sm:$0xff]
    %v103 = vld [vmem:[#allocation2 + $0x50] sm:$0xff]
    %v104 = vld [vmem:[#allocation2 + $0x58] sm:$0xff]
    %v105 = vld [vmem:[#allocation2 + $0x60] sm:$0xff]
    %v106 = vld [vmem:[#allocation2 + $0x68] sm:$0xff]
    %v107 = vld [vmem:[#allocation2 + $0x70] sm:$0xff]
    %v108 = vld [vmem:[#allocation2 + $0x78] sm:$0xff]
    %v109 = vld [vmem:[#allocation3] sm:$0xf]
    %v110 = vld [vmem:[#allocation6] sm:$0xff]
    %v111 = vld [vmem:[#allocation6 + $0x8] sm:$0xff]
    %v112 = vld [vmem:[#allocation6 + $0x10] sm:$0xff]
    %v113 = vld [vmem:[#allocation6 + $0x18] sm:$0xff]
    %v114 = vld [vmem:[#allocation6 + $0x20] sm:$0xff]
    %v115 = vld [vmem:[#allocation6 + $0x28] sm:$0xff]
    %v116 = vld [vmem:[#allocation6 + $0x30] sm:$0xff]
    %v117 = vld [vmem:[#allocation6 + $0x38] sm:$0xff]
    %v118 = vld [vmem:[#allocation6 + $0x40] sm:$0xff]
    %v119 = vld [vmem:[#allocation6 + $0x48] sm:$0xff]
    %v120 = vld [vmem:[#allocation6 + $0x50] sm:$0xff]
    %v121 = vld [vmem:[#allocation6 + $0x58] sm:$0xff]
    %v122 = vld [vmem:[#allocation6 + $0x60] sm:$0xff]
    %v123 = vld [vmem:[#allocation6 + $0x68] sm:$0xff]
    %v124 = vld [vmem:[#allocation6 + $0x70] sm:$0xff]
    %v125 = vld [vmem:[#allocation6 + $0x78] sm:$0xff]
    %v126 = vld [vmem:[#allocation6 + $0x80] sm:$0xff]
    %v127 = vld [vmem:[#allocation6 + $0x88] sm:$0xff]
    %v128 = vld [vmem:[#allocation6 + $0x90] sm:$0xff]
    %v129 = vld [vmem:[#allocation6 + $0x98] sm:$0xff]
    %v130 = vld [vmem:[#allocation6 + $0xa0] sm:$0xff]
    %v131 = vld [vmem:[#allocation6 + $0xa8] sm:$0xff]
    %v132 = vld [vmem:[#allocation6 + $0xb0] sm:$0xff]
    %v133 = vld [vmem:[#allocation6 + $0xb8] sm:$0xff]
    %v134 = vld [vmem:[#allocation6 + $0xc0] sm:$0xff]
    %v135 = vld [vmem:[#allocation6 + $0xc8] sm:$0xff]
    %v136 = vld [vmem:[#allocation6 + $0xd0] sm:$0xff]
    %v137 = vld [vmem:[#allocation6 + $0xd8] sm:$0xff]
    %v138 = vld [vmem:[#allocation6 + $0xe0] sm:$0xff]
    %v139 = vld [vmem:[#allocation6 + $0xe8] sm:$0xff]
    %v140 = vld [vmem:[#allocation6 + $0xf0] sm:$0xff]
    %v141 = vld [vmem:[#allocation6 + $0xf8] sm:$0xff]
    %v174 = vunpack.c.l.b16 %v110
    %v175 = vunpack.c.h.b16 %v110
    %v176 = vunpack.c.l.b16 %v111
    %v177 = vunpack.c.h.b16 %v111
    %v178 = vunpack.c.l.b16 %v112
    %v179 = vunpack.c.h.b16 %v112
    %v180 = vunpack.c.l.b16 %v113
    %v181 = vunpack.c.h.b16 %v113
    %v182 = vunpack.c.l.b16 %v114
    %v183 = vunpack.c.h.b16 %v114
    %v184 = vunpack.c.l.b16 %v115
    %v185 = vunpack.c.h.b16 %v115
    %v186 = vunpack.c.l.b16 %v116
    %v187 = vunpack.c.h.b16 %v116
    %v188 = vunpack.c.l.b16 %v117
    %v189 = vunpack.c.h.b16 %v117
    %v190 = vunpack.c.l.b16 %v118
    %v191 = vunpack.c.h.b16 %v118
    %v192 = vunpack.c.l.b16 %v119
    %v193 = vunpack.c.h.b16 %v119
    %v194 = vunpack.c.l.b16 %v120
    %v195 = vunpack.c.h.b16 %v120
    %v196 = vunpack.c.l.b16 %v121
    %v197 = vunpack.c.h.b16 %v121
    %v198 = vunpack.c.l.b16 %v122
    %v199 = vunpack.c.h.b16 %v122
    %v200 = vunpack.c.l.b16 %v123
    %v201 = vunpack.c.h.b16 %v123
    %v202 = vunpack.c.l.b16 %v124
    %v203 = vunpack.c.h.b16 %v124
    %v204 = vunpack.c.l.b16 %v125
    %v205 = vunpack.c.h.b16 %v125
    %v206 = vunpack.c.l.b16 %v126
    %v207 = vunpack.c.h.b16 %v126
    %v208 = vunpack.c.l.b16 %v127
    %v209 = vunpack.c.h.b16 %v127
    %v210 = vunpack.c.l.b16 %v128
    %v211 = vunpack.c.h.b16 %v128
    %v212 = vunpack.c.l.b16 %v129
    %v213 = vunpack.c.h.b16 %v129
    %v214 = vunpack.c.l.b16 %v130
    %v215 = vunpack.c.h.b16 %v130
    %v216 = vunpack.c.l.b16 %v131
    %v217 = vunpack.c.h.b16 %v131
    %v218 = vunpack.c.l.b16 %v132
    %v219 = vunpack.c.h.b16 %v132
    %v220 = vunpack.c.l.b16 %v133
    %v221 = vunpack.c.h.b16 %v133
    %v222 = vunpack.c.l.b16 %v134
    %v223 = vunpack.c.h.b16 %v134
    %v224 = vunpack.c.l.b16 %v135
    %v225 = vunpack.c.h.b16 %v135
    %v226 = vunpack.c.l.b16 %v136
    %v227 = vunpack.c.h.b16 %v136
    %v228 = vunpack.c.l.b16 %v137
    %v229 = vunpack.c.h.b16 %v137
    %v230 = vunpack.c.l.b16 %v138
    %v231 = vunpack.c.h.b16 %v138
    %v232 = vunpack.c.l.b16 %v139
    %v233 = vunpack.c.h.b16 %v139
    %v234 = vunpack.c.l.b16 %v140
    %v235 = vunpack.c.h.b16 %v140
    %v236 = vunpack.c.l.b16 %v141
    %v237 = vunpack.c.h.b16 %v141
    %v238 = vpack.c.b16 %v190, %v174
    %v239 = vpack.c.b16 %v191, %v175
    %v240 = vpack.c.b16 %v192, %v176
    %v241 = vpack.c.b16 %v193, %v177
    %v242 = vpack.c.b16 %v194, %v178
    %v243 = vpack.c.b16 %v195, %v179
    %v244 = vpack.c.b16 %v196, %v180
    %v245 = vpack.c.b16 %v197, %v181
    %v246 = vpack.c.b16 %v198, %v182
    %v247 = vpack.c.b16 %v199, %v183
    %v248 = vpack.c.b16 %v200, %v184
    %v249 = vpack.c.b16 %v201, %v185
    %v250 = vpack.c.b16 %v202, %v186
    %v251 = vpack.c.b16 %v203, %v187
    %v252 = vpack.c.b16 %v204, %v188
    %v253 = vpack.c.b16 %v205, %v189
    %v254 = vpack.c.b16 %v222, %v206
    %v255 = vpack.c.b16 %v223, %v207
    %v256 = vpack.c.b16 %v224, %v208
    %v257 = vpack.c.b16 %v225, %v209
    %v258 = vpack.c.b16 %v226, %v210
    %v259 = vpack.c.b16 %v227, %v211
    %v260 = vpack.c.b16 %v228, %v212
    %v261 = vpack.c.b16 %v229, %v213
    %v262 = vpack.c.b16 %v230, %v214
    %v263 = vpack.c.b16 %v231, %v215
    %v264 = vpack.c.b16 %v232, %v216
    %v265 = vpack.c.b16 %v233, %v217
    %v266 = vpack.c.b16 %v234, %v218
    %v267 = vpack.c.b16 %v235, %v219
    %v268 = vpack.c.b16 %v236, %v220
    %v269 = vpack.c.b16 %v237, %v221
    %vm302 = vcmask 261120
    %v304 = vsel %vm302, %v109, 0
    %306 = vmatprep.subr.bf16.mxu0 0
    %307 = vmatpush1.bf16.msra.mxu0 0
    %308 = vmatprep.subr.bf16.mxu0 0
    %309 = vmatpush1.bf16.msra.mxu0 0
    %310 = vmatprep.subr.bf16.mxu0 0
    %311 = vmatpush1.bf16.msra.mxu0 0
    %312 = vmatprep.subr.bf16.mxu0 0
    %313 = vmatpush1.bf16.msra.mxu0 0
    %314 = vmatprep.subr.bf16.mxu0 0
    %315 = vmatpush1.bf16.msra.mxu0 0
    %316 = vmatprep.subr.bf16.mxu0 0
    %317 = vmatpush1.bf16.msra.mxu0 0
    %318 = vmatprep.subr.bf16.mxu0 %v255
    %319 = vmatpush1.bf16.msra.mxu0 %v254
    %320 = vmatprep.subr.bf16.mxu0 %v239
    %321 = vmatpush1.bf16.msra.mxu0 %v238
    %322 = vmatprep.subr.bf16.mxu0 0
    %323 = vmatpush2.bf16.msra.mxu0 0
    %324 = vmatprep.subr.bf16.mxu0 0
    %325 = vmatpush2.bf16.msra.mxu0 0
    %326 = vmatprep.subr.bf16.mxu0 0
    %327 = vmatpush2.bf16.msra.mxu0 0
    %328 = vmatprep.subr.bf16.mxu0 0
    %329 = vmatpush2.bf16.msra.mxu0 0
    %330 = vmatprep.subr.bf16.mxu0 0
    %331 = vmatpush2.bf16.msra.mxu0 0
    %332 = vmatprep.subr.bf16.mxu0 0
    %333 = vmatpush2.bf16.msra.mxu0 0
    %334 = vmatprep.subr.bf16.mxu0 0
    %335 = vmatpush2.bf16.msra.mxu0 0
    %336 = vmatprep.subr.bf16.mxu0 0
    %337 = vmatpush2.bf16.msra.mxu0 0
    %338 = vmatprep.mubr.bf16.mxu0 0
    %339 = vmatmul.mubr.bf16.gmra.mxu0 %v304
    %v340 = vpop.f32.mrf.mxu0
    %v341 = vadd.f32 0.0, %v340
    %v342 = vpop.f32.mrf.mxu0
    %v343 = vadd.f32 0.0, %v342
    %v344 = vpop.f32.mrf.mxu0
    %v345 = vpop.f32.mrf.mxu0
    %346 = vdwg.mxu0
    %347 = vmatprep.subr.bf16.mxu0 0
    %348 = vmatpush1.bf16.msra.mxu0 0
    %349 = vmatprep.subr.bf16.mxu0 0
    %350 = vmatpush1.bf16.msra.mxu0 0
    %351 = vmatprep.subr.bf16.mxu0 0
    %352 = vmatpush1.bf16.msra.mxu0 0
    %353 = vmatprep.subr.bf16.mxu0 0
    %354 = vmatpush1.bf16.msra.mxu0 0
    %355 = vmatprep.subr.bf16.mxu0 0
    %356 = vmatpush1.bf16.msra.mxu0 0
    %357 = vmatprep.subr.bf16.mxu0 0
    %358 = vmatpush1.bf16.msra.mxu0 0
    %359 = vmatprep.subr.bf16.mxu0 %v257
    %360 = vmatpush1.bf16.msra.mxu0 %v256
    %361 = vmatprep.subr.bf16.mxu0 %v241
    %362 = vmatpush1.bf16.msra.mxu0 %v240
    %363 = vmatprep.subr.bf16.mxu0 0
    %364 = vmatpush2.bf16.msra.mxu0 0
    %365 = vmatprep.subr.bf16.mxu0 0
    %366 = vmatpush2.bf16.msra.mxu0 0
    %367 = vmatprep.subr.bf16.mxu0 0
    %368 = vmatpush2.bf16.msra.mxu0 0
    %369 = vmatprep.subr.bf16.mxu0 0
    %370 = vmatpush2.bf16.msra.mxu0 0
    %371 = vmatprep.subr.bf16.mxu0 0
    %372 = vmatpush2.bf16.msra.mxu0 0
    %373 = vmatprep.subr.bf16.mxu0 0
    %374 = vmatpush2.bf16.msra.mxu0 0
    %375 = vmatprep.subr.bf16.mxu0 0
    %376 = vmatpush2.bf16.msra.mxu0 0
    %377 = vmatprep.subr.bf16.mxu0 0
    %378 = vmatpush2.bf16.msra.mxu0 0
    %379 = vmatprep.mubr.bf16.mxu0 0
    %380 = vmatmul.mubr.bf16.gmra.mxu0 %v304
    %v381 = vpop.f32.mrf.mxu0
    %v382 = vadd.f32 0.0, %v381
    %v383 = vpop.f32.mrf.mxu0
    %v384 = vadd.f32 0.0, %v383
    %v385 = vpop.f32.mrf.mxu0
    %v386 = vpop.f32.mrf.mxu0
    %387 = vdwg.mxu0
    %388 = vmatprep.subr.bf16.mxu0 0
    %389 = vmatpush1.bf16.msra.mxu0 0
    %390 = vmatprep.subr.bf16.mxu0 0
    %391 = vmatpush1.bf16.msra.mxu0 0
    %392 = vmatprep.subr.bf16.mxu0 0
    %393 = vmatpush1.bf16.msra.mxu0 0
    %394 = vmatprep.subr.bf16.mxu0 0
    %395 = vmatpush1.bf16.msra.mxu0 0
    %396 = vmatprep.subr.bf16.mxu0 0
    %397 = vmatpush1.bf16.msra.mxu0 0
    %398 = vmatprep.subr.bf16.mxu0 0
    %399 = vmatpush1.bf16.msra.mxu0 0
    %400 = vmatprep.subr.bf16.mxu0 %v259
    %401 = vmatpush1.bf16.msra.mxu0 %v258
    %402 = vmatprep.subr.bf16.mxu0 %v243
    %403 = vmatpush1.bf16.msra.mxu0 %v242
    %404 = vmatprep.subr.bf16.mxu0 0
    %405 = vmatpush2.bf16.msra.mxu0 0
    %406 = vmatprep.subr.bf16.mxu0 0
    %407 = vmatpush2.bf16.msra.mxu0 0
    %408 = vmatprep.subr.bf16.mxu0 0
    %409 = vmatpush2.bf16.msra.mxu0 0
    %410 = vmatprep.subr.bf16.mxu0 0
    %411 = vmatpush2.bf16.msra.mxu0 0
    %412 = vmatprep.subr.bf16.mxu0 0
    %413 = vmatpush2.bf16.msra.mxu0 0
    %414 = vmatprep.subr.bf16.mxu0 0
    %415 = vmatpush2.bf16.msra.mxu0 0
    %416 = vmatprep.subr.bf16.mxu0 0
    %417 = vmatpush2.bf16.msra.mxu0 0
    %418 = vmatprep.subr.bf16.mxu0 0
    %419 = vmatpush2.bf16.msra.mxu0 0
    %420 = vmatprep.mubr.bf16.mxu0 0
    %421 = vmatmul.mubr.bf16.gmra.mxu0 %v304
    %v422 = vpop.f32.mrf.mxu0
    %v423 = vadd.f32 0.0, %v422
    %v424 = vpop.f32.mrf.mxu0
    %v425 = vadd.f32 0.0, %v424
    %v426 = vpop.f32.mrf.mxu0
    %v427 = vpop.f32.mrf.mxu0
    %428 = vdwg.mxu0
    %429 = vmatprep.subr.bf16.mxu0 0
    %430 = vmatpush1.bf16.msra.mxu0 0
    %431 = vmatprep.subr.bf16.mxu0 0
    %432 = vmatpush1.bf16.msra.mxu0 0
    %433 = vmatprep.subr.bf16.mxu0 0
    %434 = vmatpush1.bf16.msra.mxu0 0
    %435 = vmatprep.subr.bf16.mxu0 0
    %436 = vmatpush1.bf16.msra.mxu0 0
    %437 = vmatprep.subr.bf16.mxu0 0
    %438 = vmatpush1.bf16.msra.mxu0 0
    %439 = vmatprep.subr.bf16.mxu0 0
    %440 = vmatpush1.bf16.msra.mxu0 0
    %441 = vmatprep.subr.bf16.mxu0 %v261
    %442 = vmatpush1.bf16.msra.mxu0 %v260
    %443 = vmatprep.subr.bf16.mxu0 %v245
    %444 = vmatpush1.bf16.msra.mxu0 %v244
    %445 = vmatprep.subr.bf16.mxu0 0
    %446 = vmatpush2.bf16.msra.mxu0 0
    %447 = vmatprep.subr.bf16.mxu0 0
    %448 = vmatpush2.bf16.msra.mxu0 0
    %449 = vmatprep.subr.bf16.mxu0 0
    %450 = vmatpush2.bf16.msra.mxu0 0
    %451 = vmatprep.subr.bf16.mxu0 0
    %452 = vmatpush2.bf16.msra.mxu0 0
    %453 = vmatprep.subr.bf16.mxu0 0
    %454 = vmatpush2.bf16.msra.mxu0 0
    %455 = vmatprep.subr.bf16.mxu0 0
    %456 = vmatpush2.bf16.msra.mxu0 0
    %457 = vmatprep.subr.bf16.mxu0 0
    %458 = vmatpush2.bf16.msra.mxu0 0
    %459 = vmatprep.subr.bf16.mxu0 0
    %460 = vmatpush2.bf16.msra.mxu0 0
    %461 = vmatprep.mubr.bf16.mxu0 0
    %462 = vmatmul.mubr.bf16.gmra.mxu0 %v304
    %v463 = vpop.f32.mrf.mxu0
    %v464 = vadd.f32 0.0, %v463
    %v465 = vpop.f32.mrf.mxu0
    %v466 = vadd.f32 0.0, %v465
    %v467 = vpop.f32.mrf.mxu0
    %v468 = vpop.f32.mrf.mxu0
    %469 = vdwg.mxu0
    %470 = vmatprep.subr.bf16.mxu0 0
    %471 = vmatpush1.bf16.msra.mxu0 0
    %472 = vmatprep.subr.bf16.mxu0 0
    %473 = vmatpush1.bf16.msra.mxu0 0
    %474 = vmatprep.subr.bf16.mxu0 0
    %475 = vmatpush1.bf16.msra.mxu0 0
    %476 = vmatprep.subr.bf16.mxu0 0
    %477 = vmatpush1.bf16.msra.mxu0 0
    %478 = vmatprep.subr.bf16.mxu0 0
    %479 = vmatpush1.bf16.msra.mxu0 0
    %480 = vmatprep.subr.bf16.mxu0 0
    %481 = vmatpush1.bf16.msra.mxu0 0
    %482 = vmatprep.subr.bf16.mxu0 %v263
    %483 = vmatpush1.bf16.msra.mxu0 %v262
    %484 = vmatprep.subr.bf16.mxu0 %v247
    %485 = vmatpush1.bf16.msra.mxu0 %v246
    %486 = vmatprep.subr.bf16.mxu0 0
    %487 = vmatpush2.bf16.msra.mxu0 0
    %488 = vmatprep.subr.bf16.mxu0 0
    %489 = vmatpush2.bf16.msra.mxu0 0
    %490 = vmatprep.subr.bf16.mxu0 0
    %491 = vmatpush2.bf16.msra.mxu0 0
    %492 = vmatprep.subr.bf16.mxu0 0
    %493 = vmatpush2.bf16.msra.mxu0 0
    %494 = vmatprep.subr.bf16.mxu0 0
    %495 = vmatpush2.bf16.msra.mxu0 0
    %496 = vmatprep.subr.bf16.mxu0 0
    %497 = vmatpush2.bf16.msra.mxu0 0
    %498 = vmatprep.subr.bf16.mxu0 0
    %499 = vmatpush2.bf16.msra.mxu0 0
    %500 = vmatprep.subr.bf16.mxu0 0
    %501 = vmatpush2.bf16.msra.mxu0 0
    %502 = vmatprep.mubr.bf16.mxu0 0
    %503 = vmatmul.mubr.bf16.gmra.mxu0 %v304
    %v504 = vpop.f32.mrf.mxu0
    %v505 = vadd.f32 0.0, %v504
    %v506 = vpop.f32.mrf.mxu0
    %v507 = vadd.f32 0.0, %v506
    %v508 = vpop.f32.mrf.mxu0
    %v509 = vpop.f32.mrf.mxu0
    %510 = vdwg.mxu0
    %511 = vmatprep.subr.bf16.mxu0 0
    %512 = vmatpush1.bf16.msra.mxu0 0
    %513 = vmatprep.subr.bf16.mxu0 0
    %514 = vmatpush1.bf16.msra.mxu0 0
    %515 = vmatprep.subr.bf16.mxu0 0
    %516 = vmatpush1.bf16.msra.mxu0 0
    %517 = vmatprep.subr.bf16.mxu0 0
    %518 = vmatpush1.bf16.msra.mxu0 0
    %519 = vmatprep.subr.bf16.mxu0 0
    %520 = vmatpush1.bf16.msra.mxu0 0
    %521 = vmatprep.subr.bf16.mxu0 0
    %522 = vmatpush1.bf16.msra.mxu0 0
    %523 = vmatprep.subr.bf16.mxu0 %v265
    %524 = vmatpush1.bf16.msra.mxu0 %v264
    %525 = vmatprep.subr.bf16.mxu0 %v249
    %526 = vmatpush1.bf16.msra.mxu0 %v248
    %527 = vmatprep.subr.bf16.mxu0 0
    %528 = vmatpush2.bf16.msra.mxu0 0
    %529 = vmatprep.subr.bf16.mxu0 0
    %530 = vmatpush2.bf16.msra.mxu0 0
    %531 = vmatprep.subr.bf16.mxu0 0
    %532 = vmatpush2.bf16.msra.mxu0 0
    %533 = vmatprep.subr.bf16.mxu0 0
    %534 = vmatpush2.bf16.msra.mxu0 0
    %535 = vmatprep.subr.bf16.mxu0 0
    %536 = vmatpush2.bf16.msra.mxu0 0
    %537 = vmatprep.subr.bf16.mxu0 0
    %538 = vmatpush2.bf16.msra.mxu0 0
    %539 = vmatprep.subr.bf16.mxu0 0
    %540 = vmatpush2.bf16.msra.mxu0 0
    %541 = vmatprep.subr.bf16.mxu0 0
    %542 = vmatpush2.bf16.msra.mxu0 0
    %543 = vmatprep.mubr.bf16.mxu0 0
    %544 = vmatmul.mubr.bf16.gmra.mxu0 %v304
    %v545 = vpop.f32.mrf.mxu0
    %v546 = vadd.f32 0.0, %v545
    %v547 = vpop.f32.mrf.mxu0
    %v548 = vadd.f32 0.0, %v547
    %v549 = vpop.f32.mrf.mxu0
    %v550 = vpop.f32.mrf.mxu0
    %551 = vdwg.mxu0
    %552 = vmatprep.subr.bf16.mxu0 0
    %553 = vmatpush1.bf16.msra.mxu0 0
    %554 = vmatprep.subr.bf16.mxu0 0
    %555 = vmatpush1.bf16.msra.mxu0 0
    %556 = vmatprep.subr.bf16.mxu0 0
    %557 = vmatpush1.bf16.msra.mxu0 0
    %558 = vmatprep.subr.bf16.mxu0 0
    %559 = vmatpush1.bf16.msra.mxu0 0
    %560 = vmatprep.subr.bf16.mxu0 0
    %561 = vmatpush1.bf16.msra.mxu0 0
    %562 = vmatprep.subr.bf16.mxu0 0
    %563 = vmatpush1.bf16.msra.mxu0 0
    %564 = vmatprep.subr.bf16.mxu0 %v267
    %565 = vmatpush1.bf16.msra.mxu0 %v266
    %566 = vmatprep.subr.bf16.mxu0 %v251
    %567 = vmatpush1.bf16.msra.mxu0 %v250
    %568 = vmatprep.subr.bf16.mxu0 0
    %569 = vmatpush2.bf16.msra.mxu0 0
    %570 = vmatprep.subr.bf16.mxu0 0
    %571 = vmatpush2.bf16.msra.mxu0 0
    %572 = vmatprep.subr.bf16.mxu0 0
    %573 = vmatpush2.bf16.msra.mxu0 0
    %574 = vmatprep.subr.bf16.mxu0 0
    %575 = vmatpush2.bf16.msra.mxu0 0
    %576 = vmatprep.subr.bf16.mxu0 0
    %577 = vmatpush2.bf16.msra.mxu0 0
    %578 = vmatprep.subr.bf16.mxu0 0
    %579 = vmatpush2.bf16.msra.mxu0 0
    %580 = vmatprep.subr.bf16.mxu0 0
    %581 = vmatpush2.bf16.msra.mxu0 0
    %582 = vmatprep.subr.bf16.mxu0 0
    %583 = vmatpush2.bf16.msra.mxu0 0
    %584 = vmatprep.mubr.bf16.mxu0 0
    %585 = vmatmul.mubr.bf16.gmra.mxu0 %v304
    %v586 = vpop.f32.mrf.mxu0
    %v587 = vadd.f32 0.0, %v586
    %v588 = vpop.f32.mrf.mxu0
    %v589 = vadd.f32 0.0, %v588
    %v590 = vpop.f32.mrf.mxu0
    %v591 = vpop.f32.mrf.mxu0
    %592 = vdwg.mxu0
    %593 = vmatprep.subr.bf16.mxu0 0
    %594 = vmatpush1.bf16.msra.mxu0 0
    %595 = vmatprep.subr.bf16.mxu0 0
    %596 = vmatpush1.bf16.msra.mxu0 0
    %597 = vmatprep.subr.bf16.mxu0 0
    %598 = vmatpush1.bf16.msra.mxu0 0
    %599 = vmatprep.subr.bf16.mxu0 0
    %600 = vmatpush1.bf16.msra.mxu0 0
    %601 = vmatprep.subr.bf16.mxu0 0
    %602 = vmatpush1.bf16.msra.mxu0 0
    %603 = vmatprep.subr.bf16.mxu0 0
    %604 = vmatpush1.bf16.msra.mxu0 0
    %605 = vmatprep.subr.bf16.mxu0 %v269
    %606 = vmatpush1.bf16.msra.mxu0 %v268
    %607 = vmatprep.subr.bf16.mxu0 %v253
    %608 = vmatpush1.bf16.msra.mxu0 %v252
    %609 = vmatprep.subr.bf16.mxu0 0
    %610 = vmatpush2.bf16.msra.mxu0 0
    %611 = vmatprep.subr.bf16.mxu0 0
    %612 = vmatpush2.bf16.msra.mxu0 0
    %613 = vmatprep.subr.bf16.mxu0 0
    %614 = vmatpush2.bf16.msra.mxu0 0
    %615 = vmatprep.subr.bf16.mxu0 0
    %616 = vmatpush2.bf16.msra.mxu0 0
    %617 = vmatprep.subr.bf16.mxu0 0
    %618 = vmatpush2.bf16.msra.mxu0 0
    %619 = vmatprep.subr.bf16.mxu0 0
    %620 = vmatpush2.bf16.msra.mxu0 0
    %621 = vmatprep.subr.bf16.mxu0 0
    %622 = vmatpush2.bf16.msra.mxu0 0
    %623 = vmatprep.subr.bf16.mxu0 0
    %624 = vmatpush2.bf16.msra.mxu0 0
    %625 = vmatprep.mubr.bf16.mxu0 0
    %626 = vmatmul.mubr.bf16.gmra.mxu0 %v304
    %v627 = vpop.f32.mrf.mxu0
    %v628 = vadd.f32 0.0, %v627
    %v629 = vpop.f32.mrf.mxu0
    %v630 = vadd.f32 0.0, %v629
    %v631 = vpop.f32.mrf.mxu0
    %v632 = vpop.f32.mrf.mxu0
    %633 = vdwg.mxu0
    %v634 = vadd.f32 %v93, %v341
    %v635 = vadd.f32 %v94, %v343
    %v636 = vadd.f32 %v95, %v382
    %v637 = vadd.f32 %v96, %v384
    %v638 = vadd.f32 %v97, %v423
    %v639 = vadd.f32 %v98, %v425
    %v640 = vadd.f32 %v99, %v464
    %v641 = vadd.f32 %v100, %v466
    %v642 = vadd.f32 %v101, %v505
    %v643 = vadd.f32 %v102, %v507
    %v644 = vadd.f32 %v103, %v546
    %v645 = vadd.f32 %v104, %v548
    %v646 = vadd.f32 %v105, %v587
    %v647 = vadd.f32 %v106, %v589
    %v648 = vadd.f32 %v107, %v628
    %v649 = vadd.f32 %v108, %v630
    %650 = vst [vmem:[#allocation2] sm:$0xff] %v634
    %651 = vst [vmem:[#allocation2 + $0x8] sm:$0xff] %v635
    %652 = vst [vmem:[#allocation2 + $0x10] sm:$0xff] %v636
    %653 = vst [vmem:[#allocation2 + $0x18] sm:$0xff] %v637
    %654 = vst [vmem:[#allocation2 + $0x20] sm:$0xff] %v638
    %655 = vst [vmem:[#allocation2 + $0x28] sm:$0xff] %v639
    %656 = vst [vmem:[#allocation2 + $0x30] sm:$0xff] %v640
    %657 = vst [vmem:[#allocation2 + $0x38] sm:$0xff] %v641
    %658 = vst [vmem:[#allocation2 + $0x40] sm:$0xff] %v642
    %659 = vst [vmem:[#allocation2 + $0x48] sm:$0xff] %v643
    %660 = vst [vmem:[#allocation2 + $0x50] sm:$0xff] %v644
    %661 = vst [vmem:[#allocation2 + $0x58] sm:$0xff] %v645
    %662 = vst [vmem:[#allocation2 + $0x60] sm:$0xff] %v646
    %663 = vst [vmem:[#allocation2 + $0x68] sm:$0xff] %v647
    %664 = vst [vmem:[#allocation2 + $0x70] sm:$0xff] %v648
    %665 = vst [vmem:[#allocation2 + $0x78] sm:$0xff] %v649
    // Predicated region
    $region42: #{tpu_custom_call.1} parent=1 // pred_check
      %p666 = pneg %p73
    $region43: #{tpu_custom_call.1} parent=1 // pred_check_branch
      %668 = sbr.rel (%p666) target = $region45
    $region44: #{tpu_custom_call.1} parent=1 // pred_region
      %v669 = vld [vmem:[#allocation2] sm:$0xff]
      %v670 = vld [vmem:[#allocation2 + $0x8] sm:$0xff]
      %v671 = vld [vmem:[#allocation2 + $0x10] sm:$0xff]
      %v672 = vld [vmem:[#allocation2 + $0x18] sm:$0xff]
      %v673 = vld [vmem:[#allocation2 + $0x20] sm:$0xff]
      %v674 = vld [vmem:[#allocation2 + $0x28] sm:$0xff]
      %v675 = vld [vmem:[#allocation2 + $0x30] sm:$0xff]
      %v676 = vld [vmem:[#allocation2 + $0x38] sm:$0xff]
      %v677 = vld [vmem:[#allocation2 + $0x40] sm:$0xff]
      %v678 = vld [vmem:[#allocation2 + $0x48] sm:$0xff]
      %v679 = vld [vmem:[#allocation2 + $0x50] sm:$0xff]
      %v680 = vld [vmem:[#allocation2 + $0x58] sm:$0xff]
      %v681 = vld [vmem:[#allocation2 + $0x60] sm:$0xff]
      %v682 = vld [vmem:[#allocation2 + $0x68] sm:$0xff]
      %v683 = vld [vmem:[#allocation2 + $0x70] sm:$0xff]
      %v684 = vld [vmem:[#allocation2 + $0x78] sm:$0xff]
      %v685 = vld [vmem:[#allocation8] sm:$0xff]
      %v686 = vld [vmem:[#allocation8 + $0x8] sm:$0xff]
      %v689 = vlaneseq
      %v690 = vshrl.u32 %v689, 7
      %v691 = vsub.s32 0, %v690
      %v692 = vrot.slane %v685, %v691
      %v693 = vlaneseq
      %v694 = vshrl.u32 %v693, 7
      %v695 = vsub.s32 1, %v694
      %v696 = vrot.slane %v685, %v695
      %v697 = vlaneseq
      %v698 = vshrl.u32 %v697, 7
      %v699 = vsub.s32 2, %v698
      %v700 = vrot.slane %v685, %v699
      %v701 = vlaneseq
      %v702 = vshrl.u32 %v701, 7
      %v703 = vsub.s32 3, %v702
      %v704 = vrot.slane %v685, %v703
      %v705 = vlaneseq
      %v706 = vshrl.u32 %v705, 7
      %v707 = vsub.s32 4, %v706
      %v708 = vrot.slane %v685, %v707
      %v709 = vlaneseq
      %v710 = vshrl.u32 %v709, 7
      %v711 = vsub.s32 5, %v710
      %v712 = vrot.slane %v685, %v711
      %v713 = vlaneseq
      %v714 = vshrl.u32 %v713, 7
      %v715 = vsub.s32 6, %v714
      %v716 = vrot.slane %v685, %v715
      %v717 = vlaneseq
      %v718 = vshrl.u32 %v717, 7
      %v719 = vsub.s32 7, %v718
      %v720 = vrot.slane %v685, %v719
      %v721 = vlaneseq
      %v722 = vshrl.u32 %v721, 7
      %v723 = vsub.s32 0, %v722
      %v724 = vrot.slane %v686, %v723
      %v725 = vlaneseq
      %v726 = vshrl.u32 %v725, 7
      %v727 = vsub.s32 1, %v726
      %v728 = vrot.slane %v686, %v727
      %v729 = vlaneseq
      %v730 = vshrl.u32 %v729, 7
      %v731 = vsub.s32 2, %v730
      %v732 = vrot.slane %v686, %v731
      %v733 = vlaneseq
      %v734 = vshrl.u32 %v733, 7
      %v735 = vsub.s32 3, %v734
      %v736 = vrot.slane %v686, %v735
      %v737 = vlaneseq
      %v738 = vshrl.u32 %v737, 7
      %v739 = vsub.s32 4, %v738
      %v740 = vrot.slane %v686, %v739
      %v741 = vlaneseq
      %v742 = vshrl.u32 %v741, 7
      %v743 = vsub.s32 5, %v742
      %v744 = vrot.slane %v686, %v743
      %v745 = vlaneseq
      %v746 = vshrl.u32 %v745, 7
      %v747 = vsub.s32 6, %v746
      %v748 = vrot.slane %v686, %v747
      %v749 = vlaneseq
      %v750 = vshrl.u32 %v749, 7
      %v751 = vsub.s32 7, %v750
      %v752 = vrot.slane %v686, %v751
      %v769 = vadd.f32 %v669, %v692
      %v770 = vadd.f32 %v670, %v696
      %v771 = vadd.f32 %v671, %v700
      %v772 = vadd.f32 %v672, %v704
      %v773 = vadd.f32 %v673, %v708
      %v774 = vadd.f32 %v674, %v712
      %v775 = vadd.f32 %v675, %v716
      %v776 = vadd.f32 %v676, %v720
      %v777 = vadd.f32 %v677, %v724
      %v778 = vadd.f32 %v678, %v728
      %v779 = vadd.f32 %v679, %v732
      %v780 = vadd.f32 %v680, %v736
      %v781 = vadd.f32 %v681, %v740
      %v782 = vadd.f32 %v682, %v744
      %v783 = vadd.f32 %v683, %v748
      %v784 = vadd.f32 %v684, %v752
      %v785 = vpack.c.bf16 %v769, %v769
      %v786 = vpack.c.bf16 %v770, %v770
      %v787 = vpack.c.bf16 %v771, %v771
      %v788 = vpack.c.bf16 %v772, %v772
      %v789 = vpack.c.bf16 %v773, %v773
      %v790 = vpack.c.bf16 %v774, %v774
      %v791 = vpack.c.bf16 %v775, %v775
      %v792 = vpack.c.bf16 %v776, %v776
      %v793 = vpack.c.bf16 %v777, %v777
      %v794 = vpack.c.bf16 %v778, %v778
      %v795 = vpack.c.bf16 %v779, %v779
      %v796 = vpack.c.bf16 %v780, %v780
      %v797 = vpack.c.bf16 %v781, %v781
      %v798 = vpack.c.bf16 %v782, %v782
      %v799 = vpack.c.bf16 %v783, %v783
      %v800 = vpack.c.bf16 %v784, %v784
      %v801 = vld [vmem:[#allocation9] sm:$0xf]
      %v802 = vld [vmem:[#allocation9 + $0x4] sm:$0xf]
      %v803 = vld [vmem:[#allocation9 + $0x8] sm:$0xf]
      %v804 = vld [vmem:[#allocation9 + $0xc] sm:$0xf]
      %v805 = vld [vmem:[#allocation9 + $0x10] sm:$0xf]
      %v806 = vld [vmem:[#allocation9 + $0x14] sm:$0xf]
      %v807 = vld [vmem:[#allocation9 + $0x18] sm:$0xf]
      %v808 = vld [vmem:[#allocation9 + $0x1c] sm:$0xf]
      %v809 = vld [vmem:[#allocation9 + $0x20] sm:$0xf]
      %v810 = vld [vmem:[#allocation9 + $0x24] sm:$0xf]
      %v811 = vld [vmem:[#allocation9 + $0x28] sm:$0xf]
      %v812 = vld [vmem:[#allocation9 + $0x2c] sm:$0xf]
      %v813 = vld [vmem:[#allocation9 + $0x30] sm:$0xf]
      %v814 = vld [vmem:[#allocation9 + $0x34] sm:$0xf]
      %v815 = vld [vmem:[#allocation9 + $0x38] sm:$0xf]
      %v816 = vld [vmem:[#allocation9 + $0x3c] sm:$0xf]
      %v817 = vld [vmem:[#allocation9 + $0x40] sm:$0xf]
      %v818 = vld [vmem:[#allocation9 + $0x44] sm:$0xf]
      %v819 = vld [vmem:[#allocation9 + $0x48] sm:$0xf]
      %v820 = vld [vmem:[#allocation9 + $0x4c] sm:$0xf]
      %v821 = vld [vmem:[#allocation9 + $0x50] sm:$0xf]
      %v822 = vld [vmem:[#allocation9 + $0x54] sm:$0xf]
      %v823 = vld [vmem:[#allocation9 + $0x58] sm:$0xf]
      %v824 = vld [vmem:[#allocation9 + $0x5c] sm:$0xf]
      %v825 = vld [vmem:[#allocation9 + $0x60] sm:$0xf]
      %v826 = vld [vmem:[#allocation9 + $0x64] sm:$0xf]
      %v827 = vld [vmem:[#allocation9 + $0x68] sm:$0xf]
      %v828 = vld [vmem:[#allocation9 + $0x6c] sm:$0xf]
      %v829 = vld [vmem:[#allocation9 + $0x70] sm:$0xf]
      %v830 = vld [vmem:[#allocation9 + $0x74] sm:$0xf]
      %v831 = vld [vmem:[#allocation9 + $0x78] sm:$0xf]
      %v832 = vld [vmem:[#allocation9 + $0x7c] sm:$0xf]
      %v833 = vld [vmem:[#allocation9 + $0x80] sm:$0xf]
      %v834 = vld [vmem:[#allocation9 + $0x84] sm:$0xf]
      %v835 = vld [vmem:[#allocation9 + $0x88] sm:$0xf]
      %v836 = vld [vmem:[#allocation9 + $0x8c] sm:$0xf]
      %v837 = vld [vmem:[#allocation9 + $0x90] sm:$0xf]
      %v838 = vld [vmem:[#allocation9 + $0x94] sm:$0xf]
      %v839 = vld [vmem:[#allocation9 + $0x98] sm:$0xf]
      %v840 = vld [vmem:[#allocation9 + $0x9c] sm:$0xf]
      %v841 = vld [vmem:[#allocation9 + $0xa0] sm:$0xf]
      %v842 = vld [vmem:[#allocation9 + $0xa4] sm:$0xf]
      %v843 = vld [vmem:[#allocation9 + $0xa8] sm:$0xf]
      %v844 = vld [vmem:[#allocation9 + $0xac] sm:$0xf]
      %v845 = vld [vmem:[#allocation9 + $0xb0] sm:$0xf]
      %v846 = vld [vmem:[#allocation9 + $0xb4] sm:$0xf]
      %v847 = vld [vmem:[#allocation9 + $0xb8] sm:$0xf]
      %v848 = vld [vmem:[#allocation9 + $0xbc] sm:$0xf]
      %v849 = vld [vmem:[#allocation9 + $0xc0] sm:$0xf]
      %v850 = vld [vmem:[#allocation9 + $0xc4] sm:$0xf]
      %v851 = vld [vmem:[#allocation9 + $0xc8] sm:$0xf]
      %v852 = vld [vmem:[#allocation9 + $0xcc] sm:$0xf]
      %v853 = vld [vmem:[#allocation9 + $0xd0] sm:$0xf]
      %v854 = vld [vmem:[#allocation9 + $0xd4] sm:$0xf]
      %v855 = vld [vmem:[#allocation9 + $0xd8] sm:$0xf]
      %v856 = vld [vmem:[#allocation9 + $0xdc] sm:$0xf]
      %v857 = vld [vmem:[#allocation9 + $0xe0] sm:$0xf]
      %v858 = vld [vmem:[#allocation9 + $0xe4] sm:$0xf]
      %v859 = vld [vmem:[#allocation9 + $0xe8] sm:$0xf]
      %v860 = vld [vmem:[#allocation9 + $0xec] sm:$0xf]
      %v861 = vld [vmem:[#allocation9 + $0xf0] sm:$0xf]
      %v862 = vld [vmem:[#allocation9 + $0xf4] sm:$0xf]
      %v863 = vld [vmem:[#allocation9 + $0xf8] sm:$0xf]
      %v864 = vld [vmem:[#allocation9 + $0xfc] sm:$0xf]
      %v865 = vld [vmem:[#allocation9 + $0x100] sm:$0xf]
      %v866 = vld [vmem:[#allocation9 + $0x104] sm:$0xf]
      %v867 = vld [vmem:[#allocation9 + $0x108] sm:$0xf]
      %v868 = vld [vmem:[#allocation9 + $0x10c] sm:$0xf]
      %v869 = vld [vmem:[#allocation9 + $0x110] sm:$0xf]
      %v870 = vld [vmem:[#allocation9 + $0x114] sm:$0xf]
      %v871 = vld [vmem:[#allocation9 + $0x118] sm:$0xf]
      %v872 = vld [vmem:[#allocation9 + $0x11c] sm:$0xf]
      %v873 = vld [vmem:[#allocation9 + $0x120] sm:$0xf]
      %v874 = vld [vmem:[#allocation9 + $0x124] sm:$0xf]
      %v875 = vld [vmem:[#allocation9 + $0x128] sm:$0xf]
      %v876 = vld [vmem:[#allocation9 + $0x12c] sm:$0xf]
      %v877 = vld [vmem:[#allocation9 + $0x130] sm:$0xf]
      %v878 = vld [vmem:[#allocation9 + $0x134] sm:$0xf]
      %v879 = vld [vmem:[#allocation9 + $0x138] sm:$0xf]
      %v880 = vld [vmem:[#allocation9 + $0x13c] sm:$0xf]
      %v881 = vld [vmem:[#allocation9 + $0x140] sm:$0xf]
      %v882 = vld [vmem:[#allocation9 + $0x144] sm:$0xf]
      %v883 = vld [vmem:[#allocation9 + $0x148] sm:$0xf]
      %v884 = vld [vmem:[#allocation9 + $0x14c] sm:$0xf]
      %v885 = vld [vmem:[#allocation9 + $0x150] sm:$0xf]
      %v886 = vld [vmem:[#allocation9 + $0x154] sm:$0xf]
      %v887 = vld [vmem:[#allocation9 + $0x158] sm:$0xf]
      %v888 = vld [vmem:[#allocation9 + $0x15c] sm:$0xf]
      %v889 = vld [vmem:[#allocation9 + $0x160] sm:$0xf]
      %v890 = vld [vmem:[#allocation9 + $0x164] sm:$0xf]
      %v891 = vld [vmem:[#allocation9 + $0x168] sm:$0xf]
      %v892 = vld [vmem:[#allocation9 + $0x16c] sm:$0xf]
      %v893 = vld [vmem:[#allocation9 + $0x170] sm:$0xf]
      %v894 = vld [vmem:[#allocation9 + $0x174] sm:$0xf]
      %v895 = vld [vmem:[#allocation9 + $0x178] sm:$0xf]
      %v896 = vld [vmem:[#allocation9 + $0x17c] sm:$0xf]
      %v897 = vld [vmem:[#allocation9 + $0x180] sm:$0xf]
      %v898 = vld [vmem:[#allocation9 + $0x184] sm:$0xf]
      %v899 = vld [vmem:[#allocation9 + $0x188] sm:$0xf]
      %v900 = vld [vmem:[#allocation9 + $0x18c] sm:$0xf]
      %v901 = vld [vmem:[#allocation9 + $0x190] sm:$0xf]
      %v902 = vld [vmem:[#allocation9 + $0x194] sm:$0xf]
      %v903 = vld [vmem:[#allocation9 + $0x198] sm:$0xf]
      %v904 = vld [vmem:[#allocation9 + $0x19c] sm:$0xf]
      %v905 = vld [vmem:[#allocation9 + $0x1a0] sm:$0xf]
      %v906 = vld [vmem:[#allocation9 + $0x1a4] sm:$0xf]
      %v907 = vld [vmem:[#allocation9 + $0x1a8] sm:$0xf]
      %v908 = vld [vmem:[#allocation9 + $0x1ac] sm:$0xf]
      %v909 = vld [vmem:[#allocation9 + $0x1b0] sm:$0xf]
      %v910 = vld [vmem:[#allocation9 + $0x1b4] sm:$0xf]
      %v911 = vld [vmem:[#allocation9 + $0x1b8] sm:$0xf]
      %v912 = vld [vmem:[#allocation9 + $0x1bc] sm:$0xf]
      %v913 = vld [vmem:[#allocation9 + $0x1c0] sm:$0xf]
      %v914 = vld [vmem:[#allocation9 + $0x1c4] sm:$0xf]
      %v915 = vld [vmem:[#allocation9 + $0x1c8] sm:$0xf]
      %v916 = vld [vmem:[#allocation9 + $0x1cc] sm:$0xf]
      %v917 = vld [vmem:[#allocation9 + $0x1d0] sm:$0xf]
      %v918 = vld [vmem:[#allocation9 + $0x1d4] sm:$0xf]
      %v919 = vld [vmem:[#allocation9 + $0x1d8] sm:$0xf]
      %v920 = vld [vmem:[#allocation9 + $0x1dc] sm:$0xf]
      %v921 = vld [vmem:[#allocation9 + $0x1e0] sm:$0xf]
      %v922 = vld [vmem:[#allocation9 + $0x1e4] sm:$0xf]
      %v923 = vld [vmem:[#allocation9 + $0x1e8] sm:$0xf]
      %v924 = vld [vmem:[#allocation9 + $0x1ec] sm:$0xf]
      %v925 = vld [vmem:[#allocation9 + $0x1f0] sm:$0xf]
      %v926 = vld [vmem:[#allocation9 + $0x1f4] sm:$0xf]
      %v927 = vld [vmem:[#allocation9 + $0x1f8] sm:$0xf]
      %v928 = vld [vmem:[#allocation9 + $0x1fc] sm:$0xf]
      %v929 = vld [vmem:[#allocation9 + $0x200] sm:$0xf]
      %v930 = vld [vmem:[#allocation9 + $0x204] sm:$0xf]
      %v931 = vld [vmem:[#allocation9 + $0x208] sm:$0xf]
      %v932 = vld [vmem:[#allocation9 + $0x20c] sm:$0xf]
      %v933 = vld [vmem:[#allocation9 + $0x210] sm:$0xf]
      %v934 = vld [vmem:[#allocation9 + $0x214] sm:$0xf]
      %v935 = vld [vmem:[#allocation9 + $0x218] sm:$0xf]
      %v936 = vld [vmem:[#allocation9 + $0x21c] sm:$0xf]
      %v937 = vld [vmem:[#allocation9 + $0x220] sm:$0xf]
      %v938 = vld [vmem:[#allocation9 + $0x224] sm:$0xf]
      %v939 = vld [vmem:[#allocation9 + $0x228] sm:$0xf]
      %v940 = vld [vmem:[#allocation9 + $0x22c] sm:$0xf]
      %v941 = vld [vmem:[#allocation9 + $0x230] sm:$0xf]
      %v942 = vld [vmem:[#allocation9 + $0x234] sm:$0xf]
      %v943 = vld [vmem:[#allocation9 + $0x238] sm:$0xf]
      %v944 = vld [vmem:[#allocation9 + $0x23c] sm:$0xf]
      %v945 = vld [vmem:[#allocation9 + $0x240] sm:$0xf]
      %v946 = vld [vmem:[#allocation9 + $0x244] sm:$0xf]
      %v947 = vld [vmem:[#allocation9 + $0x248] sm:$0xf]
      %v948 = vld [vmem:[#allocation9 + $0x24c] sm:$0xf]
      %v949 = vld [vmem:[#allocation9 + $0x250] sm:$0xf]
      %v950 = vld [vmem:[#allocation9 + $0x254] sm:$0xf]
      %v951 = vld [vmem:[#allocation9 + $0x258] sm:$0xf]
      %v952 = vld [vmem:[#allocation9 + $0x25c] sm:$0xf]
      %v953 = vld [vmem:[#allocation9 + $0x260] sm:$0xf]
      %v954 = vld [vmem:[#allocation9 + $0x264] sm:$0xf]
      %v955 = vld [vmem:[#allocation9 + $0x268] sm:$0xf]
      %v956 = vld [vmem:[#allocation9 + $0x26c] sm:$0xf]
      %v957 = vld [vmem:[#allocation9 + $0x270] sm:$0xf]
      %v958 = vld [vmem:[#allocation9 + $0x274] sm:$0xf]
      %v959 = vld [vmem:[#allocation9 + $0x278] sm:$0xf]
      %v960 = vld [vmem:[#allocation9 + $0x27c] sm:$0xf]
      %v961 = vld [vmem:[#allocation9 + $0x280] sm:$0xf]
      %v962 = vld [vmem:[#allocation9 + $0x284] sm:$0xf]
      %v963 = vld [vmem:[#allocation9 + $0x288] sm:$0xf]
      %v964 = vld [vmem:[#allocation9 + $0x28c] sm:$0xf]
      %v965 = vld [vmem:[#allocation9 + $0x290] sm:$0xf]
      %v966 = vld [vmem:[#allocation9 + $0x294] sm:$0xf]
      %v967 = vld [vmem:[#allocation9 + $0x298] sm:$0xf]
      %v968 = vld [vmem:[#allocation9 + $0x29c] sm:$0xf]
      %v969 = vld [vmem:[#allocation9 + $0x2a0] sm:$0xf]
      %v970 = vld [vmem:[#allocation9 + $0x2a4] sm:$0xf]
      %v971 = vld [vmem:[#allocation9 + $0x2a8] sm:$0xf]
      %v972 = vld [vmem:[#allocation9 + $0x2ac] sm:$0xf]
      %v973 = vld [vmem:[#allocation9 + $0x2b0] sm:$0xf]
      %v974 = vld [vmem:[#allocation9 + $0x2b4] sm:$0xf]
      %v975 = vld [vmem:[#allocation9 + $0x2b8] sm:$0xf]
      %v976 = vld [vmem:[#allocation9 + $0x2bc] sm:$0xf]
      %v977 = vld [vmem:[#allocation9 + $0x2c0] sm:$0xf]
      %v978 = vld [vmem:[#allocation9 + $0x2c4] sm:$0xf]
      %v979 = vld [vmem:[#allocation9 + $0x2c8] sm:$0xf]
      %v980 = vld [vmem:[#allocation9 + $0x2cc] sm:$0xf]
      %v981 = vld [vmem:[#allocation9 + $0x2d0] sm:$0xf]
      %v982 = vld [vmem:[#allocation9 + $0x2d4] sm:$0xf]
      %v983 = vld [vmem:[#allocation9 + $0x2d8] sm:$0xf]
      %v984 = vld [vmem:[#allocation9 + $0x2dc] sm:$0xf]
      %v985 = vld [vmem:[#allocation9 + $0x2e0] sm:$0xf]
      %v986 = vld [vmem:[#allocation9 + $0x2e4] sm:$0xf]
      %v987 = vld [vmem:[#allocation9 + $0x2e8] sm:$0xf]
      %v988 = vld [vmem:[#allocation9 + $0x2ec] sm:$0xf]
      %v989 = vld [vmem:[#allocation9 + $0x2f0] sm:$0xf]
      %v990 = vld [vmem:[#allocation9 + $0x2f4] sm:$0xf]
      %v991 = vld [vmem:[#allocation9 + $0x2f8] sm:$0xf]
      %v992 = vld [vmem:[#allocation9 + $0x2fc] sm:$0xf]
      %v993 = vld [vmem:[#allocation9 + $0x300] sm:$0xf]
      %v994 = vld [vmem:[#allocation9 + $0x304] sm:$0xf]
      %v995 = vld [vmem:[#allocation9 + $0x308] sm:$0xf]
      %v996 = vld [vmem:[#allocation9 + $0x30c] sm:$0xf]
      %v997 = vld [vmem:[#allocation9 + $0x310] sm:$0xf]
      %v998 = vld [vmem:[#allocation9 + $0x314] sm:$0xf]
      %v999 = vld [vmem:[#allocation9 + $0x318] sm:$0xf]
      %v1000 = vld [vmem:[#allocation9 + $0x31c] sm:$0xf]
      %v1001 = vld [vmem:[#allocation9 + $0x320] sm:$0xf]
      %v1002 = vld [vmem:[#allocation9 + $0x324] sm:$0xf]
      %v1003 = vld [vmem:[#allocation9 + $0x328] sm:$0xf]
      %v1004 = vld [vmem:[#allocation9 + $0x32c] sm:$0xf]
      %v1005 = vld [vmem:[#allocation9 + $0x330] sm:$0xf]
      %v1006 = vld [vmem:[#allocation9 + $0x334] sm:$0xf]
      %v1007 = vld [vmem:[#allocation9 + $0x338] sm:$0xf]
      %v1008 = vld [vmem:[#allocation9 + $0x33c] sm:$0xf]
      %v1009 = vld [vmem:[#allocation9 + $0x340] sm:$0xf]
      %v1010 = vld [vmem:[#allocation9 + $0x344] sm:$0xf]
      %v1011 = vld [vmem:[#allocation9 + $0x348] sm:$0xf]
      %v1012 = vld [vmem:[#allocation9 + $0x34c] sm:$0xf]
      %v1013 = vld [vmem:[#allocation9 + $0x350] sm:$0xf]
      %v1014 = vld [vmem:[#allocation9 + $0x354] sm:$0xf]
      %v1015 = vld [vmem:[#allocation9 + $0x358] sm:$0xf]
      %v1016 = vld [vmem:[#allocation9 + $0x35c] sm:$0xf]
      %v1017 = vld [vmem:[#allocation9 + $0x360] sm:$0xf]
      %v1018 = vld [vmem:[#allocation9 + $0x364] sm:$0xf]
      %v1019 = vld [vmem:[#allocation9 + $0x368] sm:$0xf]
      %v1020 = vld [vmem:[#allocation9 + $0x36c] sm:$0xf]
      %v1021 = vld [vmem:[#allocation9 + $0x370] sm:$0xf]
      %v1022 = vld [vmem:[#allocation9 + $0x374] sm:$0xf]
      %v1023 = vld [vmem:[#allocation9 + $0x378] sm:$0xf]
      %v1024 = vld [vmem:[#allocation9 + $0x37c] sm:$0xf]
      %v1025 = vld [vmem:[#allocation9 + $0x380] sm:$0xf]
      %v1026 = vld [vmem:[#allocation9 + $0x384] sm:$0xf]
      %v1027 = vld [vmem:[#allocation9 + $0x388] sm:$0xf]
      %v1028 = vld [vmem:[#allocation9 + $0x38c] sm:$0xf]
      %v1029 = vld [vmem:[#allocation9 + $0x390] sm:$0xf]
      %v1030 = vld [vmem:[#allocation9 + $0x394] sm:$0xf]
      %v1031 = vld [vmem:[#allocation9 + $0x398] sm:$0xf]
      %v1032 = vld [vmem:[#allocation9 + $0x39c] sm:$0xf]
      %v1033 = vld [vmem:[#allocation9 + $0x3a0] sm:$0xf]
      %v1034 = vld [vmem:[#allocation9 + $0x3a4] sm:$0xf]
      %v1035 = vld [vmem:[#allocation9 + $0x3a8] sm:$0xf]
      %v1036 = vld [vmem:[#allocation9 + $0x3ac] sm:$0xf]
      %v1037 = vld [vmem:[#allocation9 + $0x3b0] sm:$0xf]
      %v1038 = vld [vmem:[#allocation9 + $0x3b4] sm:$0xf]
      %v1039 = vld [vmem:[#allocation9 + $0x3b8] sm:$0xf]
      %v1040 = vld [vmem:[#allocation9 + $0x3bc] sm:$0xf]
      %v1041 = vld [vmem:[#allocation9 + $0x3c0] sm:$0xf]
      %v1042 = vld [vmem:[#allocation9 + $0x3c4] sm:$0xf]
      %v1043 = vld [vmem:[#allocation9 + $0x3c8] sm:$0xf]
      %v1044 = vld [vmem:[#allocation9 + $0x3cc] sm:$0xf]
      %v1045 = vld [vmem:[#allocation9 + $0x3d0] sm:$0xf]
      %v1046 = vld [vmem:[#allocation9 + $0x3d4] sm:$0xf]
      %v1047 = vld [vmem:[#allocation9 + $0x3d8] sm:$0xf]
      %v1048 = vld [vmem:[#allocation9 + $0x3dc] sm:$0xf]
      %v1049 = vld [vmem:[#allocation9 + $0x3e0] sm:$0xf]
      %v1050 = vld [vmem:[#allocation9 + $0x3e4] sm:$0xf]
      %v1051 = vld [vmem:[#allocation9 + $0x3e8] sm:$0xf]
      %v1052 = vld [vmem:[#allocation9 + $0x3ec] sm:$0xf]
      %v1053 = vld [vmem:[#allocation9 + $0x3f0] sm:$0xf]
      %v1054 = vld [vmem:[#allocation9 + $0x3f4] sm:$0xf]
      %v1055 = vld [vmem:[#allocation9 + $0x3f8] sm:$0xf]
      %v1056 = vld [vmem:[#allocation9 + $0x3fc] sm:$0xf]
      %v1057 = vld [vmem:[%s4] sm:$0x1]
      %v1059 = vlaneseq
      %v1060 = vshrl.u32 %v1059, 7
      %v1061 = vsub.s32 0, %v1060
      %v1062 = vrot.slane %v1057, %v1061
      %v1320 = vunpack.c.l.b16 %v801
      %v1321 = vunpack.c.l.b16 %v802
      %v1322 = vunpack.c.l.b16 %v803
      %v1323 = vunpack.c.l.b16 %v804
      %v1324 = vunpack.c.l.b16 %v805
      %v1325 = vunpack.c.l.b16 %v806
      %v1326 = vunpack.c.l.b16 %v807
      %v1327 = vunpack.c.l.b16 %v808
      %v1328 = vunpack.c.l.b16 %v809
      %v1329 = vunpack.c.l.b16 %v810
      %v1330 = vunpack.c.l.b16 %v811
      %v1331 = vunpack.c.l.b16 %v812
      %v1332 = vunpack.c.l.b16 %v813
      %v1333 = vunpack.c.l.b16 %v814
      %v1334 = vunpack.c.l.b16 %v815
      %v1335 = vunpack.c.l.b16 %v816
      %v1336 = vunpack.c.l.b16 %v817
      %v1337 = vunpack.c.l.b16 %v818
      %v1338 = vunpack.c.l.b16 %v819
      %v1339 = vunpack.c.l.b16 %v820
      %v1340 = vunpack.c.l.b16 %v821
      %v1341 = vunpack.c.l.b16 %v822
      %v1342 = vunpack.c.l.b16 %v823
      %v1343 = vunpack.c.l.b16 %v824
      %v1344 = vunpack.c.l.b16 %v825
      %v1345 = vunpack.c.l.b16 %v826
      %v1346 = vunpack.c.l.b16 %v827
      %v1347 = vunpack.c.l.b16 %v828
      %v1348 = vunpack.c.l.b16 %v829
      %v1349 = vunpack.c.l.b16 %v830
      %v1350 = vunpack.c.l.b16 %v831
      %v1351 = vunpack.c.l.b16 %v832
      %v1352 = vunpack.c.l.b16 %v833
      %v1353 = vunpack.c.l.b16 %v834
      %v1354 = vunpack.c.l.b16 %v835
      %v1355 = vunpack.c.l.b16 %v836
      %v1356 = vunpack.c.l.b16 %v837
      %v1357 = vunpack.c.l.b16 %v838
      %v1358 = vunpack.c.l.b16 %v839
      %v1359 = vunpack.c.l.b16 %v840
      %v1360 = vunpack.c.l.b16 %v841
      %v1361 = vunpack.c.l.b16 %v842
      %v1362 = vunpack.c.l.b16 %v843
      %v1363 = vunpack.c.l.b16 %v844
      %v1364 = vunpack.c.l.b16 %v845
      %v1365 = vunpack.c.l.b16 %v846
      %v1366 = vunpack.c.l.b16 %v847
      %v1367 = vunpack.c.l.b16 %v848
      %v1368 = vunpack.c.l.b16 %v849
      %v1369 = vunpack.c.l.b16 %v850
      %v1370 = vunpack.c.l.b16 %v851
      %v1371 = vunpack.c.l.b16 %v852
      %v1372 = vunpack.c.l.b16 %v853
      %v1373 = vunpack.c.l.b16 %v854
      %v1374 = vunpack.c.l.b16 %v855
      %v1375 = vunpack.c.l.b16 %v856
      %v1376 = vunpack.c.l.b16 %v857
      %v1377 = vunpack.c.l.b16 %v858
      %v1378 = vunpack.c.l.b16 %v859
      %v1379 = vunpack.c.l.b16 %v860
      %v1380 = vunpack.c.l.b16 %v861
      %v1381 = vunpack.c.l.b16 %v862
      %v1382 = vunpack.c.l.b16 %v863
      %v1383 = vunpack.c.l.b16 %v864
      %v1384 = vunpack.c.l.b16 %v865
      %v1385 = vunpack.c.l.b16 %v866
      %v1386 = vunpack.c.l.b16 %v867
      %v1387 = vunpack.c.l.b16 %v868
      %v1388 = vunpack.c.l.b16 %v869
      %v1389 = vunpack.c.l.b16 %v870
      %v1390 = vunpack.c.l.b16 %v871
      %v1391 = vunpack.c.l.b16 %v872
      %v1392 = vunpack.c.l.b16 %v873
      %v1393 = vunpack.c.l.b16 %v874
      %v1394 = vunpack.c.l.b16 %v875
      %v1395 = vunpack.c.l.b16 %v876
      %v1396 = vunpack.c.l.b16 %v877
      %v1397 = vunpack.c.l.b16 %v878
      %v1398 = vunpack.c.l.b16 %v879
      %v1399 = vunpack.c.l.b16 %v880
      %v1400 = vunpack.c.l.b16 %v881
      %v1401 = vunpack.c.l.b16 %v882
      %v1402 = vunpack.c.l.b16 %v883
      %v1403 = vunpack.c.l.b16 %v884
      %v1404 = vunpack.c.l.b16 %v885
      %v1405 = vunpack.c.l.b16 %v886
      %v1406 = vunpack.c.l.b16 %v887
      %v1407 = vunpack.c.l.b16 %v888
      %v1408 = vunpack.c.l.b16 %v889
      %v1409 = vunpack.c.l.b16 %v890
      %v1410 = vunpack.c.l.b16 %v891
      %v1411 = vunpack.c.l.b16 %v892
      %v1412 = vunpack.c.l.b16 %v893
      %v1413 = vunpack.c.l.b16 %v894
      %v1414 = vunpack.c.l.b16 %v895
      %v1415 = vunpack.c.l.b16 %v896
      %v1416 = vunpack.c.l.b16 %v897
      %v1417 = vunpack.c.l.b16 %v898
      %v1418 = vunpack.c.l.b16 %v899
      %v1419 = vunpack.c.l.b16 %v900
      %v1420 = vunpack.c.l.b16 %v901
      %v1421 = vunpack.c.l.b16 %v902
      %v1422 = vunpack.c.l.b16 %v903
      %v1423 = vunpack.c.l.b16 %v904
      %v1424 = vunpack.c.l.b16 %v905
      %v1425 = vunpack.c.l.b16 %v906
      %v1426 = vunpack.c.l.b16 %v907
      %v1427 = vunpack.c.l.b16 %v908
      %v1428 = vunpack.c.l.b16 %v909
      %v1429 = vunpack.c.l.b16 %v910
      %v1430 = vunpack.c.l.b16 %v911
      %v1431 = vunpack.c.l.b16 %v912
      %v1432 = vunpack.c.l.b16 %v913
      %v1433 = vunpack.c.l.b16 %v914
      %v1434 = vunpack.c.l.b16 %v915
      %v1435 = vunpack.c.l.b16 %v916
      %v1436 = vunpack.c.l.b16 %v917
      %v1437 = vunpack.c.l.b16 %v918
      %v1438 = vunpack.c.l.b16 %v919
      %v1439 = vunpack.c.l.b16 %v920
      %v1440 = vunpack.c.l.b16 %v921
      %v1441 = vunpack.c.l.b16 %v922
      %v1442 = vunpack.c.l.b16 %v923
      %v1443 = vunpack.c.l.b16 %v924
      %v1444 = vunpack.c.l.b16 %v925
      %v1445 = vunpack.c.l.b16 %v926
      %v1446 = vunpack.c.l.b16 %v927
      %v1447 = vunpack.c.l.b16 %v928
      %v1448 = vunpack.c.l.b16 %v929
      %v1449 = vunpack.c.l.b16 %v930
      %v1450 = vunpack.c.l.b16 %v931
      %v1451 = vunpack.c.l.b16 %v932
      %v1452 = vunpack.c.l.b16 %v933
      %v1453 = vunpack.c.l.b16 %v934
      %v1454 = vunpack.c.l.b16 %v935
      %v1455 = vunpack.c.l.b16 %v936
      %v1456 = vunpack.c.l.b16 %v937
      %v1457 = vunpack.c.l.b16 %v938
      %v1458 = vunpack.c.l.b16 %v939
      %v1459 = vunpack.c.l.b16 %v940
      %v1460 = vunpack.c.l.b16 %v941
      %v1461 = vunpack.c.l.b16 %v942
      %v1462 = vunpack.c.l.b16 %v943
      %v1463 = vunpack.c.l.b16 %v944
      %v1464 = vunpack.c.l.b16 %v945
      %v1465 = vunpack.c.l.b16 %v946
      %v1466 = vunpack.c.l.b16 %v947
      %v1467 = vunpack.c.l.b16 %v948
      %v1468 = vunpack.c.l.b16 %v949
      %v1469 = vunpack.c.l.b16 %v950
      %v1470 = vunpack.c.l.b16 %v951
      %v1471 = vunpack.c.l.b16 %v952
      %v1472 = vunpack.c.l.b16 %v953
      %v1473 = vunpack.c.l.b16 %v954
      %v1474 = vunpack.c.l.b16 %v955
      %v1475 = vunpack.c.l.b16 %v956
      %v1476 = vunpack.c.l.b16 %v957
      %v1477 = vunpack.c.l.b16 %v958
      %v1478 = vunpack.c.l.b16 %v959
      %v1479 = vunpack.c.l.b16 %v960
      %v1480 = vunpack.c.l.b16 %v961
      %v1481 = vunpack.c.l.b16 %v962
      %v1482 = vunpack.c.l.b16 %v963
      %v1483 = vunpack.c.l.b16 %v964
      %v1484 = vunpack.c.l.b16 %v965
      %v1485 = vunpack.c.l.b16 %v966
      %v1486 = vunpack.c.l.b16 %v967
      %v1487 = vunpack.c.l.b16 %v968
      %v1488 = vunpack.c.l.b16 %v969
      %v1489 = vunpack.c.l.b16 %v970
      %v1490 = vunpack.c.l.b16 %v971
      %v1491 = vunpack.c.l.b16 %v972
      %v1492 = vunpack.c.l.b16 %v973
      %v1493 = vunpack.c.l.b16 %v974
      %v1494 = vunpack.c.l.b16 %v975
      %v1495 = vunpack.c.l.b16 %v976
      %v1496 = vunpack.c.l.b16 %v977
      %v1497 = vunpack.c.l.b16 %v978
      %v1498 = vunpack.c.l.b16 %v979
      %v1499 = vunpack.c.l.b16 %v980
      %v1500 = vunpack.c.l.b16 %v981
      %v1501 = vunpack.c.l.b16 %v982
      %v1502 = vunpack.c.l.b16 %v983
      %v1503 = vunpack.c.l.b16 %v984
      %v1504 = vunpack.c.l.b16 %v985
      %v1505 = vunpack.c.l.b16 %v986
      %v1506 = vunpack.c.l.b16 %v987
      %v1507 = vunpack.c.l.b16 %v988
      %v1508 = vunpack.c.l.b16 %v989
      %v1509 = vunpack.c.l.b16 %v990
      %v1510 = vunpack.c.l.b16 %v991
      %v1511 = vunpack.c.l.b16 %v992
      %v1512 = vunpack.c.l.b16 %v993
      %v1513 = vunpack.c.l.b16 %v994
      %v1514 = vunpack.c.l.b16 %v995
      %v1515 = vunpack.c.l.b16 %v996
      %v1516 = vunpack.c.l.b16 %v997
      %v1517 = vunpack.c.l.b16 %v998
      %v1518 = vunpack.c.l.b16 %v999
      %v1519 = vunpack.c.l.b16 %v1000
      %v1520 = vunpack.c.l.b16 %v1001
      %v1521 = vunpack.c.l.b16 %v1002
      %v1522 = vunpack.c.l.b16 %v1003
      %v1523 = vunpack.c.l.b16 %v1004
      %v1524 = vunpack.c.l.b16 %v1005
      %v1525 = vunpack.c.l.b16 %v1006
      %v1526 = vunpack.c.l.b16 %v1007
      %v1527 = vunpack.c.l.b16 %v1008
      %v1528 = vunpack.c.l.b16 %v1009
      %v1529 = vunpack.c.l.b16 %v1010
      %v1530 = vunpack.c.l.b16 %v1011
      %v1531 = vunpack.c.l.b16 %v1012
      %v1532 = vunpack.c.l.b16 %v1013
      %v1533 = vunpack.c.l.b16 %v1014
      %v1534 = vunpack.c.l.b16 %v1015
      %v1535 = vunpack.c.l.b16 %v1016
      %v1536 = vunpack.c.l.b16 %v1017
      %v1537 = vunpack.c.l.b16 %v1018
      %v1538 = vunpack.c.l.b16 %v1019
      %v1539 = vunpack.c.l.b16 %v1020
      %v1540 = vunpack.c.l.b16 %v1021
      %v1541 = vunpack.c.l.b16 %v1022
      %v1542 = vunpack.c.l.b16 %v1023
      %v1543 = vunpack.c.l.b16 %v1024
      %v1544 = vunpack.c.l.b16 %v1025
      %v1545 = vunpack.c.l.b16 %v1026
      %v1546 = vunpack.c.l.b16 %v1027
      %v1547 = vunpack.c.l.b16 %v1028
      %v1548 = vunpack.c.l.b16 %v1029
      %v1549 = vunpack.c.l.b16 %v1030
      %v1550 = vunpack.c.l.b16 %v1031
      %v1551 = vunpack.c.l.b16 %v1032
      %v1552 = vunpack.c.l.b16 %v1033
      %v1553 = vunpack.c.l.b16 %v1034
      %v1554 = vunpack.c.l.b16 %v1035
      %v1555 = vunpack.c.l.b16 %v1036
      %v1556 = vunpack.c.l.b16 %v1037
      %v1557 = vunpack.c.l.b16 %v1038
      %v1558 = vunpack.c.l.b16 %v1039
      %v1559 = vunpack.c.l.b16 %v1040
      %v1560 = vunpack.c.l.b16 %v1041
      %v1561 = vunpack.c.l.b16 %v1042
      %v1562 = vunpack.c.l.b16 %v1043
      %v1563 = vunpack.c.l.b16 %v1044
      %v1564 = vunpack.c.l.b16 %v1045
      %v1565 = vunpack.c.l.b16 %v1046
      %v1566 = vunpack.c.l.b16 %v1047
      %v1567 = vunpack.c.l.b16 %v1048
      %v1568 = vunpack.c.l.b16 %v1049
      %v1569 = vunpack.c.l.b16 %v1050
      %v1570 = vunpack.c.l.b16 %v1051
      %v1571 = vunpack.c.l.b16 %v1052
      %v1572 = vunpack.c.l.b16 %v1053
      %v1573 = vunpack.c.l.b16 %v1054
      %v1574 = vunpack.c.l.b16 %v1055
      %v1575 = vunpack.c.l.b16 %v1056
      %v1576 = vpack.c.b16 %v1321, %v1320
      %v1577 = vpack.c.b16 %v1323, %v1322
      %v1578 = vpack.c.b16 %v1325, %v1324
      %v1579 = vpack.c.b16 %v1327, %v1326
      %v1580 = vpack.c.b16 %v1329, %v1328
      %v1581 = vpack.c.b16 %v1331, %v1330
      %v1582 = vpack.c.b16 %v1333, %v1332
      %v1583 = vpack.c.b16 %v1335, %v1334
      %v1584 = vpack.c.b16 %v1337, %v1336
      %v1585 = vpack.c.b16 %v1339, %v1338
      %v1586 = vpack.c.b16 %v1341, %v1340
      %v1587 = vpack.c.b16 %v1343, %v1342
      %v1588 = vpack.c.b16 %v1345, %v1344
      %v1589 = vpack.c.b16 %v1347, %v1346
      %v1590 = vpack.c.b16 %v1349, %v1348
      %v1591 = vpack.c.b16 %v1351, %v1350
      %v1592 = vpack.c.b16 %v1353, %v1352
      %v1593 = vpack.c.b16 %v1355, %v1354
      %v1594 = vpack.c.b16 %v1357, %v1356
      %v1595 = vpack.c.b16 %v1359, %v1358
      %v1596 = vpack.c.b16 %v1361, %v1360
      %v1597 = vpack.c.b16 %v1363, %v1362
      %v1598 = vpack.c.b16 %v1365, %v1364
      %v1599 = vpack.c.b16 %v1367, %v1366
      %v1600 = vpack.c.b16 %v1369, %v1368
      %v1601 = vpack.c.b16 %v1371, %v1370
      %v1602 = vpack.c.b16 %v1373, %v1372
      %v1603 = vpack.c.b16 %v1375, %v1374
      %v1604 = vpack.c.b16 %v1377, %v1376
      %v1605 = vpack.c.b16 %v1379, %v1378
      %v1606 = vpack.c.b16 %v1381, %v1380
      %v1607 = vpack.c.b16 %v1383, %v1382
      %v1608 = vpack.c.b16 %v1385, %v1384
      %v1609 = vpack.c.b16 %v1387, %v1386
      %v1610 = vpack.c.b16 %v1389, %v1388
      %v1611 = vpack.c.b16 %v1391, %v1390
      %v1612 = vpack.c.b16 %v1393, %v1392
      %v1613 = vpack.c.b16 %v1395, %v1394
      %v1614 = vpack.c.b16 %v1397, %v1396
      %v1615 = vpack.c.b16 %v1399, %v1398
      %v1616 = vpack.c.b16 %v1401, %v1400
      %v1617 = vpack.c.b16 %v1403, %v1402
      %v1618 = vpack.c.b16 %v1405, %v1404
      %v1619 = vpack.c.b16 %v1407, %v1406
      %v1620 = vpack.c.b16 %v1409, %v1408
      %v1621 = vpack.c.b16 %v1411, %v1410
      %v1622 = vpack.c.b16 %v1413, %v1412
      %v1623 = vpack.c.b16 %v1415, %v1414
      %v1624 = vpack.c.b16 %v1417, %v1416
      %v1625 = vpack.c.b16 %v1419, %v1418
      %v1626 = vpack.c.b16 %v1421, %v1420
      %v1627 = vpack.c.b16 %v1423, %v1422
      %v1628 = vpack.c.b16 %v1425, %v1424
      %v1629 = vpack.c.b16 %v1427, %v1426
      %v1630 = vpack.c.b16 %v1429, %v1428
      %v1631 = vpack.c.b16 %v1431, %v1430
      %v1632 = vpack.c.b16 %v1433, %v1432
      %v1633 = vpack.c.b16 %v1435, %v1434
      %v1634 = vpack.c.b16 %v1437, %v1436
      %v1635 = vpack.c.b16 %v1439, %v1438
      %v1636 = vpack.c.b16 %v1441, %v1440
      %v1637 = vpack.c.b16 %v1443, %v1442
      %v1638 = vpack.c.b16 %v1445, %v1444
      %v1639 = vpack.c.b16 %v1447, %v1446
      %v1640 = vpack.c.b16 %v1449, %v1448
      %v1641 = vpack.c.b16 %v1451, %v1450
      %v1642 = vpack.c.b16 %v1453, %v1452
      %v1643 = vpack.c.b16 %v1455, %v1454
      %v1644 = vpack.c.b16 %v1457, %v1456
      %v1645 = vpack.c.b16 %v1459, %v1458
      %v1646 = vpack.c.b16 %v1461, %v1460
      %v1647 = vpack.c.b16 %v1463, %v1462
      %v1648 = vpack.c.b16 %v1465, %v1464
      %v1649 = vpack.c.b16 %v1467, %v1466
      %v1650 = vpack.c.b16 %v1469, %v1468
      %v1651 = vpack.c.b16 %v1471, %v1470
      %v1652 = vpack.c.b16 %v1473, %v1472
      %v1653 = vpack.c.b16 %v1475, %v1474
      %v1654 = vpack.c.b16 %v1477, %v1476
      %v1655 = vpack.c.b16 %v1479, %v1478
      %v1656 = vpack.c.b16 %v1481, %v1480
      %v1657 = vpack.c.b16 %v1483, %v1482
      %v1658 = vpack.c.b16 %v1485, %v1484
      %v1659 = vpack.c.b16 %v1487, %v1486
      %v1660 = vpack.c.b16 %v1489, %v1488
      %v1661 = vpack.c.b16 %v1491, %v1490
      %v1662 = vpack.c.b16 %v1493, %v1492
      %v1663 = vpack.c.b16 %v1495, %v1494
      %v1664 = vpack.c.b16 %v1497, %v1496
      %v1665 = vpack.c.b16 %v1499, %v1498
      %v1666 = vpack.c.b16 %v1501, %v1500
      %v1667 = vpack.c.b16 %v1503, %v1502
      %v1668 = vpack.c.b16 %v1505, %v1504
      %v1669 = vpack.c.b16 %v1507, %v1506
      %v1670 = vpack.c.b16 %v1509, %v1508
      %v1671 = vpack.c.b16 %v1511, %v1510
      %v1672 = vpack.c.b16 %v1513, %v1512
      %v1673 = vpack.c.b16 %v1515, %v1514
      %v1674 = vpack.c.b16 %v1517, %v1516
      %v1675 = vpack.c.b16 %v1519, %v1518
      %v1676 = vpack.c.b16 %v1521, %v1520
      %v1677 = vpack.c.b16 %v1523, %v1522
      %v1678 = vpack.c.b16 %v1525, %v1524
      %v1679 = vpack.c.b16 %v1527, %v1526
      %v1680 = vpack.c.b16 %v1529, %v1528
      %v1681 = vpack.c.b16 %v1531, %v1530
      %v1682 = vpack.c.b16 %v1533, %v1532
      %v1683 = vpack.c.b16 %v1535, %v1534
      %v1684 = vpack.c.b16 %v1537, %v1536
      %v1685 = vpack.c.b16 %v1539, %v1538
      %v1686 = vpack.c.b16 %v1541, %v1540
      %v1687 = vpack.c.b16 %v1543, %v1542
      %v1688 = vpack.c.b16 %v1545, %v1544
      %v1689 = vpack.c.b16 %v1547, %v1546
      %v1690 = vpack.c.b16 %v1549, %v1548
      %v1691 = vpack.c.b16 %v1551, %v1550
      %v1692 = vpack.c.b16 %v1553, %v1552
      %v1693 = vpack.c.b16 %v1555, %v1554
      %v1694 = vpack.c.b16 %v1557, %v1556
      %v1695 = vpack.c.b16 %v1559, %v1558
      %v1696 = vpack.c.b16 %v1561, %v1560
      %v1697 = vpack.c.b16 %v1563, %v1562
      %v1698 = vpack.c.b16 %v1565, %v1564
      %v1699 = vpack.c.b16 %v1567, %v1566
      %v1700 = vpack.c.b16 %v1569, %v1568
      %v1701 = vpack.c.b16 %v1571, %v1570
      %v1702 = vpack.c.b16 %v1573, %v1572
      %v1703 = vpack.c.b16 %v1575, %v1574
      %1832 = vmatprep.subr.bf16.mxu0 0
      %1833 = vmatpush1.bf16.msra.mxu0 %v1583
      %1834 = vmatprep.subr.bf16.mxu0 0
      %1835 = vmatpush1.bf16.msra.mxu0 %v1582
      %1836 = vmatprep.subr.bf16.mxu0 0
      %1837 = vmatpush1.bf16.msra.mxu0 %v1581
      %1838 = vmatprep.subr.bf16.mxu0 0
      %1839 = vmatpush1.bf16.msra.mxu0 %v1580
      %1840 = vmatprep.subr.bf16.mxu0 0
      %1841 = vmatpush1.bf16.msra.mxu0 %v1579
      %1842 = vmatprep.subr.bf16.mxu0 0
      %1843 = vmatpush1.bf16.msra.mxu0 %v1578
      %1844 = vmatprep.subr.bf16.mxu0 0
      %1845 = vmatpush1.bf16.msra.mxu0 %v1577
      %1846 = vmatprep.subr.bf16.mxu0 0
      %1847 = vmatpush1.bf16.msra.mxu0 %v1576
      %1848 = vmatprep.subr.bf16.mxu0 0
      %1849 = vmatpush2.bf16.msra.mxu0 %v1591
      %1850 = vmatprep.subr.bf16.mxu0 0
      %1851 = vmatpush2.bf16.msra.mxu0 %v1590
      %1852 = vmatprep.subr.bf16.mxu0 0
      %1853 = vmatpush2.bf16.msra.mxu0 %v1589
      %1854 = vmatprep.subr.bf16.mxu0 0
      %1855 = vmatpush2.bf16.msra.mxu0 %v1588
      %1856 = vmatprep.subr.bf16.mxu0 0
      %1857 = vmatpush2.bf16.msra.mxu0 %v1587
      %1858 = vmatprep.subr.bf16.mxu0 0
      %1859 = vmatpush2.bf16.msra.mxu0 %v1586
      %1860 = vmatprep.subr.bf16.mxu0 0
      %1861 = vmatpush2.bf16.msra.mxu0 %v1585
      %1862 = vmatprep.subr.bf16.mxu0 0
      %1863 = vmatpush2.bf16.msra.mxu0 %v1584
      %1864 = vmatprep.mubr.bf16.mxu0 %v786
      %1865 = vmatmul.mubr.bf16.gmra.mxu0 %v785
      %v1866 = vpop.f32.mrf.mxu0
      %v1867 = vadd.f32 %v1062, %v1866
      %v1868 = vpop.f32.mrf.mxu0
      %v1869 = vpop.f32.mrf.mxu0
      %v1870 = vpop.f32.mrf.mxu0
      %1871 = vdwg.mxu0
      %1872 = vmatprep.subr.bf16.mxu0 0
      %1873 = vmatpush1.bf16.msra.mxu0 %v1599
      %1874 = vmatprep.subr.bf16.mxu0 0
      %1875 = vmatpush1.bf16.msra.mxu0 %v1598
      %1876 = vmatprep.subr.bf16.mxu0 0
      %1877 = vmatpush1.bf16.msra.mxu0 %v1597
      %1878 = vmatprep.subr.bf16.mxu0 0
      %1879 = vmatpush1.bf16.msra.mxu0 %v1596
      %1880 = vmatprep.subr.bf16.mxu0 0
      %1881 = vmatpush1.bf16.msra.mxu0 %v1595
      %1882 = vmatprep.subr.bf16.mxu0 0
      %1883 = vmatpush1.bf16.msra.mxu0 %v1594
      %1884 = vmatprep.subr.bf16.mxu0 0
      %1885 = vmatpush1.bf16.msra.mxu0 %v1593
      %1886 = vmatprep.subr.bf16.mxu0 0
      %1887 = vmatpush1.bf16.msra.mxu0 %v1592
      %1888 = vmatprep.subr.bf16.mxu0 0
      %1889 = vmatpush2.bf16.msra.mxu0 %v1607
      %1890 = vmatprep.subr.bf16.mxu0 0
      %1891 = vmatpush2.bf16.msra.mxu0 %v1606
      %1892 = vmatprep.subr.bf16.mxu0 0
      %1893 = vmatpush2.bf16.msra.mxu0 %v1605
      %1894 = vmatprep.subr.bf16.mxu0 0
      %1895 = vmatpush2.bf16.msra.mxu0 %v1604
      %1896 = vmatprep.subr.bf16.mxu0 0
      %1897 = vmatpush2.bf16.msra.mxu0 %v1603
      %1898 = vmatprep.subr.bf16.mxu0 0
      %1899 = vmatpush2.bf16.msra.mxu0 %v1602
      %1900 = vmatprep.subr.bf16.mxu0 0
      %1901 = vmatpush2.bf16.msra.mxu0 %v1601
      %1902 = vmatprep.subr.bf16.mxu0 0
      %1903 = vmatpush2.bf16.msra.mxu0 %v1600
      %1904 = vmatprep.mubr.bf16.mxu0 %v788
      %1905 = vmatmul.mubr.bf16.gmra.mxu0 %v787
      %v1906 = vpop.f32.mrf.mxu0
      %v1907 = vadd.f32 %v1867, %v1906
      %v1908 = vpop.f32.mrf.mxu0
      %v1909 = vpop.f32.mrf.mxu0
      %v1910 = vpop.f32.mrf.mxu0
      %1911 = vdwg.mxu0
      %1912 = vmatprep.subr.bf16.mxu0 0
      %1913 = vmatpush1.bf16.msra.mxu0 %v1615
      %1914 = vmatprep.subr.bf16.mxu0 0
      %1915 = vmatpush1.bf16.msra.mxu0 %v1614
      %1916 = vmatprep.subr.bf16.mxu0 0
      %1917 = vmatpush1.bf16.msra.mxu0 %v1613
      %1918 = vmatprep.subr.bf16.mxu0 0
      %1919 = vmatpush1.bf16.msra.mxu0 %v1612
      %1920 = vmatprep.subr.bf16.mxu0 0
      %1921 = vmatpush1.bf16.msra.mxu0 %v1611
      %1922 = vmatprep.subr.bf16.mxu0 0
      %1923 = vmatpush1.bf16.msra.mxu0 %v1610
      %1924 = vmatprep.subr.bf16.mxu0 0
      %1925 = vmatpush1.bf16.msra.mxu0 %v1609
      %1926 = vmatprep.subr.bf16.mxu0 0
      %1927 = vmatpush1.bf16.msra.mxu0 %v1608
      %1928 = vmatprep.subr.bf16.mxu0 0
      %1929 = vmatpush2.bf16.msra.mxu0 %v1623
      %1930 = vmatprep.subr.bf16.mxu0 0
      %1931 = vmatpush2.bf16.msra.mxu0 %v1622
      %1932 = vmatprep.subr.bf16.mxu0 0
      %1933 = vmatpush2.bf16.msra.mxu0 %v1621
      %1934 = vmatprep.subr.bf16.mxu0 0
      %1935 = vmatpush2.bf16.msra.mxu0 %v1620
      %1936 = vmatprep.subr.bf16.mxu0 0
      %1937 = vmatpush2.bf16.msra.mxu0 %v1619
      %1938 = vmatprep.subr.bf16.mxu0 0
      %1939 = vmatpush2.bf16.msra.mxu0 %v1618
      %1940 = vmatprep.subr.bf16.mxu0 0
      %1941 = vmatpush2.bf16.msra.mxu0 %v1617
      %1942 = vmatprep.subr.bf16.mxu0 0
      %1943 = vmatpush2.bf16.msra.mxu0 %v1616
      %1944 = vmatprep.mubr.bf16.mxu0 %v790
      %1945 = vmatmul.mubr.bf16.gmra.mxu0 %v789
      %v1946 = vpop.f32.mrf.mxu0
      %v1947 = vadd.f32 %v1907, %v1946
      %v1948 = vpop.f32.mrf.mxu0
      %v1949 = vpop.f32.mrf.mxu0
      %v1950 = vpop.f32.mrf.mxu0
      %1951 = vdwg.mxu0
      %1952 = vmatprep.subr.bf16.mxu0 0
      %1953 = vmatpush1.bf16.msra.mxu0 %v1631
      %1954 = vmatprep.subr.bf16.mxu0 0
      %1955 = vmatpush1.bf16.msra.mxu0 %v1630
      %1956 = vmatprep.subr.bf16.mxu0 0
      %1957 = vmatpush1.bf16.msra.mxu0 %v1629
      %1958 = vmatprep.subr.bf16.mxu0 0
      %1959 = vmatpush1.bf16.msra.mxu0 %v1628
      %1960 = vmatprep.subr.bf16.mxu0 0
      %1961 = vmatpush1.bf16.msra.mxu0 %v1627
      %1962 = vmatprep.subr.bf16.mxu0 0
      %1963 = vmatpush1.bf16.msra.mxu0 %v1626
      %1964 = vmatprep.subr.bf16.mxu0 0
      %1965 = vmatpush1.bf16.msra.mxu0 %v1625
      %1966 = vmatprep.subr.bf16.mxu0 0
      %1967 = vmatpush1.bf16.msra.mxu0 %v1624
      %1968 = vmatprep.subr.bf16.mxu0 0
      %1969 = vmatpush2.bf16.msra.mxu0 %v1639
      %1970 = vmatprep.subr.bf16.mxu0 0
      %1971 = vmatpush2.bf16.msra.mxu0 %v1638
      %1972 = vmatprep.subr.bf16.mxu0 0
      %1973 = vmatpush2.bf16.msra.mxu0 %v1637
      %1974 = vmatprep.subr.bf16.mxu0 0
      %1975 = vmatpush2.bf16.msra.mxu0 %v1636
      %1976 = vmatprep.subr.bf16.mxu0 0
      %1977 = vmatpush2.bf16.msra.mxu0 %v1635
      %1978 = vmatprep.subr.bf16.mxu0 0
      %1979 = vmatpush2.bf16.msra.mxu0 %v1634
      %1980 = vmatprep.subr.bf16.mxu0 0
      %1981 = vmatpush2.bf16.msra.mxu0 %v1633
      %1982 = vmatprep.subr.bf16.mxu0 0
      %1983 = vmatpush2.bf16.msra.mxu0 %v1632
      %1984 = vmatprep.mubr.bf16.mxu0 %v792
      %1985 = vmatmul.mubr.bf16.gmra.mxu0 %v791
      %v1986 = vpop.f32.mrf.mxu0
      %v1987 = vadd.f32 %v1947, %v1986
      %v1988 = vpop.f32.mrf.mxu0
      %v1989 = vpop.f32.mrf.mxu0
      %v1990 = vpop.f32.mrf.mxu0
      %1991 = vdwg.mxu0
      %1992 = vmatprep.subr.bf16.mxu0 0
      %1993 = vmatpush1.bf16.msra.mxu0 %v1647
      %1994 = vmatprep.subr.bf16.mxu0 0
      %1995 = vmatpush1.bf16.msra.mxu0 %v1646
      %1996 = vmatprep.subr.bf16.mxu0 0
      %1997 = vmatpush1.bf16.msra.mxu0 %v1645
      %1998 = vmatprep.subr.bf16.mxu0 0
      %1999 = vmatpush1.bf16.msra.mxu0 %v1644
      %2000 = vmatprep.subr.bf16.mxu0 0
      %2001 = vmatpush1.bf16.msra.mxu0 %v1643
      %2002 = vmatprep.subr.bf16.mxu0 0
      %2003 = vmatpush1.bf16.msra.mxu0 %v1642
      %2004 = vmatprep.subr.bf16.mxu0 0
      %2005 = vmatpush1.bf16.msra.mxu0 %v1641
      %2006 = vmatprep.subr.bf16.mxu0 0
      %2007 = vmatpush1.bf16.msra.mxu0 %v1640
      %2008 = vmatprep.subr.bf16.mxu0 0
      %2009 = vmatpush2.bf16.msra.mxu0 %v1655
      %2010 = vmatprep.subr.bf16.mxu0 0
      %2011 = vmatpush2.bf16.msra.mxu0 %v1654
      %2012 = vmatprep.subr.bf16.mxu0 0
      %2013 = vmatpush2.bf16.msra.mxu0 %v1653
      %2014 = vmatprep.subr.bf16.mxu0 0
      %2015 = vmatpush2.bf16.msra.mxu0 %v1652
      %2016 = vmatprep.subr.bf16.mxu0 0
      %2017 = vmatpush2.bf16.msra.mxu0 %v1651
      %2018 = vmatprep.subr.bf16.mxu0 0
      %2019 = vmatpush2.bf16.msra.mxu0 %v1650
      %2020 = vmatprep.subr.bf16.mxu0 0
      %2021 = vmatpush2.bf16.msra.mxu0 %v1649
      %2022 = vmatprep.subr.bf16.mxu0 0
      %2023 = vmatpush2.bf16.msra.mxu0 %v1648
      %2024 = vmatprep.mubr.bf16.mxu0 %v794
      %2025 = vmatmul.mubr.bf16.gmra.mxu0 %v793
      %v2026 = vpop.f32.mrf.mxu0
      %v2027 = vadd.f32 %v1987, %v2026
      %v2028 = vpop.f32.mrf.mxu0
      %v2029 = vpop.f32.mrf.mxu0
      %v2030 = vpop.f32.mrf.mxu0
      %2031 = vdwg.mxu0
      %2032 = vmatprep.subr.bf16.mxu0 0
      %2033 = vmatpush1.bf16.msra.mxu0 %v1663
      %2034 = vmatprep.subr.bf16.mxu0 0
      %2035 = vmatpush1.bf16.msra.mxu0 %v1662
      %2036 = vmatprep.subr.bf16.mxu0 0
      %2037 = vmatpush1.bf16.msra.mxu0 %v1661
      %2038 = vmatprep.subr.bf16.mxu0 0
      %2039 = vmatpush1.bf16.msra.mxu0 %v1660
      %2040 = vmatprep.subr.bf16.mxu0 0
      %2041 = vmatpush1.bf16.msra.mxu0 %v1659
      %2042 = vmatprep.subr.bf16.mxu0 0
      %2043 = vmatpush1.bf16.msra.mxu0 %v1658
      %2044 = vmatprep.subr.bf16.mxu0 0
      %2045 = vmatpush1.bf16.msra.mxu0 %v1657
      %2046 = vmatprep.subr.bf16.mxu0 0
      %2047 = vmatpush1.bf16.msra.mxu0 %v1656
      %2048 = vmatprep.subr.bf16.mxu0 0
      %2049 = vmatpush2.bf16.msra.mxu0 %v1671
      %2050 = vmatprep.subr.bf16.mxu0 0
      %2051 = vmatpush2.bf16.msra.mxu0 %v1670
      %2052 = vmatprep.subr.bf16.mxu0 0
      %2053 = vmatpush2.bf16.msra.mxu0 %v1669
      %2054 = vmatprep.subr.bf16.mxu0 0
      %2055 = vmatpush2.bf16.msra.mxu0 %v1668
      %2056 = vmatprep.subr.bf16.mxu0 0
      %2057 = vmatpush2.bf16.msra.mxu0 %v1667
      %2058 = vmatprep.subr.bf16.mxu0 0
      %2059 = vmatpush2.bf16.msra.mxu0 %v1666
      %2060 = vmatprep.subr.bf16.mxu0 0
      %2061 = vmatpush2.bf16.msra.mxu0 %v1665
      %2062 = vmatprep.subr.bf16.mxu0 0
      %2063 = vmatpush2.bf16.msra.mxu0 %v1664
      %2064 = vmatprep.mubr.bf16.mxu0 %v796
      %2065 = vmatmul.mubr.bf16.gmra.mxu0 %v795
      %v2066 = vpop.f32.mrf.mxu0
      %v2067 = vadd.f32 %v2027, %v2066
      %v2068 = vpop.f32.mrf.mxu0
      %v2069 = vpop.f32.mrf.mxu0
      %v2070 = vpop.f32.mrf.mxu0
      %2071 = vdwg.mxu0
      %2072 = vmatprep.subr.bf16.mxu0 0
      %2073 = vmatpush1.bf16.msra.mxu0 %v1679
      %2074 = vmatprep.subr.bf16.mxu0 0
      %2075 = vmatpush1.bf16.msra.mxu0 %v1678
      %2076 = vmatprep.subr.bf16.mxu0 0
      %2077 = vmatpush1.bf16.msra.mxu0 %v1677
      %2078 = vmatprep.subr.bf16.mxu0 0
      %2079 = vmatpush1.bf16.msra.mxu0 %v1676
      %2080 = vmatprep.subr.bf16.mxu0 0
      %2081 = vmatpush1.bf16.msra.mxu0 %v1675
      %2082 = vmatprep.subr.bf16.mxu0 0
      %2083 = vmatpush1.bf16.msra.mxu0 %v1674
      %2084 = vmatprep.subr.bf16.mxu0 0
      %2085 = vmatpush1.bf16.msra.mxu0 %v1673
      %2086 = vmatprep.subr.bf16.mxu0 0
      %2087 = vmatpush1.bf16.msra.mxu0 %v1672
      %2088 = vmatprep.subr.bf16.mxu0 0
      %2089 = vmatpush2.bf16.msra.mxu0 %v1687
      %2090 = vmatprep.subr.bf16.mxu0 0
      %2091 = vmatpush2.bf16.msra.mxu0 %v1686
      %2092 = vmatprep.subr.bf16.mxu0 0
      %2093 = vmatpush2.bf16.msra.mxu0 %v1685
      %2094 = vmatprep.subr.bf16.mxu0 0
      %2095 = vmatpush2.bf16.msra.mxu0 %v1684
      %2096 = vmatprep.subr.bf16.mxu0 0
      %2097 = vmatpush2.bf16.msra.mxu0 %v1683
      %2098 = vmatprep.subr.bf16.mxu0 0
      %2099 = vmatpush2.bf16.msra.mxu0 %v1682
      %2100 = vmatprep.subr.bf16.mxu0 0
      %2101 = vmatpush2.bf16.msra.mxu0 %v1681
      %2102 = vmatprep.subr.bf16.mxu0 0
      %2103 = vmatpush2.bf16.msra.mxu0 %v1680
      %2104 = vmatprep.mubr.bf16.mxu0 %v798
      %2105 = vmatmul.mubr.bf16.gmra.mxu0 %v797
      %v2106 = vpop.f32.mrf.mxu0
      %v2107 = vadd.f32 %v2067, %v2106
      %v2108 = vpop.f32.mrf.mxu0
      %v2109 = vpop.f32.mrf.mxu0
      %v2110 = vpop.f32.mrf.mxu0
      %2111 = vdwg.mxu0
      %2112 = vmatprep.subr.bf16.mxu0 0
      %2113 = vmatpush1.bf16.msra.mxu0 %v1695
      %2114 = vmatprep.subr.bf16.mxu0 0
      %2115 = vmatpush1.bf16.msra.mxu0 %v1694
      %2116 = vmatprep.subr.bf16.mxu0 0
      %2117 = vmatpush1.bf16.msra.mxu0 %v1693
      %2118 = vmatprep.subr.bf16.mxu0 0
      %2119 = vmatpush1.bf16.msra.mxu0 %v1692
      %2120 = vmatprep.subr.bf16.mxu0 0
      %2121 = vmatpush1.bf16.msra.mxu0 %v1691
      %2122 = vmatprep.subr.bf16.mxu0 0
      %2123 = vmatpush1.bf16.msra.mxu0 %v1690
      %2124 = vmatprep.subr.bf16.mxu0 0
      %2125 = vmatpush1.bf16.msra.mxu0 %v1689
      %2126 = vmatprep.subr.bf16.mxu0 0
      %2127 = vmatpush1.bf16.msra.mxu0 %v1688
      %2128 = vmatprep.subr.bf16.mxu0 0
      %2129 = vmatpush2.bf16.msra.mxu0 %v1703
      %2130 = vmatprep.subr.bf16.mxu0 0
      %2131 = vmatpush2.bf16.msra.mxu0 %v1702
      %2132 = vmatprep.subr.bf16.mxu0 0
      %2133 = vmatpush2.bf16.msra.mxu0 %v1701
      %2134 = vmatprep.subr.bf16.mxu0 0
      %2135 = vmatpush2.bf16.msra.mxu0 %v1700
      %2136 = vmatprep.subr.bf16.mxu0 0
      %2137 = vmatpush2.bf16.msra.mxu0 %v1699
      %2138 = vmatprep.subr.bf16.mxu0 0
      %2139 = vmatpush2.bf16.msra.mxu0 %v1698
      %2140 = vmatprep.subr.bf16.mxu0 0
      %2141 = vmatpush2.bf16.msra.mxu0 %v1697
      %2142 = vmatprep.subr.bf16.mxu0 0
      %2143 = vmatpush2.bf16.msra.mxu0 %v1696
      %2144 = vmatprep.mubr.bf16.mxu0 %v800
      %2145 = vmatmul.mubr.bf16.gmra.mxu0 %v799
      %v2146 = vpop.f32.mrf.mxu0
      %v2147 = vadd.f32 %v2107, %v2146
      %v2148 = vpop.f32.mrf.mxu0
      %v2149 = vpop.f32.mrf.mxu0
      %v2150 = vpop.f32.mrf.mxu0
      %2151 = vdwg.mxu0
      %v2152 = vmax.f32 %v2147, 0.0
      %2153 = vst [vmem:[#allocation11] sm:$0xff] %v2152
    $region45: #{tpu_custom_call.1} parent=1 // pred_fallthru
      _
    // Predicated region
    $region46: #{tpu_custom_call.1} parent=1 // pred_check
      _
    $region47: #{tpu_custom_call.1} parent=1 // pred_check_branch
      %2155 = sbr.rel (0) target = $region49
    $region48: #{tpu_custom_call.1} parent=1 // pred_region
      %s2157 = ssub.s32 128, 128
      %2158 = vsyncadd [#allocation5], %s2157
      %s2160 = sshll.u32 [#allocation11], 4
      %s2161 = int_to_ptr.vmem [resolvable:$true] %s2160
      %2163 = dma.vmem_to_hbm [thread:$0]  %s2161, 128, %s5, [#allocation5]
    $region49: #{tpu_custom_call.1} parent=1 // pred_fallthru
      _
    // Predicated region
    $region50: #{tpu_custom_call.1} parent=1 // pred_check
      _
    $region51: #{tpu_custom_call.1} parent=1 // pred_check_branch
      %2165 = sbr.rel (0) target = $region53
    $region52: #{tpu_custom_call.1} parent=1 // pred_region
      %2166 = dma.done [#allocation5], 128
    $region53: #{tpu_custom_call.1} parent=1 // pred_fallthru
      _
    %2167 = vsyncpa [#allocation4], 1
    %2168 = vsyncpa [#allocation7], 1
    %2169 = vsyncpa [#allocation10], 1
    %2170 = vsyncpa [#allocation5], 1

// kernel: tpu_custom_call.1
$region0: #{tpu_custom_call.1}
  #allocation0 [shape = 'u32[]', space=smem, size = 0x4, offset = 0x4, fixed_abs, tag = 'smem constant byte address 0x4 - core index']
  #allocation1 [shape = 'u32[144,128]{1,0:T(1,128)}', space=vmem, size = 0x12000, scoped, tag = 'internal scratch']
  #allocation2 [shape = 'f32[8,2048]{1,0:T(8,128)}', space=vmem, size = 0x10000, scoped, tag = 'scratch operand']
  %s0 = inlined_call_operand.hbm [shape: bf16[8,32], index: 0, kind: input, shape index: {}]
  %s1 = inlined_call_operand.hbm [shape: bf16[32,2048], index: 1, kind: input, shape index: {}]
  %s2 = inlined_call_operand.hbm [shape: f32[1,2048], index: 2, kind: input, shape index: {}]
  %s3 = inlined_call_operand.hbm [shape: bf16[2048,128], index: 3, kind: input, shape index: {}]
  %s4 = inlined_call_operand.vmem [shape: f32[1,128], index: 4, kind: input, shape index: {}]
  %s5 = inlined_call_operand.hbm [shape: f32[8,128], index: 5, kind: output, shape index: {}]
  %s6 = sld [smem:[#allocation0]]
  $region54: #{tpu_custom_call.1} parent=0
    _
  %s8 = ssub.s32 1, %s6
  %s9 = scalar_select 0, %s8, %s6
  $region1: #{tpu_custom_call.1} parent=0
    #allocation3 [shape = 'u8[2048]{0}', space=vmem, size = 0x800, scoped, tag = 'input window, operand 0, single buffered']
    #allocation4 [shape = 's32[1]{0}', space=sflag, size = 0x4, scoped, tag = 'scoped memory for tpu_custom_call.1']
    #allocation5 [shape = 's32[1]{0}', space=sflag, size = 0x4, scoped, tag = 'scoped memory for tpu_custom_call.1']
    #allocation6 [shape = 'u8[131072]{0}', space=vmem, size = 0x20000, scoped, tag = 'input window, operand 1, single buffered']
    #allocation7 [shape = 's32[1]{0}', space=sflag, size = 0x4, scoped, tag = 'scoped memory for tpu_custom_call.1']
    #allocation8 [shape = 'u8[8192]{0}', space=vmem, size = 0x2000, scoped, tag = 'input window, operand 2, single buffered']
    #allocation9 [shape = 'u8[524288]{0}', space=vmem, size = 0x80000, scoped, tag = 'input window, operand 3, single buffered']
    #allocation10 [shape = 's32[1]{0}', space=sflag, size = 0x4, scoped, tag = 'scoped memory for tpu_custom_call.1']
    #allocation11 [shape = 'u8[4096]{0}', space=vmem, size = 0x1000, scoped, tag = 'output window, operand 0, single buffered']
    %10 = vsyncpa [#allocation4], 0
    %11 = vsyncpa [#allocation7], 0
    %12 = vsyncpa [#allocation10], 0
    %13 = vsyncpa [#allocation5], 0
    // Predicated region
    $region2: #{tpu_custom_call.1} parent=1 // pred_check
      _
    $region3: #{tpu_custom_call.1} parent=1 // pred_check_branch
      %15 = sbr.rel (0) target = $region5
    $region4: #{tpu_custom_call.1} parent=1 // pred_region
      %s17 = ssub.s32 64, 64
      %18 = vsyncadd [#allocation4], %s17
      %s20 = sshll.u32 [#allocation3], 4
      %s21 = int_to_ptr.vmem [resolvable:$true] %s20
      %23 = dma.hbm_to_vmem [thread:$0]  %s0, 64, %s21, [#allocation4]
    $region5: #{tpu_custom_call.1} parent=1 // pred_fallthru
      _
    // Predicated region
    $region6: #{tpu_custom_call.1} parent=1 // pred_check
      _
    $region7: #{tpu_custom_call.1} parent=1 // pred_check_branch
      %25 = sbr.rel (0) target = $region9
    $region8: #{tpu_custom_call.1} parent=1 // pred_region
      %s27 = ssub.s32 4096, 4096
      %28 = vsyncadd [#allocation7], %s27
      %s29 = sshll.u32 [#allocation6], 4
      %s30 = int_to_ptr.vmem [resolvable:$true] %s29
      %35 = dma.hbm_to_vmem [thread:$0]  %s1, 4096, %s30, [#allocation7], 1024, 1024, 64
    $region9: #{tpu_custom_call.1} parent=1 // pred_fallthru
      _
    // Predicated region
    $region10: #{tpu_custom_call.1} parent=1 // pred_check
      _
    $region11: #{tpu_custom_call.1} parent=1 // pred_check_branch
      %37 = sbr.rel (0) target = $region13
    $region12: #{tpu_custom_call.1} parent=1 // pred_region
      %s39 = ssub.s32 256, 256
      %40 = vsyncadd [#allocation7], %s39
      %s42 = sshll.u32 [#allocation8], 4
      %s43 = int_to_ptr.vmem [resolvable:$true] %s42
      %45 = dma.hbm_to_vmem [thread:$0]  %s2, 256, %s43, [#allocation7]
    $region13: #{tpu_custom_call.1} parent=1 // pred_fallthru
      _
    // Predicated region
    $region14: #{tpu_custom_call.1} parent=1 // pred_check
      _
    $region15: #{tpu_custom_call.1} parent=1 // pred_check_branch
      %47 = sbr.rel (0) target = $region17
    $region16: #{tpu_custom_call.1} parent=1 // pred_region
      %s49 = ssub.s32 16384, 16384
      %50 = vsyncadd [#allocation10], %s49
      %s51 = sshll.u32 [#allocation9], 4
      %s52 = int_to_ptr.vmem [resolvable:$true] %s51
      %57 = dma.hbm_to_vmem [thread:$0]  %s3, 16384, %s52, [#allocation10], 64, 64, 4
    $region17: #{tpu_custom_call.1} parent=1 // pred_fallthru
      _
    // Predicated region
    $region18: #{tpu_custom_call.1} parent=1 // pred_check
      _
    $region19: #{tpu_custom_call.1} parent=1 // pred_check_branch
      %59 = sbr.rel (0) target = $region21
    $region20: #{tpu_custom_call.1} parent=1 // pred_region
      _
    $region21: #{tpu_custom_call.1} parent=1 // pred_fallthru
      _
    // Predicated region
    $region22: #{tpu_custom_call.1} parent=1 // pred_check
      _
    $region23: #{tpu_custom_call.1} parent=1 // pred_check_branch
      %61 = sbr.rel (0) target = $region25
    $region24: #{tpu_custom_call.1} parent=1 // pred_region
      %62 = dma.done [#allocation4], 64
    $region25: #{tpu_custom_call.1} parent=1 // pred_fallthru
      _
    // Predicated region
    $region26: #{tpu_custom_call.1} parent=1 // pred_check
      _
    $region27: #{tpu_custom_call.1} parent=1 // pred_check_branch
      %64 = sbr.rel (0) target = $region29
    $region28: #{tpu_custom_call.1} parent=1 // pred_region
      %65 = dma.done [#allocation7], 4096
    $region29: #{tpu_custom_call.1} parent=1 // pred_fallthru
      _
    // Predicated region
    $region30: #{tpu_custom_call.1} parent=1 // pred_check
      _
    $region31: #{tpu_custom_call.1} parent=1 // pred_check_branch
      %67 = sbr.rel (0) target = $region33
    $region32: #{tpu_custom_call.1} parent=1 // pred_region
      %68 = dma.done [#allocation7], 256
    $region33: #{tpu_custom_call.1} parent=1 // pred_fallthru
      _
    // Predicated region
    $region34: #{tpu_custom_call.1} parent=1 // pred_check
      _
    $region35: #{tpu_custom_call.1} parent=1 // pred_check_branch
      %70 = sbr.rel (0) target = $region37
    $region36: #{tpu_custom_call.1} parent=1 // pred_region
      %71 = dma.done [#allocation10], 16384
    $region37: #{tpu_custom_call.1} parent=1 // pred_fallthru
      _
    %p73 = scmp.eq.s32.totalorder 0, 0
    // Predicated region
    $region38: #{tpu_custom_call.1} parent=1 // pred_check
      %p74 = pneg %p73
    $region39: #{tpu_custom_call.1} parent=1 // pred_check_branch
      %76 = sbr.rel (%p74) target = $region41
    $region40: #{tpu_custom_call.1} parent=1 // pred_region
      %77 = vst [vmem:[#allocation2] sm:$0xff] 0.0
      %78 = vst [vmem:[#allocation2 + $0x8] sm:$0xff] 0.0
      %79 = vst [vmem:[#allocation2 + $0x10] sm:$0xff] 0.0
      %80 = vst [vmem:[#allocation2 + $0x18] sm:$0xff] 0.0
      %81 = vst [vmem:[#allocation2 + $0x20] sm:$0xff] 0.0
      %82 = vst [vmem:[#allocation2 + $0x28] sm:$0xff] 0.0
      %83 = vst [vmem:[#allocation2 + $0x30] sm:$0xff] 0.0
      %84 = vst [vmem:[#allocation2 + $0x38] sm:$0xff] 0.0
      %85 = vst [vmem:[#allocation2 + $0x40] sm:$0xff] 0.0
      %86 = vst [vmem:[#allocation2 + $0x48] sm:$0xff] 0.0
      %87 = vst [vmem:[#allocation2 + $0x50] sm:$0xff] 0.0
      %88 = vst [vmem:[#allocation2 + $0x58] sm:$0xff] 0.0
      %89 = vst [vmem:[#allocation2 + $0x60] sm:$0xff] 0.0
      %90 = vst [vmem:[#allocation2 + $0x68] sm:$0xff] 0.0
      %91 = vst [vmem:[#allocation2 + $0x70] sm:$0xff] 0.0
      %92 = vst [vmem:[#allocation2 + $0x78] sm:$0xff] 0.0
    $region41: #{tpu_custom_call.1} parent=1 // pred_fallthru
      _
    %v93 = vld [vmem:[#allocation2] sm:$0xff]
    %v94 = vld [vmem:[#allocation2 + $0x8] sm:$0xff]
    %v95 = vld [vmem:[#allocation2 + $0x10] sm:$0xff]
    %v96 = vld [vmem:[#allocation2 + $0x18] sm:$0xff]
    %v97 = vld [vmem:[#allocation2 + $0x20] sm:$0xff]
    %v98 = vld [vmem:[#allocation2 + $0x28] sm:$0xff]
    %v99 = vld [vmem:[#allocation2 + $0x30] sm:$0xff]
    %v100 = vld [vmem:[#allocation2 + $0x38] sm:$0xff]
    %v101 = vld [vmem:[#allocation2 + $0x40] sm:$0xff]
    %v102 = vld [vmem:[#allocation2 + $0x48] sm:$0xff]
    %v103 = vld [vmem:[#allocation2 + $0x50] sm:$0xff]
    %v104 = vld [vmem:[#allocation2 + $0x58] sm:$0xff]
    %v105 = vld [vmem:[#allocation2 + $0x60] sm:$0xff]
    %v106 = vld [vmem:[#allocation2 + $0x68] sm:$0xff]
    %v107 = vld [vmem:[#allocation2 + $0x70] sm:$0xff]
    %v108 = vld [vmem:[#allocation2 + $0x78] sm:$0xff]
    %v109 = vld [vmem:[#allocation3] sm:$0xf]
    %v110 = vld [vmem:[#allocation6] sm:$0xff]
    %v111 = vld [vmem:[#allocation6 + $0x8] sm:$0xff]
    %v112 = vld [vmem:[#allocation6 + $0x10] sm:$0xff]
    %v113 = vld [vmem:[#allocation6 + $0x18] sm:$0xff]
    %v114 = vld [vmem:[#allocation6 + $0x20] sm:$0xff]
    %v115 = vld [vmem:[#allocation6 + $0x28] sm:$0xff]
    %v116 = vld [vmem:[#allocation6 + $0x30] sm:$0xff]
    %v117 = vld [vmem:[#allocation6 + $0x38] sm:$0xff]
    %v118 = vld [vmem:[#allocation6 + $0x40] sm:$0xff]
    %v119 = vld [vmem:[#allocation6 + $0x48] sm:$0xff]
    %v120 = vld [vmem:[#allocation6 + $0x50] sm:$0xff]
    %v121 = vld [vmem:[#allocation6 + $0x58] sm:$0xff]
    %v122 = vld [vmem:[#allocation6 + $0x60] sm:$0xff]
    %v123 = vld [vmem:[#allocation6 + $0x68] sm:$0xff]
    %v124 = vld [vmem:[#allocation6 + $0x70] sm:$0xff]
    %v125 = vld [vmem:[#allocation6 + $0x78] sm:$0xff]
    %v126 = vld [vmem:[#allocation6 + $0x80] sm:$0xff]
    %v127 = vld [vmem:[#allocation6 + $0x88] sm:$0xff]
    %v128 = vld [vmem:[#allocation6 + $0x90] sm:$0xff]
    %v129 = vld [vmem:[#allocation6 + $0x98] sm:$0xff]
    %v130 = vld [vmem:[#allocation6 + $0xa0] sm:$0xff]
    %v131 = vld [vmem:[#allocation6 + $0xa8] sm:$0xff]
    %v132 = vld [vmem:[#allocation6 + $0xb0] sm:$0xff]
    %v133 = vld [vmem:[#allocation6 + $0xb8] sm:$0xff]
    %v134 = vld [vmem:[#allocation6 + $0xc0] sm:$0xff]
    %v135 = vld [vmem:[#allocation6 + $0xc8] sm:$0xff]
    %v136 = vld [vmem:[#allocation6 + $0xd0] sm:$0xff]
    %v137 = vld [vmem:[#allocation6 + $0xd8] sm:$0xff]
    %v138 = vld [vmem:[#allocation6 + $0xe0] sm:$0xff]
    %v139 = vld [vmem:[#allocation6 + $0xe8] sm:$0xff]
    %v140 = vld [vmem:[#allocation6 + $0xf0] sm:$0xff]
    %v141 = vld [vmem:[#allocation6 + $0xf8] sm:$0xff]
    %v174 = vunpack.c.l.b16 %v110
    %v175 = vunpack.c.h.b16 %v110
    %v176 = vunpack.c.l.b16 %v111
    %v177 = vunpack.c.h.b16 %v111
    %v178 = vunpack.c.l.b16 %v112
    %v179 = vunpack.c.h.b16 %v112
    %v180 = vunpack.c.l.b16 %v113
    %v181 = vunpack.c.h.b16 %v113
    %v182 = vunpack.c.l.b16 %v114
    %v183 = vunpack.c.h.b16 %v114
    %v184 = vunpack.c.l.b16 %v115
    %v185 = vunpack.c.h.b16 %v115
    %v186 = vunpack.c.l.b16 %v116
    %v187 = vunpack.c.h.b16 %v116
    %v188 = vunpack.c.l.b16 %v117
    %v189 = vunpack.c.h.b16 %v117
    %v190 = vunpack.c.l.b16 %v118
    %v191 = vunpack.c.h.b16 %v118
    %v192 = vunpack.c.l.b16 %v119
    %v193 = vunpack.c.h.b16 %v119
    %v194 = vunpack.c.l.b16 %v120
    %v195 = vunpack.c.h.b16 %v120
    %v196 = vunpack.c.l.b16 %v121
    %v197 = vunpack.c.h.b16 %v121
    %v198 = vunpack.c.l.b16 %v122
    %v199 = vunpack.c.h.b16 %v122
    %v200 = vunpack.c.l.b16 %v123
    %v201 = vunpack.c.h.b16 %v123
    %v202 = vunpack.c.l.b16 %v124
    %v203 = vunpack.c.h.b16 %v124
    %v204 = vunpack.c.l.b16 %v125
    %v205 = vunpack.c.h.b16 %v125
    %v206 = vunpack.c.l.b16 %v126
    %v207 = vunpack.c.h.b16 %v126
    %v208 = vunpack.c.l.b16 %v127
    %v209 = vunpack.c.h.b16 %v127
    %v210 = vunpack.c.l.b16 %v128
    %v211 = vunpack.c.h.b16 %v128
    %v212 = vunpack.c.l.b16 %v129
    %v213 = vunpack.c.h.b16 %v129
    %v214 = vunpack.c.l.b16 %v130
    %v215 = vunpack.c.h.b16 %v130
    %v216 = vunpack.c.l.b16 %v131
    %v217 = vunpack.c.h.b16 %v131
    %v218 = vunpack.c.l.b16 %v132
    %v219 = vunpack.c.h.b16 %v132
    %v220 = vunpack.c.l.b16 %v133
    %v221 = vunpack.c.h.b16 %v133
    %v222 = vunpack.c.l.b16 %v134
    %v223 = vunpack.c.h.b16 %v134
    %v224 = vunpack.c.l.b16 %v135
    %v225 = vunpack.c.h.b16 %v135
    %v226 = vunpack.c.l.b16 %v136
    %v227 = vunpack.c.h.b16 %v136
    %v228 = vunpack.c.l.b16 %v137
    %v229 = vunpack.c.h.b16 %v137
    %v230 = vunpack.c.l.b16 %v138
    %v231 = vunpack.c.h.b16 %v138
    %v232 = vunpack.c.l.b16 %v139
    %v233 = vunpack.c.h.b16 %v139
    %v234 = vunpack.c.l.b16 %v140
    %v235 = vunpack.c.h.b16 %v140
    %v236 = vunpack.c.l.b16 %v141
    %v237 = vunpack.c.h.b16 %v141
    %v238 = vpack.c.b16 %v190, %v174
    %v239 = vpack.c.b16 %v191, %v175
    %v240 = vpack.c.b16 %v192, %v176
    %v241 = vpack.c.b16 %v193, %v177
    %v242 = vpack.c.b16 %v194, %v178
    %v243 = vpack.c.b16 %v195, %v179
    %v244 = vpack.c.b16 %v196, %v180
    %v245 = vpack.c.b16 %v197, %v181
    %v246 = vpack.c.b16 %v198, %v182
    %v247 = vpack.c.b16 %v199, %v183
    %v248 = vpack.c.b16 %v200, %v184
    %v249 = vpack.c.b16 %v201, %v185
    %v250 = vpack.c.b16 %v202, %v186
    %v251 = vpack.c.b16 %v203, %v187
    %v252 = vpack.c.b16 %v204, %v188
    %v253 = vpack.c.b16 %v205, %v189
    %v254 = vpack.c.b16 %v222, %v206
    %v255 = vpack.c.b16 %v223, %v207
    %v256 = vpack.c.b16 %v224, %v208
    %v257 = vpack.c.b16 %v225, %v209
    %v258 = vpack.c.b16 %v226, %v210
    %v259 = vpack.c.b16 %v227, %v211
    %v260 = vpack.c.b16 %v228, %v212
    %v261 = vpack.c.b16 %v229, %v213
    %v262 = vpack.c.b16 %v230, %v214
    %v263 = vpack.c.b16 %v231, %v215
    %v264 = vpack.c.b16 %v232, %v216
    %v265 = vpack.c.b16 %v233, %v217
    %v266 = vpack.c.b16 %v234, %v218
    %v267 = vpack.c.b16 %v235, %v219
    %v268 = vpack.c.b16 %v236, %v220
    %v269 = vpack.c.b16 %v237, %v221
    %vm302 = vcmask 261120
    %v304 = vsel %vm302, %v109, 0
    %306 = vmatprep.subr.bf16.mxu0 0
    %307 = vmatpush1.bf16.msra.mxu0 0
    %308 = vmatprep.subr.bf16.mxu0 0
    %309 = vmatpush1.bf16.msra.mxu0 0
    %310 = vmatprep.subr.bf16.mxu0 0
    %311 = vmatpush1.bf16.msra.mxu0 0
    %312 = vmatprep.subr.bf16.mxu0 0
    %313 = vmatpush1.bf16.msra.mxu0 0
    %314 = vmatprep.subr.bf16.mxu0 0
    %315 = vmatpush1.bf16.msra.mxu0 0
    %316 = vmatprep.subr.bf16.mxu0 0
    %317 = vmatpush1.bf16.msra.mxu0 0
    %318 = vmatprep.subr.bf16.mxu0 %v255
    %319 = vmatpush1.bf16.msra.mxu0 %v254
    %320 = vmatprep.subr.bf16.mxu0 %v239
    %321 = vmatpush1.bf16.msra.mxu0 %v238
    %322 = vmatprep.subr.bf16.mxu0 0
    %323 = vmatpush2.bf16.msra.mxu0 0
    %324 = vmatprep.subr.bf16.mxu0 0
    %325 = vmatpush2.bf16.msra.mxu0 0
    %326 = vmatprep.subr.bf16.mxu0 0
    %327 = vmatpush2.bf16.msra.mxu0 0
    %328 = vmatprep.subr.bf16.mxu0 0
    %329 = vmatpush2.bf16.msra.mxu0 0
    %330 = vmatprep.subr.bf16.mxu0 0
    %331 = vmatpush2.bf16.msra.mxu0 0
    %332 = vmatprep.subr.bf16.mxu0 0
    %333 = vmatpush2.bf16.msra.mxu0 0
    %334 = vmatprep.subr.bf16.mxu0 0
    %335 = vmatpush2.bf16.msra.mxu0 0
    %336 = vmatprep.subr.bf16.mxu0 0
    %337 = vmatpush2.bf16.msra.mxu0 0
    %338 = vmatprep.mubr.bf16.mxu0 0
    %339 = vmatmul.mubr.bf16.gmra.mxu0 %v304
    %v340 = vpop.f32.mrf.mxu0
    %v341 = vadd.f32 0.0, %v340
    %v342 = vpop.f32.mrf.mxu0
    %v343 = vadd.f32 0.0, %v342
    %v344 = vpop.f32.mrf.mxu0
    %v345 = vpop.f32.mrf.mxu0
    %346 = vdwg.mxu0
    %347 = vmatprep.subr.bf16.mxu0 0
    %348 = vmatpush1.bf16.msra.mxu0 0
    %349 = vmatprep.subr.bf16.mxu0 0
    %350 = vmatpush1.bf16.msra.mxu0 0
    %351 = vmatprep.subr.bf16.mxu0 0
    %352 = vmatpush1.bf16.msra.mxu0 0
    %353 = vmatprep.subr.bf16.mxu0 0
    %354 = vmatpush1.bf16.msra.mxu0 0
    %355 = vmatprep.subr.bf16.mxu0 0
    %356 = vmatpush1.bf16.msra.mxu0 0
    %357 = vmatprep.subr.bf16.mxu0 0
    %358 = vmatpush1.bf16.msra.mxu0 0
    %359 = vmatprep.subr.bf16.mxu0 %v257
    %360 = vmatpush1.bf16.msra.mxu0 %v256
    %361 = vmatprep.subr.bf16.mxu0 %v241
    %362 = vmatpush1.bf16.msra.mxu0 %v240
    %363 = vmatprep.subr.bf16.mxu0 0
    %364 = vmatpush2.bf16.msra.mxu0 0
    %365 = vmatprep.subr.bf16.mxu0 0
    %366 = vmatpush2.bf16.msra.mxu0 0
    %367 = vmatprep.subr.bf16.mxu0 0
    %368 = vmatpush2.bf16.msra.mxu0 0
    %369 = vmatprep.subr.bf16.mxu0 0
    %370 = vmatpush2.bf16.msra.mxu0 0
    %371 = vmatprep.subr.bf16.mxu0 0
    %372 = vmatpush2.bf16.msra.mxu0 0
    %373 = vmatprep.subr.bf16.mxu0 0
    %374 = vmatpush2.bf16.msra.mxu0 0
    %375 = vmatprep.subr.bf16.mxu0 0
    %376 = vmatpush2.bf16.msra.mxu0 0
    %377 = vmatprep.subr.bf16.mxu0 0
    %378 = vmatpush2.bf16.msra.mxu0 0
    %379 = vmatprep.mubr.bf16.mxu0 0
    %380 = vmatmul.mubr.bf16.gmra.mxu0 %v304
    %v381 = vpop.f32.mrf.mxu0
    %v382 = vadd.f32 0.0, %v381
    %v383 = vpop.f32.mrf.mxu0
    %v384 = vadd.f32 0.0, %v383
    %v385 = vpop.f32.mrf.mxu0
    %v386 = vpop.f32.mrf.mxu0
    %387 = vdwg.mxu0
    %388 = vmatprep.subr.bf16.mxu0 0
    %389 = vmatpush1.bf16.msra.mxu0 0
    %390 = vmatprep.subr.bf16.mxu0 0
    %391 = vmatpush1.bf16.msra.mxu0 0
    %392 = vmatprep.subr.bf16.mxu0 0
    %393 = vmatpush1.bf16.msra.mxu0 0
    %394 = vmatprep.subr.bf16.mxu0 0
    %395 = vmatpush1.bf16.msra.mxu0 0
    %396 = vmatprep.subr.bf16.mxu0 0
    %397 = vmatpush1.bf16.msra.mxu0 0
    %398 = vmatprep.subr.bf16.mxu0 0
    %399 = vmatpush1.bf16.msra.mxu0 0
    %400 = vmatprep.subr.bf16.mxu0 %v259
    %401 = vmatpush1.bf16.msra.mxu0 %v258
    %402 = vmatprep.subr.bf16.mxu0 %v243
    %403 = vmatpush1.bf16.msra.mxu0 %v242
    %404 = vmatprep.subr.bf16.mxu0 0
    %405 = vmatpush2.bf16.msra.mxu0 0
    %406 = vmatprep.subr.bf16.mxu0 0
    %407 = vmatpush2.bf16.msra.mxu0 0
    %408 = vmatprep.subr.bf16.mxu0 0
    %409 = vmatpush2.bf16.msra.mxu0 0
    %410 = vmatprep.subr.bf16.mxu0 0
    %411 = vmatpush2.bf16.msra.mxu0 0
    %412 = vmatprep.subr.bf16.mxu0 0
    %413 = vmatpush2.bf16.msra.mxu0 0
    %414 = vmatprep.subr.bf16.mxu0 0
    %415 = vmatpush2.bf16.msra.mxu0 0
    %416 = vmatprep.subr.bf16.mxu0 0
    %417 = vmatpush2.bf16.msra.mxu0 0
    %418 = vmatprep.subr.bf16.mxu0 0
    %419 = vmatpush2.bf16.msra.mxu0 0
    %420 = vmatprep.mubr.bf16.mxu0 0
    %421 = vmatmul.mubr.bf16.gmra.mxu0 %v304
    %v422 = vpop.f32.mrf.mxu0
    %v423 = vadd.f32 0.0, %v422
    %v424 = vpop.f32.mrf.mxu0
    %v425 = vadd.f32 0.0, %v424
    %v426 = vpop.f32.mrf.mxu0
    %v427 = vpop.f32.mrf.mxu0
    %428 = vdwg.mxu0
    %429 = vmatprep.subr.bf16.mxu0 0
    %430 = vmatpush1.bf16.msra.mxu0 0
    %431 = vmatprep.subr.bf16.mxu0 0
    %432 = vmatpush1.bf16.msra.mxu0 0
    %433 = vmatprep.subr.bf16.mxu0 0
    %434 = vmatpush1.bf16.msra.mxu0 0
    %435 = vmatprep.subr.bf16.mxu0 0
    %436 = vmatpush1.bf16.msra.mxu0 0
    %437 = vmatprep.subr.bf16.mxu0 0
    %438 = vmatpush1.bf16.msra.mxu0 0
    %439 = vmatprep.subr.bf16.mxu0 0
    %440 = vmatpush1.bf16.msra.mxu0 0
    %441 = vmatprep.subr.bf16.mxu0 %v261
    %442 = vmatpush1.bf16.msra.mxu0 %v260
    %443 = vmatprep.subr.bf16.mxu0 %v245
    %444 = vmatpush1.bf16.msra.mxu0 %v244
    %445 = vmatprep.subr.bf16.mxu0 0
    %446 = vmatpush2.bf16.msra.mxu0 0
    %447 = vmatprep.subr.bf16.mxu0 0
    %448 = vmatpush2.bf16.msra.mxu0 0
    %449 = vmatprep.subr.bf16.mxu0 0
    %450 = vmatpush2.bf16.msra.mxu0 0
    %451 = vmatprep.subr.bf16.mxu0 0
    %452 = vmatpush2.bf16.msra.mxu0 0
    %453 = vmatprep.subr.bf16.mxu0 0
    %454 = vmatpush2.bf16.msra.mxu0 0
    %455 = vmatprep.subr.bf16.mxu0 0
    %456 = vmatpush2.bf16.msra.mxu0 0
    %457 = vmatprep.subr.bf16.mxu0 0
    %458 = vmatpush2.bf16.msra.mxu0 0
    %459 = vmatprep.subr.bf16.mxu0 0
    %460 = vmatpush2.bf16.msra.mxu0 0
    %461 = vmatprep.mubr.bf16.mxu0 0
    %462 = vmatmul.mubr.bf16.gmra.mxu0 %v304
    %v463 = vpop.f32.mrf.mxu0
    %v464 = vadd.f32 0.0, %v463
    %v465 = vpop.f32.mrf.mxu0
    %v466 = vadd.f32 0.0, %v465
    %v467 = vpop.f32.mrf.mxu0
    %v468 = vpop.f32.mrf.mxu0
    %469 = vdwg.mxu0
    %470 = vmatprep.subr.bf16.mxu0 0
    %471 = vmatpush1.bf16.msra.mxu0 0
    %472 = vmatprep.subr.bf16.mxu0 0
    %473 = vmatpush1.bf16.msra.mxu0 0
    %474 = vmatprep.subr.bf16.mxu0 0
    %475 = vmatpush1.bf16.msra.mxu0 0
    %476 = vmatprep.subr.bf16.mxu0 0
    %477 = vmatpush1.bf16.msra.mxu0 0
    %478 = vmatprep.subr.bf16.mxu0 0
    %479 = vmatpush1.bf16.msra.mxu0 0
    %480 = vmatprep.subr.bf16.mxu0 0
    %481 = vmatpush1.bf16.msra.mxu0 0
    %482 = vmatprep.subr.bf16.mxu0 %v263
    %483 = vmatpush1.bf16.msra.mxu0 %v262
    %484 = vmatprep.subr.bf16.mxu0 %v247
    %485 = vmatpush1.bf16.msra.mxu0 %v246
    %486 = vmatprep.subr.bf16.mxu0 0
    %487 = vmatpush2.bf16.msra.mxu0 0
    %488 = vmatprep.subr.bf16.mxu0 0
    %489 = vmatpush2.bf16.msra.mxu0 0
    %490 = vmatprep.subr.bf16.mxu0 0
    %491 = vmatpush2.bf16.msra.mxu0 0
    %492 = vmatprep.subr.bf16.mxu0 0
    %493 = vmatpush2.bf16.msra.mxu0 0
    %494 = vmatprep.subr.bf16.mxu0 0
    %495 = vmatpush2.bf16.msra.mxu0 0
    %496 = vmatprep.subr.bf16.mxu0 0
    %497 = vmatpush2.bf16.msra.mxu0 0
    %498 = vmatprep.subr.bf16.mxu0 0
    %499 = vmatpush2.bf16.msra.mxu0 0
    %500 = vmatprep.subr.bf16.mxu0 0
    %501 = vmatpush2.bf16.msra.mxu0 0
    %502 = vmatprep.mubr.bf16.mxu0 0
    %503 = vmatmul.mubr.bf16.gmra.mxu0 %v304
    %v504 = vpop.f32.mrf.mxu0
    %v505 = vadd.f32 0.0, %v504
    %v506 = vpop.f32.mrf.mxu0
    %v507 = vadd.f32 0.0, %v506
    %v508 = vpop.f32.mrf.mxu0
    %v509 = vpop.f32.mrf.mxu0
    %510 = vdwg.mxu0
    %511 = vmatprep.subr.bf16.mxu0 0
    %512 = vmatpush1.bf16.msra.mxu0 0
    %513 = vmatprep.subr.bf16.mxu0 0
    %514 = vmatpush1.bf16.msra.mxu0 0
    %515 = vmatprep.subr.bf16.mxu0 0
    %516 = vmatpush1.bf16.msra.mxu0 0
    %517 = vmatprep.subr.bf16.mxu0 0
    %518 = vmatpush1.bf16.msra.mxu0 0
    %519 = vmatprep.subr.bf16.mxu0 0
    %520 = vmatpush1.bf16.msra.mxu0 0
    %521 = vmatprep.subr.bf16.mxu0 0
    %522 = vmatpush1.bf16.msra.mxu0 0
    %523 = vmatprep.subr.bf16.mxu0 %v265
    %524 = vmatpush1.bf16.msra.mxu0 %v264
    %525 = vmatprep.subr.bf16.mxu0 %v249
    %526 = vmatpush1.bf16.msra.mxu0 %v248
    %527 = vmatprep.subr.bf16.mxu0 0
    %528 = vmatpush2.bf16.msra.mxu0 0
    %529 = vmatprep.subr.bf16.mxu0 0
    %530 = vmatpush2.bf16.msra.mxu0 0
    %531 = vmatprep.subr.bf16.mxu0 0
    %532 = vmatpush2.bf16.msra.mxu0 0
    %533 = vmatprep.subr.bf16.mxu0 0
    %534 = vmatpush2.bf16.msra.mxu0 0
    %535 = vmatprep.subr.bf16.mxu0 0
    %536 = vmatpush2.bf16.msra.mxu0 0
    %537 = vmatprep.subr.bf16.mxu0 0
    %538 = vmatpush2.bf16.msra.mxu0 0
    %539 = vmatprep.subr.bf16.mxu0 0
    %540 = vmatpush2.bf16.msra.mxu0 0
    %541 = vmatprep.subr.bf16.mxu0 0
    %542 = vmatpush2.bf16.msra.mxu0 0
    %543 = vmatprep.mubr.bf16.mxu0 0
    %544 = vmatmul.mubr.bf16.gmra.mxu0 %v304
    %v545 = vpop.f32.mrf.mxu0
    %v546 = vadd.f32 0.0, %v545
    %v547 = vpop.f32.mrf.mxu0
    %v548 = vadd.f32 0.0, %v547
    %v549 = vpop.f32.mrf.mxu0
    %v550 = vpop.f32.mrf.mxu0
    %551 = vdwg.mxu0
    %552 = vmatprep.subr.bf16.mxu0 0
    %553 = vmatpush1.bf16.msra.mxu0 0
    %554 = vmatprep.subr.bf16.mxu0 0
    %555 = vmatpush1.bf16.msra.mxu0 0
    %556 = vmatprep.subr.bf16.mxu0 0
    %557 = vmatpush1.bf16.msra.mxu0 0
    %558 = vmatprep.subr.bf16.mxu0 0
    %559 = vmatpush1.bf16.msra.mxu0 0
    %560 = vmatprep.subr.bf16.mxu0 0
    %561 = vmatpush1.bf16.msra.mxu0 0
    %562 = vmatprep.subr.bf16.mxu0 0
    %563 = vmatpush1.bf16.msra.mxu0 0
    %564 = vmatprep.subr.bf16.mxu0 %v267
    %565 = vmatpush1.bf16.msra.mxu0 %v266
    %566 = vmatprep.subr.bf16.mxu0 %v251
    %567 = vmatpush1.bf16.msra.mxu0 %v250
    %568 = vmatprep.subr.bf16.mxu0 0
    %569 = vmatpush2.bf16.msra.mxu0 0
    %570 = vmatprep.subr.bf16.mxu0 0
    %571 = vmatpush2.bf16.msra.mxu0 0
    %572 = vmatprep.subr.bf16.mxu0 0
    %573 = vmatpush2.bf16.msra.mxu0 0
    %574 = vmatprep.subr.bf16.mxu0 0
    %575 = vmatpush2.bf16.msra.mxu0 0
    %576 = vmatprep.subr.bf16.mxu0 0
    %577 = vmatpush2.bf16.msra.mxu0 0
    %578 = vmatprep.subr.bf16.mxu0 0
    %579 = vmatpush2.bf16.msra.mxu0 0
    %580 = vmatprep.subr.bf16.mxu0 0
    %581 = vmatpush2.bf16.msra.mxu0 0
    %582 = vmatprep.subr.bf16.mxu0 0
    %583 = vmatpush2.bf16.msra.mxu0 0
    %584 = vmatprep.mubr.bf16.mxu0 0
    %585 = vmatmul.mubr.bf16.gmra.mxu0 %v304
    %v586 = vpop.f32.mrf.mxu0
    %v587 = vadd.f32 0.0, %v586
    %v588 = vpop.f32.mrf.mxu0
    %v589 = vadd.f32 0.0, %v588
    %v590 = vpop.f32.mrf.mxu0
    %v591 = vpop.f32.mrf.mxu0
    %592 = vdwg.mxu0
    %593 = vmatprep.subr.bf16.mxu0 0
    %594 = vmatpush1.bf16.msra.mxu0 0
    %595 = vmatprep.subr.bf16.mxu0 0
    %596 = vmatpush1.bf16.msra.mxu0 0
    %597 = vmatprep.subr.bf16.mxu0 0
    %598 = vmatpush1.bf16.msra.mxu0 0
    %599 = vmatprep.subr.bf16.mxu0 0
    %600 = vmatpush1.bf16.msra.mxu0 0
    %601 = vmatprep.subr.bf16.mxu0 0
    %602 = vmatpush1.bf16.msra.mxu0 0
    %603 = vmatprep.subr.bf16.mxu0 0
    %604 = vmatpush1.bf16.msra.mxu0 0
    %605 = vmatprep.subr.bf16.mxu0 %v269
    %606 = vmatpush1.bf16.msra.mxu0 %v268
    %607 = vmatprep.subr.bf16.mxu0 %v253
    %608 = vmatpush1.bf16.msra.mxu0 %v252
    %609 = vmatprep.subr.bf16.mxu0 0
    %610 = vmatpush2.bf16.msra.mxu0 0
    %611 = vmatprep.subr.bf16.mxu0 0
    %612 = vmatpush2.bf16.msra.mxu0 0
    %613 = vmatprep.subr.bf16.mxu0 0
    %614 = vmatpush2.bf16.msra.mxu0 0
    %615 = vmatprep.subr.bf16.mxu0 0
    %616 = vmatpush2.bf16.msra.mxu0 0
    %617 = vmatprep.subr.bf16.mxu0 0
    %618 = vmatpush2.bf16.msra.mxu0 0
    %619 = vmatprep.subr.bf16.mxu0 0
    %620 = vmatpush2.bf16.msra.mxu0 0
    %621 = vmatprep.subr.bf16.mxu0 0
    %622 = vmatpush2.bf16.msra.mxu0 0
    %623 = vmatprep.subr.bf16.mxu0 0
    %624 = vmatpush2.bf16.msra.mxu0 0
    %625 = vmatprep.mubr.bf16.mxu0 0
    %626 = vmatmul.mubr.bf16.gmra.mxu0 %v304
    %v627 = vpop.f32.mrf.mxu0
    %v628 = vadd.f32 0.0, %v627
    %v629 = vpop.f32.mrf.mxu0
    %v630 = vadd.f32 0.0, %v629
    %v631 = vpop.f32.mrf.mxu0
    %v632 = vpop.f32.mrf.mxu0
    %633 = vdwg.mxu0
    %v634 = vadd.f32 %v93, %v341
    %v635 = vadd.f32 %v94, %v343
    %v636 = vadd.f32 %v95, %v382
    %v637 = vadd.f32 %v96, %v384
    %v638 = vadd.f32 %v97, %v423
    %v639 = vadd.f32 %v98, %v425
    %v640 = vadd.f32 %v99, %v464
    %v641 = vadd.f32 %v100, %v466
    %v642 = vadd.f32 %v101, %v505
    %v643 = vadd.f32 %v102, %v507
    %v644 = vadd.f32 %v103, %v546
    %v645 = vadd.f32 %v104, %v548
    %v646 = vadd.f32 %v105, %v587
    %v647 = vadd.f32 %v106, %v589
    %v648 = vadd.f32 %v107, %v628
    %v649 = vadd.f32 %v108, %v630
    %650 = vst [vmem:[#allocation2] sm:$0xff] %v634
    %651 = vst [vmem:[#allocation2 + $0x8] sm:$0xff] %v635
    %652 = vst [vmem:[#allocation2 + $0x10] sm:$0xff] %v636
    %653 = vst [vmem:[#allocation2 + $0x18] sm:$0xff] %v637
    %654 = vst [vmem:[#allocation2 + $0x20] sm:$0xff] %v638
    %655 = vst [vmem:[#allocation2 + $0x28] sm:$0xff] %v639
    %656 = vst [vmem:[#allocation2 + $0x30] sm:$0xff] %v640
    %657 = vst [vmem:[#allocation2 + $0x38] sm:$0xff] %v641
    %658 = vst [vmem:[#allocation2 + $0x40] sm:$0xff] %v642
    %659 = vst [vmem:[#allocation2 + $0x48] sm:$0xff] %v643
    %660 = vst [vmem:[#allocation2 + $0x50] sm:$0xff] %v644
    %661 = vst [vmem:[#allocation2 + $0x58] sm:$0xff] %v645
    %662 = vst [vmem:[#allocation2 + $0x60] sm:$0xff] %v646
    %663 = vst [vmem:[#allocation2 + $0x68] sm:$0xff] %v647
    %664 = vst [vmem:[#allocation2 + $0x70] sm:$0xff] %v648
    %665 = vst [vmem:[#allocation2 + $0x78] sm:$0xff] %v649
    // Predicated region
    $region42: #{tpu_custom_call.1} parent=1 // pred_check
      %p666 = pneg %p73
    $region43: #{tpu_custom_call.1} parent=1 // pred_check_branch
      %668 = sbr.rel (%p666) target = $region45
    $region44: #{tpu_custom_call.1} parent=1 // pred_region
      %v669 = vld [vmem:[#allocation2] sm:$0xff]
      %v670 = vld [vmem:[#allocation2 + $0x8] sm:$0xff]
      %v671 = vld [vmem:[#allocation2 + $0x10] sm:$0xff]
      %v672 = vld [vmem:[#allocation2 + $0x18] sm:$0xff]
      %v673 = vld [vmem:[#allocation2 + $0x20] sm:$0xff]
      %v674 = vld [vmem:[#allocation2 + $0x28] sm:$0xff]
      %v675 = vld [vmem:[#allocation2 + $0x30] sm:$0xff]
      %v676 = vld [vmem:[#allocation2 + $0x38] sm:$0xff]
      %v677 = vld [vmem:[#allocation2 + $0x40] sm:$0xff]
      %v678 = vld [vmem:[#allocation2 + $0x48] sm:$0xff]
      %v679 = vld [vmem:[#allocation2 + $0x50] sm:$0xff]
      %v680 = vld [vmem:[#allocation2 + $0x58] sm:$0xff]
      %v681 = vld [vmem:[#allocation2 + $0x60] sm:$0xff]
      %v682 = vld [vmem:[#allocation2 + $0x68] sm:$0xff]
      %v683 = vld [vmem:[#allocation2 + $0x70] sm:$0xff]
      %v684 = vld [vmem:[#allocation2 + $0x78] sm:$0xff]
      %v685 = vld [vmem:[#allocation8] sm:$0xff]
      %v686 = vld [vmem:[#allocation8 + $0x8] sm:$0xff]
      %v689 = vlaneseq
      %v690 = vshrl.u32 %v689, 7
      %v691 = vsub.s32 0, %v690
      %v692 = vrot.slane %v685, %v691
      %v693 = vlaneseq
      %v694 = vshrl.u32 %v693, 7
      %v695 = vsub.s32 1, %v694
      %v696 = vrot.slane %v685, %v695
      %v697 = vlaneseq
      %v698 = vshrl.u32 %v697, 7
      %v699 = vsub.s32 2, %v698
      %v700 = vrot.slane %v685, %v699
      %v701 = vlaneseq
      %v702 = vshrl.u32 %v701, 7
      %v703 = vsub.s32 3, %v702
      %v704 = vrot.slane %v685, %v703
      %v705 = vlaneseq
      %v706 = vshrl.u32 %v705, 7
      %v707 = vsub.s32 4, %v706
      %v708 = vrot.slane %v685, %v707
      %v709 = vlaneseq
      %v710 = vshrl.u32 %v709, 7
      %v711 = vsub.s32 5, %v710
      %v712 = vrot.slane %v685, %v711
      %v713 = vlaneseq
      %v714 = vshrl.u32 %v713, 7
      %v715 = vsub.s32 6, %v714
      %v716 = vrot.slane %v685, %v715
      %v717 = vlaneseq
      %v718 = vshrl.u32 %v717, 7
      %v719 = vsub.s32 7, %v718
      %v720 = vrot.slane %v685, %v719
      %v721 = vlaneseq
      %v722 = vshrl.u32 %v721, 7
      %v723 = vsub.s32 0, %v722
      %v724 = vrot.slane %v686, %v723
      %v725 = vlaneseq
      %v726 = vshrl.u32 %v725, 7
      %v727 = vsub.s32 1, %v726
      %v728 = vrot.slane %v686, %v727
      %v729 = vlaneseq
      %v730 = vshrl.u32 %v729, 7
      %v731 = vsub.s32 2, %v730
      %v732 = vrot.slane %v686, %v731
      %v733 = vlaneseq
      %v734 = vshrl.u32 %v733, 7
      %v735 = vsub.s32 3, %v734
      %v736 = vrot.slane %v686, %v735
      %v737 = vlaneseq
      %v738 = vshrl.u32 %v737, 7
      %v739 = vsub.s32 4, %v738
      %v740 = vrot.slane %v686, %v739
      %v741 = vlaneseq
      %v742 = vshrl.u32 %v741, 7
      %v743 = vsub.s32 5, %v742
      %v744 = vrot.slane %v686, %v743
      %v745 = vlaneseq
      %v746 = vshrl.u32 %v745, 7
      %v747 = vsub.s32 6, %v746
      %v748 = vrot.slane %v686, %v747
      %v749 = vlaneseq
      %v750 = vshrl.u32 %v749, 7
      %v751 = vsub.s32 7, %v750
      %v752 = vrot.slane %v686, %v751
      %v769 = vadd.f32 %v669, %v692
      %v770 = vadd.f32 %v670, %v696
      %v771 = vadd.f32 %v671, %v700
      %v772 = vadd.f32 %v672, %v704
      %v773 = vadd.f32 %v673, %v708
      %v774 = vadd.f32 %v674, %v712
      %v775 = vadd.f32 %v675, %v716
      %v776 = vadd.f32 %v676, %v720
      %v777 = vadd.f32 %v677, %v724
      %v778 = vadd.f32 %v678, %v728
      %v779 = vadd.f32 %v679, %v732
      %v780 = vadd.f32 %v680, %v736
      %v781 = vadd.f32 %v681, %v740
      %v782 = vadd.f32 %v682, %v744
      %v783 = vadd.f32 %v683, %v748
      %v784 = vadd.f32 %v684, %v752
      %v785 = vpack.c.bf16 %v769, %v769
      %v786 = vpack.c.bf16 %v770, %v770
      %v787 = vpack.c.bf16 %v771, %v771
      %v788 = vpack.c.bf16 %v772, %v772
      %v789 = vpack.c.bf16 %v773, %v773
      %v790 = vpack.c.bf16 %v774, %v774
      %v791 = vpack.c.bf16 %v775, %v775
      %v792 = vpack.c.bf16 %v776, %v776
      %v793 = vpack.c.bf16 %v777, %v777
      %v794 = vpack.c.bf16 %v778, %v778
      %v795 = vpack.c.bf16 %v779, %v779
      %v796 = vpack.c.bf16 %v780, %v780
      %v797 = vpack.c.bf16 %v781, %v781
      %v798 = vpack.c.bf16 %v782, %v782
      %v799 = vpack.c.bf16 %v783, %v783
      %v800 = vpack.c.bf16 %v784, %v784
      %v801 = vld [vmem:[#allocation9] sm:$0xf]
      %v802 = vld [vmem:[#allocation9 + $0x4] sm:$0xf]
      %v803 = vld [vmem:[#allocation9 + $0x8] sm:$0xf]
      %v804 = vld [vmem:[#allocation9 + $0xc] sm:$0xf]
      %v805 = vld [vmem:[#allocation9 + $0x10] sm:$0xf]
      %v806 = vld [vmem:[#allocation9 + $0x14] sm:$0xf]
      %v807 = vld [vmem:[#allocation9 + $0x18] sm:$0xf]
      %v808 = vld [vmem:[#allocation9 + $0x1c] sm:$0xf]
      %v809 = vld [vmem:[#allocation9 + $0x20] sm:$0xf]
      %v810 = vld [vmem:[#allocation9 + $0x24] sm:$0xf]
      %v811 = vld [vmem:[#allocation9 + $0x28] sm:$0xf]
      %v812 = vld [vmem:[#allocation9 + $0x2c] sm:$0xf]
      %v813 = vld [vmem:[#allocation9 + $0x30] sm:$0xf]
      %v814 = vld [vmem:[#allocation9 + $0x34] sm:$0xf]
      %v815 = vld [vmem:[#allocation9 + $0x38] sm:$0xf]
      %v816 = vld [vmem:[#allocation9 + $0x3c] sm:$0xf]
      %v817 = vld [vmem:[#allocation9 + $0x40] sm:$0xf]
      %v818 = vld [vmem:[#allocation9 + $0x44] sm:$0xf]
      %v819 = vld [vmem:[#allocation9 + $0x48] sm:$0xf]
      %v820 = vld [vmem:[#allocation9 + $0x4c] sm:$0xf]
      %v821 = vld [vmem:[#allocation9 + $0x50] sm:$0xf]
      %v822 = vld [vmem:[#allocation9 + $0x54] sm:$0xf]
      %v823 = vld [vmem:[#allocation9 + $0x58] sm:$0xf]
      %v824 = vld [vmem:[#allocation9 + $0x5c] sm:$0xf]
      %v825 = vld [vmem:[#allocation9 + $0x60] sm:$0xf]
      %v826 = vld [vmem:[#allocation9 + $0x64] sm:$0xf]
      %v827 = vld [vmem:[#allocation9 + $0x68] sm:$0xf]
      %v828 = vld [vmem:[#allocation9 + $0x6c] sm:$0xf]
      %v829 = vld [vmem:[#allocation9 + $0x70] sm:$0xf]
      %v830 = vld [vmem:[#allocation9 + $0x74] sm:$0xf]
      %v831 = vld [vmem:[#allocation9 + $0x78] sm:$0xf]
      %v832 = vld [vmem:[#allocation9 + $0x7c] sm:$0xf]
      %v833 = vld [vmem:[#allocation9 + $0x80] sm:$0xf]
      %v834 = vld [vmem:[#allocation9 + $0x84] sm:$0xf]
      %v835 = vld [vmem:[#allocation9 + $0x88] sm:$0xf]
      %v836 = vld [vmem:[#allocation9 + $0x8c] sm:$0xf]
      %v837 = vld [vmem:[#allocation9 + $0x90] sm:$0xf]
      %v838 = vld [vmem:[#allocation9 + $0x94] sm:$0xf]
      %v839 = vld [vmem:[#allocation9 + $0x98] sm:$0xf]
      %v840 = vld [vmem:[#allocation9 + $0x9c] sm:$0xf]
      %v841 = vld [vmem:[#allocation9 + $0xa0] sm:$0xf]
      %v842 = vld [vmem:[#allocation9 + $0xa4] sm:$0xf]
      %v843 = vld [vmem:[#allocation9 + $0xa8] sm:$0xf]
      %v844 = vld [vmem:[#allocation9 + $0xac] sm:$0xf]
      %v845 = vld [vmem:[#allocation9 + $0xb0] sm:$0xf]
      %v846 = vld [vmem:[#allocation9 + $0xb4] sm:$0xf]
      %v847 = vld [vmem:[#allocation9 + $0xb8] sm:$0xf]
      %v848 = vld [vmem:[#allocation9 + $0xbc] sm:$0xf]
      %v849 = vld [vmem:[#allocation9 + $0xc0] sm:$0xf]
      %v850 = vld [vmem:[#allocation9 + $0xc4] sm:$0xf]
      %v851 = vld [vmem:[#allocation9 + $0xc8] sm:$0xf]
      %v852 = vld [vmem:[#allocation9 + $0xcc] sm:$0xf]
      %v853 = vld [vmem:[#allocation9 + $0xd0] sm:$0xf]
      %v854 = vld [vmem:[#allocation9 + $0xd4] sm:$0xf]
      %v855 = vld [vmem:[#allocation9 + $0xd8] sm:$0xf]
      %v856 = vld [vmem:[#allocation9 + $0xdc] sm:$0xf]
      %v857 = vld [vmem:[#allocation9 + $0xe0] sm:$0xf]
      %v858 = vld [vmem:[#allocation9 + $0xe4] sm:$0xf]
      %v859 = vld [vmem:[#allocation9 + $0xe8] sm:$0xf]
      %v860 = vld [vmem:[#allocation9 + $0xec] sm:$0xf]
      %v861 = vld [vmem:[#allocation9 + $0xf0] sm:$0xf]
      %v862 = vld [vmem:[#allocation9 + $0xf4] sm:$0xf]
      %v863 = vld [vmem:[#allocation9 + $0xf8] sm:$0xf]
      %v864 = vld [vmem:[#allocation9 + $0xfc] sm:$0xf]
      %v865 = vld [vmem:[#allocation9 + $0x100] sm:$0xf]
      %v866 = vld [vmem:[#allocation9 + $0x104] sm:$0xf]
      %v867 = vld [vmem:[#allocation9 + $0x108] sm:$0xf]
      %v868 = vld [vmem:[#allocation9 + $0x10c] sm:$0xf]
      %v869 = vld [vmem:[#allocation9 + $0x110] sm:$0xf]
      %v870 = vld [vmem:[#allocation9 + $0x114] sm:$0xf]
      %v871 = vld [vmem:[#allocation9 + $0x118] sm:$0xf]
      %v872 = vld [vmem:[#allocation9 + $0x11c] sm:$0xf]
      %v873 = vld [vmem:[#allocation9 + $0x120] sm:$0xf]
      %v874 = vld [vmem:[#allocation9 + $0x124] sm:$0xf]
      %v875 = vld [vmem:[#allocation9 + $0x128] sm:$0xf]
      %v876 = vld [vmem:[#allocation9 + $0x12c] sm:$0xf]
      %v877 = vld [vmem:[#allocation9 + $0x130] sm:$0xf]
      %v878 = vld [vmem:[#allocation9 + $0x134] sm:$0xf]
      %v879 = vld [vmem:[#allocation9 + $0x138] sm:$0xf]
      %v880 = vld [vmem:[#allocation9 + $0x13c] sm:$0xf]
      %v881 = vld [vmem:[#allocation9 + $0x140] sm:$0xf]
      %v882 = vld [vmem:[#allocation9 + $0x144] sm:$0xf]
      %v883 = vld [vmem:[#allocation9 + $0x148] sm:$0xf]
      %v884 = vld [vmem:[#allocation9 + $0x14c] sm:$0xf]
      %v885 = vld [vmem:[#allocation9 + $0x150] sm:$0xf]
      %v886 = vld [vmem:[#allocation9 + $0x154] sm:$0xf]
      %v887 = vld [vmem:[#allocation9 + $0x158] sm:$0xf]
      %v888 = vld [vmem:[#allocation9 + $0x15c] sm:$0xf]
      %v889 = vld [vmem:[#allocation9 + $0x160] sm:$0xf]
      %v890 = vld [vmem:[#allocation9 + $0x164] sm:$0xf]
      %v891 = vld [vmem:[#allocation9 + $0x168] sm:$0xf]
      %v892 = vld [vmem:[#allocation9 + $0x16c] sm:$0xf]
      %v893 = vld [vmem:[#allocation9 + $0x170] sm:$0xf]
      %v894 = vld [vmem:[#allocation9 + $0x174] sm:$0xf]
      %v895 = vld [vmem:[#allocation9 + $0x178] sm:$0xf]
      %v896 = vld [vmem:[#allocation9 + $0x17c] sm:$0xf]
      %v897 = vld [vmem:[#allocation9 + $0x180] sm:$0xf]
      %v898 = vld [vmem:[#allocation9 + $0x184] sm:$0xf]
      %v899 = vld [vmem:[#allocation9 + $0x188] sm:$0xf]
      %v900 = vld [vmem:[#allocation9 + $0x18c] sm:$0xf]
      %v901 = vld [vmem:[#allocation9 + $0x190] sm:$0xf]
      %v902 = vld [vmem:[#allocation9 + $0x194] sm:$0xf]
      %v903 = vld [vmem:[#allocation9 + $0x198] sm:$0xf]
      %v904 = vld [vmem:[#allocation9 + $0x19c] sm:$0xf]
      %v905 = vld [vmem:[#allocation9 + $0x1a0] sm:$0xf]
      %v906 = vld [vmem:[#allocation9 + $0x1a4] sm:$0xf]
      %v907 = vld [vmem:[#allocation9 + $0x1a8] sm:$0xf]
      %v908 = vld [vmem:[#allocation9 + $0x1ac] sm:$0xf]
      %v909 = vld [vmem:[#allocation9 + $0x1b0] sm:$0xf]
      %v910 = vld [vmem:[#allocation9 + $0x1b4] sm:$0xf]
      %v911 = vld [vmem:[#allocation9 + $0x1b8] sm:$0xf]
      %v912 = vld [vmem:[#allocation9 + $0x1bc] sm:$0xf]
      %v913 = vld [vmem:[#allocation9 + $0x1c0] sm:$0xf]
      %v914 = vld [vmem:[#allocation9 + $0x1c4] sm:$0xf]
      %v915 = vld [vmem:[#allocation9 + $0x1c8] sm:$0xf]
      %v916 = vld [vmem:[#allocation9 + $0x1cc] sm:$0xf]
      %v917 = vld [vmem:[#allocation9 + $0x1d0] sm:$0xf]
      %v918 = vld [vmem:[#allocation9 + $0x1d4] sm:$0xf]
      %v919 = vld [vmem:[#allocation9 + $0x1d8] sm:$0xf]
      %v920 = vld [vmem:[#allocation9 + $0x1dc] sm:$0xf]
      %v921 = vld [vmem:[#allocation9 + $0x1e0] sm:$0xf]
      %v922 = vld [vmem:[#allocation9 + $0x1e4] sm:$0xf]
      %v923 = vld [vmem:[#allocation9 + $0x1e8] sm:$0xf]
      %v924 = vld [vmem:[#allocation9 + $0x1ec] sm:$0xf]
      %v925 = vld [vmem:[#allocation9 + $0x1f0] sm:$0xf]
      %v926 = vld [vmem:[#allocation9 + $0x1f4] sm:$0xf]
      %v927 = vld [vmem:[#allocation9 + $0x1f8] sm:$0xf]
      %v928 = vld [vmem:[#allocation9 + $0x1fc] sm:$0xf]
      %v929 = vld [vmem:[#allocation9 + $0x200] sm:$0xf]
      %v930 = vld [vmem:[#allocation9 + $0x204] sm:$0xf]
      %v931 = vld [vmem:[#allocation9 + $0x208] sm:$0xf]
      %v932 = vld [vmem:[#allocation9 + $0x20c] sm:$0xf]
      %v933 = vld [vmem:[#allocation9 + $0x210] sm:$0xf]
      %v934 = vld [vmem:[#allocation9 + $0x214] sm:$0xf]
      %v935 = vld [vmem:[#allocation9 + $0x218] sm:$0xf]
      %v936 = vld [vmem:[#allocation9 + $0x21c] sm:$0xf]
      %v937 = vld [vmem:[#allocation9 + $0x220] sm:$0xf]
      %v938 = vld [vmem:[#allocation9 + $0x224] sm:$0xf]
      %v939 = vld [vmem:[#allocation9 + $0x228] sm:$0xf]
      %v940 = vld [vmem:[#allocation9 + $0x22c] sm:$0xf]
      %v941 = vld [vmem:[#allocation9 + $0x230] sm:$0xf]
      %v942 = vld [vmem:[#allocation9 + $0x234] sm:$0xf]
      %v943 = vld [vmem:[#allocation9 + $0x238] sm:$0xf]
      %v944 = vld [vmem:[#allocation9 + $0x23c] sm:$0xf]
      %v945 = vld [vmem:[#allocation9 + $0x240] sm:$0xf]
      %v946 = vld [vmem:[#allocation9 + $0x244] sm:$0xf]
      %v947 = vld [vmem:[#allocation9 + $0x248] sm:$0xf]
      %v948 = vld [vmem:[#allocation9 + $0x24c] sm:$0xf]
      %v949 = vld [vmem:[#allocation9 + $0x250] sm:$0xf]
      %v950 = vld [vmem:[#allocation9 + $0x254] sm:$0xf]
      %v951 = vld [vmem:[#allocation9 + $0x258] sm:$0xf]
      %v952 = vld [vmem:[#allocation9 + $0x25c] sm:$0xf]
      %v953 = vld [vmem:[#allocation9 + $0x260] sm:$0xf]
      %v954 = vld [vmem:[#allocation9 + $0x264] sm:$0xf]
      %v955 = vld [vmem:[#allocation9 + $0x268] sm:$0xf]
      %v956 = vld [vmem:[#allocation9 + $0x26c] sm:$0xf]
      %v957 = vld [vmem:[#allocation9 + $0x270] sm:$0xf]
      %v958 = vld [vmem:[#allocation9 + $0x274] sm:$0xf]
      %v959 = vld [vmem:[#allocation9 + $0x278] sm:$0xf]
      %v960 = vld [vmem:[#allocation9 + $0x27c] sm:$0xf]
      %v961 = vld [vmem:[#allocation9 + $0x280] sm:$0xf]
      %v962 = vld [vmem:[#allocation9 + $0x284] sm:$0xf]
      %v963 = vld [vmem:[#allocation9 + $0x288] sm:$0xf]
      %v964 = vld [vmem:[#allocation9 + $0x28c] sm:$0xf]
      %v965 = vld [vmem:[#allocation9 + $0x290] sm:$0xf]
      %v966 = vld [vmem:[#allocation9 + $0x294] sm:$0xf]
      %v967 = vld [vmem:[#allocation9 + $0x298] sm:$0xf]
      %v968 = vld [vmem:[#allocation9 + $0x29c] sm:$0xf]
      %v969 = vld [vmem:[#allocation9 + $0x2a0] sm:$0xf]
      %v970 = vld [vmem:[#allocation9 + $0x2a4] sm:$0xf]
      %v971 = vld [vmem:[#allocation9 + $0x2a8] sm:$0xf]
      %v972 = vld [vmem:[#allocation9 + $0x2ac] sm:$0xf]
      %v973 = vld [vmem:[#allocation9 + $0x2b0] sm:$0xf]
      %v974 = vld [vmem:[#allocation9 + $0x2b4] sm:$0xf]
      %v975 = vld [vmem:[#allocation9 + $0x2b8] sm:$0xf]
      %v976 = vld [vmem:[#allocation9 + $0x2bc] sm:$0xf]
      %v977 = vld [vmem:[#allocation9 + $0x2c0] sm:$0xf]
      %v978 = vld [vmem:[#allocation9 + $0x2c4] sm:$0xf]
      %v979 = vld [vmem:[#allocation9 + $0x2c8] sm:$0xf]
      %v980 = vld [vmem:[#allocation9 + $0x2cc] sm:$0xf]
      %v981 = vld [vmem:[#allocation9 + $0x2d0] sm:$0xf]
      %v982 = vld [vmem:[#allocation9 + $0x2d4] sm:$0xf]
      %v983 = vld [vmem:[#allocation9 + $0x2d8] sm:$0xf]
      %v984 = vld [vmem:[#allocation9 + $0x2dc] sm:$0xf]
      %v985 = vld [vmem:[#allocation9 + $0x2e0] sm:$0xf]
      %v986 = vld [vmem:[#allocation9 + $0x2e4] sm:$0xf]
      %v987 = vld [vmem:[#allocation9 + $0x2e8] sm:$0xf]
      %v988 = vld [vmem:[#allocation9 + $0x2ec] sm:$0xf]
      %v989 = vld [vmem:[#allocation9 + $0x2f0] sm:$0xf]
      %v990 = vld [vmem:[#allocation9 + $0x2f4] sm:$0xf]
      %v991 = vld [vmem:[#allocation9 + $0x2f8] sm:$0xf]
      %v992 = vld [vmem:[#allocation9 + $0x2fc] sm:$0xf]
      %v993 = vld [vmem:[#allocation9 + $0x300] sm:$0xf]
      %v994 = vld [vmem:[#allocation9 + $0x304] sm:$0xf]
      %v995 = vld [vmem:[#allocation9 + $0x308] sm:$0xf]
      %v996 = vld [vmem:[#allocation9 + $0x30c] sm:$0xf]
      %v997 = vld [vmem:[#allocation9 + $0x310] sm:$0xf]
      %v998 = vld [vmem:[#allocation9 + $0x314] sm:$0xf]
      %v999 = vld [vmem:[#allocation9 + $0x318] sm:$0xf]
      %v1000 = vld [vmem:[#allocation9 + $0x31c] sm:$0xf]
      %v1001 = vld [vmem:[#allocation9 + $0x320] sm:$0xf]
      %v1002 = vld [vmem:[#allocation9 + $0x324] sm:$0xf]
      %v1003 = vld [vmem:[#allocation9 + $0x328] sm:$0xf]
      %v1004 = vld [vmem:[#allocation9 + $0x32c] sm:$0xf]
      %v1005 = vld [vmem:[#allocation9 + $0x330] sm:$0xf]
      %v1006 = vld [vmem:[#allocation9 + $0x334] sm:$0xf]
      %v1007 = vld [vmem:[#allocation9 + $0x338] sm:$0xf]
      %v1008 = vld [vmem:[#allocation9 + $0x33c] sm:$0xf]
      %v1009 = vld [vmem:[#allocation9 + $0x340] sm:$0xf]
      %v1010 = vld [vmem:[#allocation9 + $0x344] sm:$0xf]
      %v1011 = vld [vmem:[#allocation9 + $0x348] sm:$0xf]
      %v1012 = vld [vmem:[#allocation9 + $0x34c] sm:$0xf]
      %v1013 = vld [vmem:[#allocation9 + $0x350] sm:$0xf]
      %v1014 = vld [vmem:[#allocation9 + $0x354] sm:$0xf]
      %v1015 = vld [vmem:[#allocation9 + $0x358] sm:$0xf]
      %v1016 = vld [vmem:[#allocation9 + $0x35c] sm:$0xf]
      %v1017 = vld [vmem:[#allocation9 + $0x360] sm:$0xf]
      %v1018 = vld [vmem:[#allocation9 + $0x364] sm:$0xf]
      %v1019 = vld [vmem:[#allocation9 + $0x368] sm:$0xf]
      %v1020 = vld [vmem:[#allocation9 + $0x36c] sm:$0xf]
      %v1021 = vld [vmem:[#allocation9 + $0x370] sm:$0xf]
      %v1022 = vld [vmem:[#allocation9 + $0x374] sm:$0xf]
      %v1023 = vld [vmem:[#allocation9 + $0x378] sm:$0xf]
      %v1024 = vld [vmem:[#allocation9 + $0x37c] sm:$0xf]
      %v1025 = vld [vmem:[#allocation9 + $0x380] sm:$0xf]
      %v1026 = vld [vmem:[#allocation9 + $0x384] sm:$0xf]
      %v1027 = vld [vmem:[#allocation9 + $0x388] sm:$0xf]
      %v1028 = vld [vmem:[#allocation9 + $0x38c] sm:$0xf]
      %v1029 = vld [vmem:[#allocation9 + $0x390] sm:$0xf]
      %v1030 = vld [vmem:[#allocation9 + $0x394] sm:$0xf]
      %v1031 = vld [vmem:[#allocation9 + $0x398] sm:$0xf]
      %v1032 = vld [vmem:[#allocation9 + $0x39c] sm:$0xf]
      %v1033 = vld [vmem:[#allocation9 + $0x3a0] sm:$0xf]
      %v1034 = vld [vmem:[#allocation9 + $0x3a4] sm:$0xf]
      %v1035 = vld [vmem:[#allocation9 + $0x3a8] sm:$0xf]
      %v1036 = vld [vmem:[#allocation9 + $0x3ac] sm:$0xf]
      %v1037 = vld [vmem:[#allocation9 + $0x3b0] sm:$0xf]
      %v1038 = vld [vmem:[#allocation9 + $0x3b4] sm:$0xf]
      %v1039 = vld [vmem:[#allocation9 + $0x3b8] sm:$0xf]
      %v1040 = vld [vmem:[#allocation9 + $0x3bc] sm:$0xf]
      %v1041 = vld [vmem:[#allocation9 + $0x3c0] sm:$0xf]
      %v1042 = vld [vmem:[#allocation9 + $0x3c4] sm:$0xf]
      %v1043 = vld [vmem:[#allocation9 + $0x3c8] sm:$0xf]
      %v1044 = vld [vmem:[#allocation9 + $0x3cc] sm:$0xf]
      %v1045 = vld [vmem:[#allocation9 + $0x3d0] sm:$0xf]
      %v1046 = vld [vmem:[#allocation9 + $0x3d4] sm:$0xf]
      %v1047 = vld [vmem:[#allocation9 + $0x3d8] sm:$0xf]
      %v1048 = vld [vmem:[#allocation9 + $0x3dc] sm:$0xf]
      %v1049 = vld [vmem:[#allocation9 + $0x3e0] sm:$0xf]
      %v1050 = vld [vmem:[#allocation9 + $0x3e4] sm:$0xf]
      %v1051 = vld [vmem:[#allocation9 + $0x3e8] sm:$0xf]
      %v1052 = vld [vmem:[#allocation9 + $0x3ec] sm:$0xf]
      %v1053 = vld [vmem:[#allocation9 + $0x3f0] sm:$0xf]
      %v1054 = vld [vmem:[#allocation9 + $0x3f4] sm:$0xf]
      %v1055 = vld [vmem:[#allocation9 + $0x3f8] sm:$0xf]
      %v1056 = vld [vmem:[#allocation9 + $0x3fc] sm:$0xf]
      %v1057 = vld [vmem:[%s4] sm:$0x1]
      %v1059 = vlaneseq
      %v1060 = vshrl.u32 %v1059, 7
      %v1061 = vsub.s32 0, %v1060
      %v1062 = vrot.slane %v1057, %v1061
      %v1320 = vunpack.c.l.b16 %v801
      %v1321 = vunpack.c.l.b16 %v802
      %v1322 = vunpack.c.l.b16 %v803
      %v1323 = vunpack.c.l.b16 %v804
      %v1324 = vunpack.c.l.b16 %v805
      %v1325 = vunpack.c.l.b16 %v806
      %v1326 = vunpack.c.l.b16 %v807
      %v1327 = vunpack.c.l.b16 %v808
      %v1328 = vunpack.c.l.b16 %v809
      %v1329 = vunpack.c.l.b16 %v810
      %v1330 = vunpack.c.l.b16 %v811
      %v1331 = vunpack.c.l.b16 %v812
      %v1332 = vunpack.c.l.b16 %v813
      %v1333 = vunpack.c.l.b16 %v814
      %v1334 = vunpack.c.l.b16 %v815
      %v1335 = vunpack.c.l.b16 %v816
      %v1336 = vunpack.c.l.b16 %v817
      %v1337 = vunpack.c.l.b16 %v818
      %v1338 = vunpack.c.l.b16 %v819
      %v1339 = vunpack.c.l.b16 %v820
      %v1340 = vunpack.c.l.b16 %v821
      %v1341 = vunpack.c.l.b16 %v822
      %v1342 = vunpack.c.l.b16 %v823
      %v1343 = vunpack.c.l.b16 %v824
      %v1344 = vunpack.c.l.b16 %v825
      %v1345 = vunpack.c.l.b16 %v826
      %v1346 = vunpack.c.l.b16 %v827
      %v1347 = vunpack.c.l.b16 %v828
      %v1348 = vunpack.c.l.b16 %v829
      %v1349 = vunpack.c.l.b16 %v830
      %v1350 = vunpack.c.l.b16 %v831
      %v1351 = vunpack.c.l.b16 %v832
      %v1352 = vunpack.c.l.b16 %v833
      %v1353 = vunpack.c.l.b16 %v834
      %v1354 = vunpack.c.l.b16 %v835
      %v1355 = vunpack.c.l.b16 %v836
      %v1356 = vunpack.c.l.b16 %v837
      %v1357 = vunpack.c.l.b16 %v838
      %v1358 = vunpack.c.l.b16 %v839
      %v1359 = vunpack.c.l.b16 %v840
      %v1360 = vunpack.c.l.b16 %v841
      %v1361 = vunpack.c.l.b16 %v842
      %v1362 = vunpack.c.l.b16 %v843
      %v1363 = vunpack.c.l.b16 %v844
      %v1364 = vunpack.c.l.b16 %v845
      %v1365 = vunpack.c.l.b16 %v846
      %v1366 = vunpack.c.l.b16 %v847
      %v1367 = vunpack.c.l.b16 %v848
      %v1368 = vunpack.c.l.b16 %v849
      %v1369 = vunpack.c.l.b16 %v850
      %v1370 = vunpack.c.l.b16 %v851
      %v1371 = vunpack.c.l.b16 %v852
      %v1372 = vunpack.c.l.b16 %v853
      %v1373 = vunpack.c.l.b16 %v854
      %v1374 = vunpack.c.l.b16 %v855
      %v1375 = vunpack.c.l.b16 %v856
      %v1376 = vunpack.c.l.b16 %v857
      %v1377 = vunpack.c.l.b16 %v858
      %v1378 = vunpack.c.l.b16 %v859
      %v1379 = vunpack.c.l.b16 %v860
      %v1380 = vunpack.c.l.b16 %v861
      %v1381 = vunpack.c.l.b16 %v862
      %v1382 = vunpack.c.l.b16 %v863
      %v1383 = vunpack.c.l.b16 %v864
      %v1384 = vunpack.c.l.b16 %v865
      %v1385 = vunpack.c.l.b16 %v866
      %v1386 = vunpack.c.l.b16 %v867
      %v1387 = vunpack.c.l.b16 %v868
      %v1388 = vunpack.c.l.b16 %v869
      %v1389 = vunpack.c.l.b16 %v870
      %v1390 = vunpack.c.l.b16 %v871
      %v1391 = vunpack.c.l.b16 %v872
      %v1392 = vunpack.c.l.b16 %v873
      %v1393 = vunpack.c.l.b16 %v874
      %v1394 = vunpack.c.l.b16 %v875
      %v1395 = vunpack.c.l.b16 %v876
      %v1396 = vunpack.c.l.b16 %v877
      %v1397 = vunpack.c.l.b16 %v878
      %v1398 = vunpack.c.l.b16 %v879
      %v1399 = vunpack.c.l.b16 %v880
      %v1400 = vunpack.c.l.b16 %v881
      %v1401 = vunpack.c.l.b16 %v882
      %v1402 = vunpack.c.l.b16 %v883
      %v1403 = vunpack.c.l.b16 %v884
      %v1404 = vunpack.c.l.b16 %v885
      %v1405 = vunpack.c.l.b16 %v886
      %v1406 = vunpack.c.l.b16 %v887
      %v1407 = vunpack.c.l.b16 %v888
      %v1408 = vunpack.c.l.b16 %v889
      %v1409 = vunpack.c.l.b16 %v890
      %v1410 = vunpack.c.l.b16 %v891
      %v1411 = vunpack.c.l.b16 %v892
      %v1412 = vunpack.c.l.b16 %v893
      %v1413 = vunpack.c.l.b16 %v894
      %v1414 = vunpack.c.l.b16 %v895
      %v1415 = vunpack.c.l.b16 %v896
      %v1416 = vunpack.c.l.b16 %v897
      %v1417 = vunpack.c.l.b16 %v898
      %v1418 = vunpack.c.l.b16 %v899
      %v1419 = vunpack.c.l.b16 %v900
      %v1420 = vunpack.c.l.b16 %v901
      %v1421 = vunpack.c.l.b16 %v902
      %v1422 = vunpack.c.l.b16 %v903
      %v1423 = vunpack.c.l.b16 %v904
      %v1424 = vunpack.c.l.b16 %v905
      %v1425 = vunpack.c.l.b16 %v906
      %v1426 = vunpack.c.l.b16 %v907
      %v1427 = vunpack.c.l.b16 %v908
      %v1428 = vunpack.c.l.b16 %v909
      %v1429 = vunpack.c.l.b16 %v910
      %v1430 = vunpack.c.l.b16 %v911
      %v1431 = vunpack.c.l.b16 %v912
      %v1432 = vunpack.c.l.b16 %v913
      %v1433 = vunpack.c.l.b16 %v914
      %v1434 = vunpack.c.l.b16 %v915
      %v1435 = vunpack.c.l.b16 %v916
      %v1436 = vunpack.c.l.b16 %v917
      %v1437 = vunpack.c.l.b16 %v918
      %v1438 = vunpack.c.l.b16 %v919
      %v1439 = vunpack.c.l.b16 %v920
      %v1440 = vunpack.c.l.b16 %v921
      %v1441 = vunpack.c.l.b16 %v922
      %v1442 = vunpack.c.l.b16 %v923
      %v1443 = vunpack.c.l.b16 %v924
      %v1444 = vunpack.c.l.b16 %v925
      %v1445 = vunpack.c.l.b16 %v926
      %v1446 = vunpack.c.l.b16 %v927
      %v1447 = vunpack.c.l.b16 %v928
      %v1448 = vunpack.c.l.b16 %v929
      %v1449 = vunpack.c.l.b16 %v930
      %v1450 = vunpack.c.l.b16 %v931
      %v1451 = vunpack.c.l.b16 %v932
      %v1452 = vunpack.c.l.b16 %v933
      %v1453 = vunpack.c.l.b16 %v934
      %v1454 = vunpack.c.l.b16 %v935
      %v1455 = vunpack.c.l.b16 %v936
      %v1456 = vunpack.c.l.b16 %v937
      %v1457 = vunpack.c.l.b16 %v938
      %v1458 = vunpack.c.l.b16 %v939
      %v1459 = vunpack.c.l.b16 %v940
      %v1460 = vunpack.c.l.b16 %v941
      %v1461 = vunpack.c.l.b16 %v942
      %v1462 = vunpack.c.l.b16 %v943
      %v1463 = vunpack.c.l.b16 %v944
      %v1464 = vunpack.c.l.b16 %v945
      %v1465 = vunpack.c.l.b16 %v946
      %v1466 = vunpack.c.l.b16 %v947
      %v1467 = vunpack.c.l.b16 %v948
      %v1468 = vunpack.c.l.b16 %v949
      %v1469 = vunpack.c.l.b16 %v950
      %v1470 = vunpack.c.l.b16 %v951
      %v1471 = vunpack.c.l.b16 %v952
      %v1472 = vunpack.c.l.b16 %v953
      %v1473 = vunpack.c.l.b16 %v954
      %v1474 = vunpack.c.l.b16 %v955
      %v1475 = vunpack.c.l.b16 %v956
      %v1476 = vunpack.c.l.b16 %v957
      %v1477 = vunpack.c.l.b16 %v958
      %v1478 = vunpack.c.l.b16 %v959
      %v1479 = vunpack.c.l.b16 %v960
      %v1480 = vunpack.c.l.b16 %v961
      %v1481 = vunpack.c.l.b16 %v962
      %v1482 = vunpack.c.l.b16 %v963
      %v1483 = vunpack.c.l.b16 %v964
      %v1484 = vunpack.c.l.b16 %v965
      %v1485 = vunpack.c.l.b16 %v966
      %v1486 = vunpack.c.l.b16 %v967
      %v1487 = vunpack.c.l.b16 %v968
      %v1488 = vunpack.c.l.b16 %v969
      %v1489 = vunpack.c.l.b16 %v970
      %v1490 = vunpack.c.l.b16 %v971
      %v1491 = vunpack.c.l.b16 %v972
      %v1492 = vunpack.c.l.b16 %v973
      %v1493 = vunpack.c.l.b16 %v974
      %v1494 = vunpack.c.l.b16 %v975
      %v1495 = vunpack.c.l.b16 %v976
      %v1496 = vunpack.c.l.b16 %v977
      %v1497 = vunpack.c.l.b16 %v978
      %v1498 = vunpack.c.l.b16 %v979
      %v1499 = vunpack.c.l.b16 %v980
      %v1500 = vunpack.c.l.b16 %v981
      %v1501 = vunpack.c.l.b16 %v982
      %v1502 = vunpack.c.l.b16 %v983
      %v1503 = vunpack.c.l.b16 %v984
      %v1504 = vunpack.c.l.b16 %v985
      %v1505 = vunpack.c.l.b16 %v986
      %v1506 = vunpack.c.l.b16 %v987
      %v1507 = vunpack.c.l.b16 %v988
      %v1508 = vunpack.c.l.b16 %v989
      %v1509 = vunpack.c.l.b16 %v990
      %v1510 = vunpack.c.l.b16 %v991
      %v1511 = vunpack.c.l.b16 %v992
      %v1512 = vunpack.c.l.b16 %v993
      %v1513 = vunpack.c.l.b16 %v994
      %v1514 = vunpack.c.l.b16 %v995
      %v1515 = vunpack.c.l.b16 %v996
      %v1516 = vunpack.c.l.b16 %v997
      %v1517 = vunpack.c.l.b16 %v998
      %v1518 = vunpack.c.l.b16 %v999
      %v1519 = vunpack.c.l.b16 %v1000
      %v1520 = vunpack.c.l.b16 %v1001
      %v1521 = vunpack.c.l.b16 %v1002
      %v1522 = vunpack.c.l.b16 %v1003
      %v1523 = vunpack.c.l.b16 %v1004
      %v1524 = vunpack.c.l.b16 %v1005
      %v1525 = vunpack.c.l.b16 %v1006
      %v1526 = vunpack.c.l.b16 %v1007
      %v1527 = vunpack.c.l.b16 %v1008
      %v1528 = vunpack.c.l.b16 %v1009
      %v1529 = vunpack.c.l.b16 %v1010
      %v1530 = vunpack.c.l.b16 %v1011
      %v1531 = vunpack.c.l.b16 %v1012
      %v1532 = vunpack.c.l.b16 %v1013
      %v1533 = vunpack.c.l.b16 %v1014
      %v1534 = vunpack.c.l.b16 %v1015
      %v1535 = vunpack.c.l.b16 %v1016
      %v1536 = vunpack.c.l.b16 %v1017
      %v1537 = vunpack.c.l.b16 %v1018
      %v1538 = vunpack.c.l.b16 %v1019
      %v1539 = vunpack.c.l.b16 %v1020
      %v1540 = vunpack.c.l.b16 %v1021
      %v1541 = vunpack.c.l.b16 %v1022
      %v1542 = vunpack.c.l.b16 %v1023
      %v1543 = vunpack.c.l.b16 %v1024
      %v1544 = vunpack.c.l.b16 %v1025
      %v1545 = vunpack.c.l.b16 %v1026
      %v1546 = vunpack.c.l.b16 %v1027
      %v1547 = vunpack.c.l.b16 %v1028
      %v1548 = vunpack.c.l.b16 %v1029
      %v1549 = vunpack.c.l.b16 %v1030
      %v1550 = vunpack.c.l.b16 %v1031
      %v1551 = vunpack.c.l.b16 %v1032
      %v1552 = vunpack.c.l.b16 %v1033
      %v1553 = vunpack.c.l.b16 %v1034
      %v1554 = vunpack.c.l.b16 %v1035
      %v1555 = vunpack.c.l.b16 %v1036
      %v1556 = vunpack.c.l.b16 %v1037
      %v1557 = vunpack.c.l.b16 %v1038
      %v1558 = vunpack.c.l.b16 %v1039
      %v1559 = vunpack.c.l.b16 %v1040
      %v1560 = vunpack.c.l.b16 %v1041
      %v1561 = vunpack.c.l.b16 %v1042
      %v1562 = vunpack.c.l.b16 %v1043
      %v1563 = vunpack.c.l.b16 %v1044
      %v1564 = vunpack.c.l.b16 %v1045
      %v1565 = vunpack.c.l.b16 %v1046
      %v1566 = vunpack.c.l.b16 %v1047
      %v1567 = vunpack.c.l.b16 %v1048
      %v1568 = vunpack.c.l.b16 %v1049
      %v1569 = vunpack.c.l.b16 %v1050
      %v1570 = vunpack.c.l.b16 %v1051
      %v1571 = vunpack.c.l.b16 %v1052
      %v1572 = vunpack.c.l.b16 %v1053
      %v1573 = vunpack.c.l.b16 %v1054
      %v1574 = vunpack.c.l.b16 %v1055
      %v1575 = vunpack.c.l.b16 %v1056
      %v1576 = vpack.c.b16 %v1321, %v1320
      %v1577 = vpack.c.b16 %v1323, %v1322
      %v1578 = vpack.c.b16 %v1325, %v1324
      %v1579 = vpack.c.b16 %v1327, %v1326
      %v1580 = vpack.c.b16 %v1329, %v1328
      %v1581 = vpack.c.b16 %v1331, %v1330
      %v1582 = vpack.c.b16 %v1333, %v1332
      %v1583 = vpack.c.b16 %v1335, %v1334
      %v1584 = vpack.c.b16 %v1337, %v1336
      %v1585 = vpack.c.b16 %v1339, %v1338
      %v1586 = vpack.c.b16 %v1341, %v1340
      %v1587 = vpack.c.b16 %v1343, %v1342
      %v1588 = vpack.c.b16 %v1345, %v1344
      %v1589 = vpack.c.b16 %v1347, %v1346
      %v1590 = vpack.c.b16 %v1349, %v1348
      %v1591 = vpack.c.b16 %v1351, %v1350
      %v1592 = vpack.c.b16 %v1353, %v1352
      %v1593 = vpack.c.b16 %v1355, %v1354
      %v1594 = vpack.c.b16 %v1357, %v1356
      %v1595 = vpack.c.b16 %v1359, %v1358
      %v1596 = vpack.c.b16 %v1361, %v1360
      %v1597 = vpack.c.b16 %v1363, %v1362
      %v1598 = vpack.c.b16 %v1365, %v1364
      %v1599 = vpack.c.b16 %v1367, %v1366
      %v1600 = vpack.c.b16 %v1369, %v1368
      %v1601 = vpack.c.b16 %v1371, %v1370
      %v1602 = vpack.c.b16 %v1373, %v1372
      %v1603 = vpack.c.b16 %v1375, %v1374
      %v1604 = vpack.c.b16 %v1377, %v1376
      %v1605 = vpack.c.b16 %v1379, %v1378
      %v1606 = vpack.c.b16 %v1381, %v1380
      %v1607 = vpack.c.b16 %v1383, %v1382
      %v1608 = vpack.c.b16 %v1385, %v1384
      %v1609 = vpack.c.b16 %v1387, %v1386
      %v1610 = vpack.c.b16 %v1389, %v1388
      %v1611 = vpack.c.b16 %v1391, %v1390
      %v1612 = vpack.c.b16 %v1393, %v1392
      %v1613 = vpack.c.b16 %v1395, %v1394
      %v1614 = vpack.c.b16 %v1397, %v1396
      %v1615 = vpack.c.b16 %v1399, %v1398
      %v1616 = vpack.c.b16 %v1401, %v1400
      %v1617 = vpack.c.b16 %v1403, %v1402
      %v1618 = vpack.c.b16 %v1405, %v1404
      %v1619 = vpack.c.b16 %v1407, %v1406
      %v1620 = vpack.c.b16 %v1409, %v1408
      %v1621 = vpack.c.b16 %v1411, %v1410
      %v1622 = vpack.c.b16 %v1413, %v1412
      %v1623 = vpack.c.b16 %v1415, %v1414
      %v1624 = vpack.c.b16 %v1417, %v1416
      %v1625 = vpack.c.b16 %v1419, %v1418
      %v1626 = vpack.c.b16 %v1421, %v1420
      %v1627 = vpack.c.b16 %v1423, %v1422
      %v1628 = vpack.c.b16 %v1425, %v1424
      %v1629 = vpack.c.b16 %v1427, %v1426
      %v1630 = vpack.c.b16 %v1429, %v1428
      %v1631 = vpack.c.b16 %v1431, %v1430
      %v1632 = vpack.c.b16 %v1433, %v1432
      %v1633 = vpack.c.b16 %v1435, %v1434
      %v1634 = vpack.c.b16 %v1437, %v1436
      %v1635 = vpack.c.b16 %v1439, %v1438
      %v1636 = vpack.c.b16 %v1441, %v1440
      %v1637 = vpack.c.b16 %v1443, %v1442
      %v1638 = vpack.c.b16 %v1445, %v1444
      %v1639 = vpack.c.b16 %v1447, %v1446
      %v1640 = vpack.c.b16 %v1449, %v1448
      %v1641 = vpack.c.b16 %v1451, %v1450
      %v1642 = vpack.c.b16 %v1453, %v1452
      %v1643 = vpack.c.b16 %v1455, %v1454
      %v1644 = vpack.c.b16 %v1457, %v1456
      %v1645 = vpack.c.b16 %v1459, %v1458
      %v1646 = vpack.c.b16 %v1461, %v1460
      %v1647 = vpack.c.b16 %v1463, %v1462
      %v1648 = vpack.c.b16 %v1465, %v1464
      %v1649 = vpack.c.b16 %v1467, %v1466
      %v1650 = vpack.c.b16 %v1469, %v1468
      %v1651 = vpack.c.b16 %v1471, %v1470
      %v1652 = vpack.c.b16 %v1473, %v1472
      %v1653 = vpack.c.b16 %v1475, %v1474
      %v1654 = vpack.c.b16 %v1477, %v1476
      %v1655 = vpack.c.b16 %v1479, %v1478
      %v1656 = vpack.c.b16 %v1481, %v1480
      %v1657 = vpack.c.b16 %v1483, %v1482
      %v1658 = vpack.c.b16 %v1485, %v1484
      %v1659 = vpack.c.b16 %v1487, %v1486
      %v1660 = vpack.c.b16 %v1489, %v1488
      %v1661 = vpack.c.b16 %v1491, %v1490
      %v1662 = vpack.c.b16 %v1493, %v1492
      %v1663 = vpack.c.b16 %v1495, %v1494
      %v1664 = vpack.c.b16 %v1497, %v1496
      %v1665 = vpack.c.b16 %v1499, %v1498
      %v1666 = vpack.c.b16 %v1501, %v1500
      %v1667 = vpack.c.b16 %v1503, %v1502
      %v1668 = vpack.c.b16 %v1505, %v1504
      %v1669 = vpack.c.b16 %v1507, %v1506
      %v1670 = vpack.c.b16 %v1509, %v1508
      %v1671 = vpack.c.b16 %v1511, %v1510
      %v1672 = vpack.c.b16 %v1513, %v1512
      %v1673 = vpack.c.b16 %v1515, %v1514
      %v1674 = vpack.c.b16 %v1517, %v1516
      %v1675 = vpack.c.b16 %v1519, %v1518
      %v1676 = vpack.c.b16 %v1521, %v1520
      %v1677 = vpack.c.b16 %v1523, %v1522
      %v1678 = vpack.c.b16 %v1525, %v1524
      %v1679 = vpack.c.b16 %v1527, %v1526
      %v1680 = vpack.c.b16 %v1529, %v1528
      %v1681 = vpack.c.b16 %v1531, %v1530
      %v1682 = vpack.c.b16 %v1533, %v1532
      %v1683 = vpack.c.b16 %v1535, %v1534
      %v1684 = vpack.c.b16 %v1537, %v1536
      %v1685 = vpack.c.b16 %v1539, %v1538
      %v1686 = vpack.c.b16 %v1541, %v1540
      %v1687 = vpack.c.b16 %v1543, %v1542
      %v1688 = vpack.c.b16 %v1545, %v1544
      %v1689 = vpack.c.b16 %v1547, %v1546
      %v1690 = vpack.c.b16 %v1549, %v1548
      %v1691 = vpack.c.b16 %v1551, %v1550
      %v1692 = vpack.c.b16 %v1553, %v1552
      %v1693 = vpack.c.b16 %v1555, %v1554
      %v1694 = vpack.c.b16 %v1557, %v1556
      %v1695 = vpack.c.b16 %v1559, %v1558
      %v1696 = vpack.c.b16 %v1561, %v1560
      %v1697 = vpack.c.b16 %v1563, %v1562
      %v1698 = vpack.c.b16 %v1565, %v1564
      %v1699 = vpack.c.b16 %v1567, %v1566
      %v1700 = vpack.c.b16 %v1569, %v1568
      %v1701 = vpack.c.b16 %v1571, %v1570
      %v1702 = vpack.c.b16 %v1573, %v1572
      %v1703 = vpack.c.b16 %v1575, %v1574
      %1832 = vmatprep.subr.bf16.mxu0 0
      %1833 = vmatpush1.bf16.msra.mxu0 %v1583
      %1834 = vmatprep.subr.bf16.mxu0 0
      %1835 = vmatpush1.bf16.msra.mxu0 %v1582
      %1836 = vmatprep.subr.bf16.mxu0 0
      %1837 = vmatpush1.bf16.msra.mxu0 %v1581
      %1838 = vmatprep.subr.bf16.mxu0 0
      %1839 = vmatpush1.bf16.msra.mxu0 %v1580
      %1840 = vmatprep.subr.bf16.mxu0 0
      %1841 = vmatpush1.bf16.msra.mxu0 %v1579
      %1842 = vmatprep.subr.bf16.mxu0 0
      %1843 = vmatpush1.bf16.msra.mxu0 %v1578
      %1844 = vmatprep.subr.bf16.mxu0 0
      %1845 = vmatpush1.bf16.msra.mxu0 %v1577
      %1846 = vmatprep.subr.bf16.mxu0 0
      %1847 = vmatpush1.bf16.msra.mxu0 %v1576
      %1848 = vmatprep.subr.bf16.mxu0 0
      %1849 = vmatpush2.bf16.msra.mxu0 %v1591
      %1850 = vmatprep.subr.bf16.mxu0 0
      %1851 = vmatpush2.bf16.msra.mxu0 %v1590
      %1852 = vmatprep.subr.bf16.mxu0 0
      %1853 = vmatpush2.bf16.msra.mxu0 %v1589
      %1854 = vmatprep.subr.bf16.mxu0 0
      %1855 = vmatpush2.bf16.msra.mxu0 %v1588
      %1856 = vmatprep.subr.bf16.mxu0 0
      %1857 = vmatpush2.bf16.msra.mxu0 %v1587
      %1858 = vmatprep.subr.bf16.mxu0 0
      %1859 = vmatpush2.bf16.msra.mxu0 %v1586
      %1860 = vmatprep.subr.bf16.mxu0 0
      %1861 = vmatpush2.bf16.msra.mxu0 %v1585
      %1862 = vmatprep.subr.bf16.mxu0 0
      %1863 = vmatpush2.bf16.msra.mxu0 %v1584
      %1864 = vmatprep.mubr.bf16.mxu0 %v786
      %1865 = vmatmul.mubr.bf16.gmra.mxu0 %v785
      %v1866 = vpop.f32.mrf.mxu0
      %v1867 = vadd.f32 %v1062, %v1866
      %v1868 = vpop.f32.mrf.mxu0
      %v1869 = vpop.f32.mrf.mxu0
      %v1870 = vpop.f32.mrf.mxu0
      %1871 = vdwg.mxu0
      %1872 = vmatprep.subr.bf16.mxu0 0
      %1873 = vmatpush1.bf16.msra.mxu0 %v1599
      %1874 = vmatprep.subr.bf16.mxu0 0
      %1875 = vmatpush1.bf16.msra.mxu0 %v1598
      %1876 = vmatprep.subr.bf16.mxu0 0
      %1877 = vmatpush1.bf16.msra.mxu0 %v1597
      %1878 = vmatprep.subr.bf16.mxu0 0
      %1879 = vmatpush1.bf16.msra.mxu0 %v1596
      %1880 = vmatprep.subr.bf16.mxu0 0
      %1881 = vmatpush1.bf16.msra.mxu0 %v1595
      %1882 = vmatprep.subr.bf16.mxu0 0
      %1883 = vmatpush1.bf16.msra.mxu0 %v1594
      %1884 = vmatprep.subr.bf16.mxu0 0
      %1885 = vmatpush1.bf16.msra.mxu0 %v1593
      %1886 = vmatprep.subr.bf16.mxu0 0
      %1887 = vmatpush1.bf16.msra.mxu0 %v1592
      %1888 = vmatprep.subr.bf16.mxu0 0
      %1889 = vmatpush2.bf16.msra.mxu0 %v1607
      %1890 = vmatprep.subr.bf16.mxu0 0
      %1891 = vmatpush2.bf16.msra.mxu0 %v1606
      %1892 = vmatprep.subr.bf16.mxu0 0
      %1893 = vmatpush2.bf16.msra.mxu0 %v1605
      %1894 = vmatprep.subr.bf16.mxu0 0
      %1895 = vmatpush2.bf16.msra.mxu0 %v1604
      %1896 = vmatprep.subr.bf16.mxu0 0
      %1897 = vmatpush2.bf16.msra.mxu0 %v1603
      %1898 = vmatprep.subr.bf16.mxu0 0
      %1899 = vmatpush2.bf16.msra.mxu0 %v1602
      %1900 = vmatprep.subr.bf16.mxu0 0
      %1901 = vmatpush2.bf16.msra.mxu0 %v1601
      %1902 = vmatprep.subr.bf16.mxu0 0
      %1903 = vmatpush2.bf16.msra.mxu0 %v1600
      %1904 = vmatprep.mubr.bf16.mxu0 %v788
      %1905 = vmatmul.mubr.bf16.gmra.mxu0 %v787
      %v1906 = vpop.f32.mrf.mxu0
      %v1907 = vadd.f32 %v1867, %v1906
      %v1908 = vpop.f32.mrf.mxu0
      %v1909 = vpop.f32.mrf.mxu0
      %v1910 = vpop.f32.mrf.mxu0
      %1911 = vdwg.mxu0
      %1912 = vmatprep.subr.bf16.mxu0 0
      %1913 = vmatpush1.bf16.msra.mxu0 %v1615
      %1914 = vmatprep.subr.bf16.mxu0 0
      %1915 = vmatpush1.bf16.msra.mxu0 %v1614
      %1916 = vmatprep.subr.bf16.mxu0 0
      %1917 = vmatpush1.bf16.msra.mxu0 %v1613
      %1918 = vmatprep.subr.bf16.mxu0 0
      %1919 = vmatpush1.bf16.msra.mxu0 %v1612
      %1920 = vmatprep.subr.bf16.mxu0 0
      %1921 = vmatpush1.bf16.msra.mxu0 %v1611
      %1922 = vmatprep.subr.bf16.mxu0 0
      %1923 = vmatpush1.bf16.msra.mxu0 %v1610
      %1924 = vmatprep.subr.bf16.mxu0 0
      %1925 = vmatpush1.bf16.msra.mxu0 %v1609
      %1926 = vmatprep.subr.bf16.mxu0 0
      %1927 = vmatpush1.bf16.msra.mxu0 %v1608
      %1928 = vmatprep.subr.bf16.mxu0 0
      %1929 = vmatpush2.bf16.msra.mxu0 %v1623
      %1930 = vmatprep.subr.bf16.mxu0 0
      %1931 = vmatpush2.bf16.msra.mxu0 %v1622
      %1932 = vmatprep.subr.bf16.mxu0 0
      %1933 = vmatpush2.bf16.msra.mxu0 %v1621
      %1934 = vmatprep.subr.bf16.mxu0 0
      %1935 = vmatpush2.bf16.msra.mxu0 %v1620
      %1936 = vmatprep.subr.bf16.mxu0 0
      %1937 = vmatpush2.bf16.msra.mxu0 %v1619
      %1938 = vmatprep.subr.bf16.mxu0 0
      %1939 = vmatpush2.bf16.msra.mxu0 %v1618
      %1940 = vmatprep.subr.bf16.mxu0 0
      %1941 = vmatpush2.bf16.msra.mxu0 %v1617
      %1942 = vmatprep.subr.bf16.mxu0 0
      %1943 = vmatpush2.bf16.msra.mxu0 %v1616
      %1944 = vmatprep.mubr.bf16.mxu0 %v790
      %1945 = vmatmul.mubr.bf16.gmra.mxu0 %v789
      %v1946 = vpop.f32.mrf.mxu0
      %v1947 = vadd.f32 %v1907, %v1946
      %v1948 = vpop.f32.mrf.mxu0
      %v1949 = vpop.f32.mrf.mxu0
      %v1950 = vpop.f32.mrf.mxu0
      %1951 = vdwg.mxu0
      %1952 = vmatprep.subr.bf16.mxu0 0
      %1953 = vmatpush1.bf16.msra.mxu0 %v1631
      %1954 = vmatprep.subr.bf16.mxu0 0
      %1955 = vmatpush1.bf16.msra.mxu0 %v1630
      %1956 = vmatprep.subr.bf16.mxu0 0
      %1957 = vmatpush1.bf16.msra.mxu0 %v1629
      %1958 = vmatprep.subr.bf16.mxu0 0
      %1959 = vmatpush1.bf16.msra.mxu0 %v1628
      %1960 = vmatprep.subr.bf16.mxu0 0
      %1961 = vmatpush1.bf16.msra.mxu0 %v1627
      %1962 = vmatprep.subr.bf16.mxu0 0
      %1963 = vmatpush1.bf16.msra.mxu0 %v1626
      %1964 = vmatprep.subr.bf16.mxu0 0
      %1965 = vmatpush1.bf16.msra.mxu0 %v1625
      %1966 = vmatprep.subr.bf16.mxu0 0
      %1967 = vmatpush1.bf16.msra.mxu0 %v1624
      %1968 = vmatprep.subr.bf16.mxu0 0
      %1969 = vmatpush2.bf16.msra.mxu0 %v1639
      %1970 = vmatprep.subr.bf16.mxu0 0
      %1971 = vmatpush2.bf16.msra.mxu0 %v1638
      %1972 = vmatprep.subr.bf16.mxu0 0
      %1973 = vmatpush2.bf16.msra.mxu0 %v1637
      %1974 = vmatprep.subr.bf16.mxu0 0
      %1975 = vmatpush2.bf16.msra.mxu0 %v1636
      %1976 = vmatprep.subr.bf16.mxu0 0
      %1977 = vmatpush2.bf16.msra.mxu0 %v1635
      %1978 = vmatprep.subr.bf16.mxu0 0
      %1979 = vmatpush2.bf16.msra.mxu0 %v1634
      %1980 = vmatprep.subr.bf16.mxu0 0
      %1981 = vmatpush2.bf16.msra.mxu0 %v1633
      %1982 = vmatprep.subr.bf16.mxu0 0
      %1983 = vmatpush2.bf16.msra.mxu0 %v1632
      %1984 = vmatprep.mubr.bf16.mxu0 %v792
      %1985 = vmatmul.mubr.bf16.gmra.mxu0 %v791
      %v1986 = vpop.f32.mrf.mxu0
      %v1987 = vadd.f32 %v1947, %v1986
      %v1988 = vpop.f32.mrf.mxu0
      %v1989 = vpop.f32.mrf.mxu0
      %v1990 = vpop.f32.mrf.mxu0
      %1991 = vdwg.mxu0
      %1992 = vmatprep.subr.bf16.mxu0 0
      %1993 = vmatpush1.bf16.msra.mxu0 %v1647
      %1994 = vmatprep.subr.bf16.mxu0 0
      %1995 = vmatpush1.bf16.msra.mxu0 %v1646
      %1996 = vmatprep.subr.bf16.mxu0 0
      %1997 = vmatpush1.bf16.msra.mxu0 %v1645
      %1998 = vmatprep.subr.bf16.mxu0 0
      %1999 = vmatpush1.bf16.msra.mxu0 %v1644
      %2000 = vmatprep.subr.bf16.mxu0 0
      %2001 = vmatpush1.bf16.msra.mxu0 %v1643
      %2002 = vmatprep.subr.bf16.mxu0 0
      %2003 = vmatpush1.bf16.msra.mxu0 %v1642
      %2004 = vmatprep.subr.bf16.mxu0 0
      %2005 = vmatpush1.bf16.msra.mxu0 %v1641
      %2006 = vmatprep.subr.bf16.mxu0 0
      %2007 = vmatpush1.bf16.msra.mxu0 %v1640
      %2008 = vmatprep.subr.bf16.mxu0 0
      %2009 = vmatpush2.bf16.msra.mxu0 %v1655
      %2010 = vmatprep.subr.bf16.mxu0 0
      %2011 = vmatpush2.bf16.msra.mxu0 %v1654
      %2012 = vmatprep.subr.bf16.mxu0 0
      %2013 = vmatpush2.bf16.msra.mxu0 %v1653
      %2014 = vmatprep.subr.bf16.mxu0 0
      %2015 = vmatpush2.bf16.msra.mxu0 %v1652
      %2016 = vmatprep.subr.bf16.mxu0 0
      %2017 = vmatpush2.bf16.msra.mxu0 %v1651
      %2018 = vmatprep.subr.bf16.mxu0 0
      %2019 = vmatpush2.bf16.msra.mxu0 %v1650
      %2020 = vmatprep.subr.bf16.mxu0 0
      %2021 = vmatpush2.bf16.msra.mxu0 %v1649
      %2022 = vmatprep.subr.bf16.mxu0 0
      %2023 = vmatpush2.bf16.msra.mxu0 %v1648
      %2024 = vmatprep.mubr.bf16.mxu0 %v794
      %2025 = vmatmul.mubr.bf16.gmra.mxu0 %v793
      %v2026 = vpop.f32.mrf.mxu0
      %v2027 = vadd.f32 %v1987, %v2026
      %v2028 = vpop.f32.mrf.mxu0
      %v2029 = vpop.f32.mrf.mxu0
      %v2030 = vpop.f32.mrf.mxu0
      %2031 = vdwg.mxu0
      %2032 = vmatprep.subr.bf16.mxu0 0
      %2033 = vmatpush1.bf16.msra.mxu0 %v1663
      %2034 = vmatprep.subr.bf16.mxu0 0
      %2035 = vmatpush1.bf16.msra.mxu0 %v1662
      %2036 = vmatprep.subr.bf16.mxu0 0
      %2037 = vmatpush1.bf16.msra.mxu0 %v1661
      %2038 = vmatprep.subr.bf16.mxu0 0
      %2039 = vmatpush1.bf16.msra.mxu0 %v1660
      %2040 = vmatprep.subr.bf16.mxu0 0
      %2041 = vmatpush1.bf16.msra.mxu0 %v1659
      %2042 = vmatprep.subr.bf16.mxu0 0
      %2043 = vmatpush1.bf16.msra.mxu0 %v1658
      %2044 = vmatprep.subr.bf16.mxu0 0
      %2045 = vmatpush1.bf16.msra.mxu0 %v1657
      %2046 = vmatprep.subr.bf16.mxu0 0
      %2047 = vmatpush1.bf16.msra.mxu0 %v1656
      %2048 = vmatprep.subr.bf16.mxu0 0
      %2049 = vmatpush2.bf16.msra.mxu0 %v1671
      %2050 = vmatprep.subr.bf16.mxu0 0
      %2051 = vmatpush2.bf16.msra.mxu0 %v1670
      %2052 = vmatprep.subr.bf16.mxu0 0
      %2053 = vmatpush2.bf16.msra.mxu0 %v1669
      %2054 = vmatprep.subr.bf16.mxu0 0
      %2055 = vmatpush2.bf16.msra.mxu0 %v1668
      %2056 = vmatprep.subr.bf16.mxu0 0
      %2057 = vmatpush2.bf16.msra.mxu0 %v1667
      %2058 = vmatprep.subr.bf16.mxu0 0
      %2059 = vmatpush2.bf16.msra.mxu0 %v1666
      %2060 = vmatprep.subr.bf16.mxu0 0
      %2061 = vmatpush2.bf16.msra.mxu0 %v1665
      %2062 = vmatprep.subr.bf16.mxu0 0
      %2063 = vmatpush2.bf16.msra.mxu0 %v1664
      %2064 = vmatprep.mubr.bf16.mxu0 %v796
      %2065 = vmatmul.mubr.bf16.gmra.mxu0 %v795
      %v2066 = vpop.f32.mrf.mxu0
      %v2067 = vadd.f32 %v2027, %v2066
      %v2068 = vpop.f32.mrf.mxu0
      %v2069 = vpop.f32.mrf.mxu0
      %v2070 = vpop.f32.mrf.mxu0
      %2071 = vdwg.mxu0
      %2072 = vmatprep.subr.bf16.mxu0 0
      %2073 = vmatpush1.bf16.msra.mxu0 %v1679
      %2074 = vmatprep.subr.bf16.mxu0 0
      %2075 = vmatpush1.bf16.msra.mxu0 %v1678
      %2076 = vmatprep.subr.bf16.mxu0 0
      %2077 = vmatpush1.bf16.msra.mxu0 %v1677
      %2078 = vmatprep.subr.bf16.mxu0 0
      %2079 = vmatpush1.bf16.msra.mxu0 %v1676
      %2080 = vmatprep.subr.bf16.mxu0 0
      %2081 = vmatpush1.bf16.msra.mxu0 %v1675
      %2082 = vmatprep.subr.bf16.mxu0 0
      %2083 = vmatpush1.bf16.msra.mxu0 %v1674
      %2084 = vmatprep.subr.bf16.mxu0 0
      %2085 = vmatpush1.bf16.msra.mxu0 %v1673
      %2086 = vmatprep.subr.bf16.mxu0 0
      %2087 = vmatpush1.bf16.msra.mxu0 %v1672
      %2088 = vmatprep.subr.bf16.mxu0 0
      %2089 = vmatpush2.bf16.msra.mxu0 %v1687
      %2090 = vmatprep.subr.bf16.mxu0 0
      %2091 = vmatpush2.bf16.msra.mxu0 %v1686
      %2092 = vmatprep.subr.bf16.mxu0 0
      %2093 = vmatpush2.bf16.msra.mxu0 %v1685
      %2094 = vmatprep.subr.bf16.mxu0 0
      %2095 = vmatpush2.bf16.msra.mxu0 %v1684
      %2096 = vmatprep.subr.bf16.mxu0 0
      %2097 = vmatpush2.bf16.msra.mxu0 %v1683
      %2098 = vmatprep.subr.bf16.mxu0 0
      %2099 = vmatpush2.bf16.msra.mxu0 %v1682
      %2100 = vmatprep.subr.bf16.mxu0 0
      %2101 = vmatpush2.bf16.msra.mxu0 %v1681
      %2102 = vmatprep.subr.bf16.mxu0 0
      %2103 = vmatpush2.bf16.msra.mxu0 %v1680
      %2104 = vmatprep.mubr.bf16.mxu0 %v798
      %2105 = vmatmul.mubr.bf16.gmra.mxu0 %v797
      %v2106 = vpop.f32.mrf.mxu0
      %v2107 = vadd.f32 %v2067, %v2106
      %v2108 = vpop.f32.mrf.mxu0
      %v2109 = vpop.f32.mrf.mxu0
      %v2110 = vpop.f32.mrf.mxu0
      %2111 = vdwg.mxu0
      %2112 = vmatprep.subr.bf16.mxu0 0
      %2113 = vmatpush1.bf16.msra.mxu0 %v1695
      %2114 = vmatprep.subr.bf16.mxu0 0
      %2115 = vmatpush1.bf16.msra.mxu0 %v1694
      %2116 = vmatprep.subr.bf16.mxu0 0
      %2117 = vmatpush1.bf16.msra.mxu0 %v1693
      %2118 = vmatprep.subr.bf16.mxu0 0
      %2119 = vmatpush1.bf16.msra.mxu0 %v1692
      %2120 = vmatprep.subr.bf16.mxu0 0
      %2121 = vmatpush1.bf16.msra.mxu0 %v1691
      %2122 = vmatprep.subr.bf16.mxu0 0
      %2123 = vmatpush1.bf16.msra.mxu0 %v1690
      %2124 = vmatprep.subr.bf16.mxu0 0
      %2125 = vmatpush1.bf16.msra.mxu0 %v1689
      %2126 = vmatprep.subr.bf16.mxu0 0
      %2127 = vmatpush1.bf16.msra.mxu0 %v1688
      %2128 = vmatprep.subr.bf16.mxu0 0
      %2129 = vmatpush2.bf16.msra.mxu0 %v1703
      %2130 = vmatprep.subr.bf16.mxu0 0
      %2131 = vmatpush2.bf16.msra.mxu0 %v1702
      %2132 = vmatprep.subr.bf16.mxu0 0
      %2133 = vmatpush2.bf16.msra.mxu0 %v1701
      %2134 = vmatprep.subr.bf16.mxu0 0
      %2135 = vmatpush2.bf16.msra.mxu0 %v1700
      %2136 = vmatprep.subr.bf16.mxu0 0
      %2137 = vmatpush2.bf16.msra.mxu0 %v1699
      %2138 = vmatprep.subr.bf16.mxu0 0
      %2139 = vmatpush2.bf16.msra.mxu0 %v1698
      %2140 = vmatprep.subr.bf16.mxu0 0
      %2141 = vmatpush2.bf16.msra.mxu0 %v1697
      %2142 = vmatprep.subr.bf16.mxu0 0
      %2143 = vmatpush2.bf16.msra.mxu0 %v1696
      %2144 = vmatprep.mubr.bf16.mxu0 %v800
      %2145 = vmatmul.mubr.bf16.gmra.mxu0 %v799
      %v2146 = vpop.f32.mrf.mxu0
      %v2147 = vadd.f32 %v2107, %v2146
      %v2148 = vpop.f32.mrf.mxu0
      %v2149 = vpop.f32.mrf.mxu0
      %v2150 = vpop.f32.mrf.mxu0
      %2151 = vdwg.mxu0
      %v2152 = vmax.f32 %v2147, 0.0
      %2153 = vst [vmem:[#allocation11] sm:$0xff] %v2152
    $region45: #{tpu_custom_call.1} parent=1 // pred_fallthru
      _
    // Predicated region
    $region46: #{tpu_custom_call.1} parent=1 // pred_check
      _
    $region47: #{tpu_custom_call.1} parent=1 // pred_check_branch
      %2155 = sbr.rel (0) target = $region49
    $region48: #{tpu_custom_call.1} parent=1 // pred_region
      %s2157 = ssub.s32 128, 128
      %2158 = vsyncadd [#allocation5], %s2157
      %s2160 = sshll.u32 [#allocation11], 4
      %s2161 = int_to_ptr.vmem [resolvable:$true] %s2160
      %2163 = dma.vmem_to_hbm [thread:$0]  %s2161, 128, %s5, [#allocation5]
    $region49: #{tpu_custom_call.1} parent=1 // pred_fallthru
      _
    // Predicated region
    $region50: #{tpu_custom_call.1} parent=1 // pred_check
      _
    $region51: #{tpu_custom_call.1} parent=1 // pred_check_branch
      %2165 = sbr.rel (0) target = $region53
    $region52: #{tpu_custom_call.1} parent=1 // pred_region
      %2166 = dma.done [#allocation5], 128
    $region53: #{tpu_custom_call.1} parent=1 // pred_fallthru
      _
    %2167 = vsyncpa [#allocation4], 1
    %2168 = vsyncpa [#allocation7], 1
    %2169 = vsyncpa [#allocation10], 1
    %2170 = vsyncpa [#allocation5], 1

</llo_original>
